<compile_context>
chip_gen: v7x
topology: tpu7x:2x2x1
jax: 0.10.0
libtpu: 0.0.40
codegen_flags: <defaults>
</compile_context>

<pallas_src>
import functools

import jax
import jax.numpy as jnp
from jax import lax
from jax.experimental import pallas as pl
from jax.experimental.pallas import tpu as pltpu

NEG_SLOPE = 0.01   # nn.LeakyReLU default
EPS = 1e-5         # nn.InstanceNorm2d default (affine=False, biased variance)


def _round_up(x, m):
    return ((x + m - 1) // m) * m


# ----------------------------------------------------------------------------
# In-kernel helpers
# ----------------------------------------------------------------------------
def _instance_norm(y, n_pix):
    """Single-pass biased instance norm over the spatial (sublane) axis.
    y: (P, C) f32."""
    inv_n = 1.0 / n_pix
    s1 = jnp.sum(y, axis=0, keepdims=True)
    s2 = jnp.sum(y * y, axis=0, keepdims=True)
    mean = s1 * inv_n
    var = jnp.maximum(s2 * inv_n - mean * mean, 0.0)
    return (y - mean) * lax.rsqrt(var + EPS)


def _leaky_relu(y):
    return jnp.where(y >= 0, y, NEG_SLOPE * y)


def _write_padded(pad_ref, v, keep_l, keep_r, pad_top):
    """Write v (P, C) f32 into the three pre-masked bf16 pad copies.

    pad_ref: (3, pad_top + P + pad_top, C) bf16 scratch.
      copy 0: unmasked          (used for dw =  0 taps)
      copy 1: col==0 rows zero  (used for dw = +1 taps: wrap reads land on col 0)
      copy 2: col==W-1 rows zero(used for dw = -1 taps: wrap reads land on col W-1)
    Masking happens here, in f32, once per conv — no per-tap selects later.
    Only the border rows are zeroed (interior is always fully overwritten).
    """
    p = v.shape[0]
    rows = pad_ref.shape[1]
    zb = jnp.zeros((pad_ref.shape[0], pad_top, pad_ref.shape[2]), pad_ref.dtype)
    pad_ref[:, 0:pad_top, :] = zb
    pad_ref[:, rows - pad_top:rows, :] = zb

    z = jnp.zeros_like(v)
    pad_ref[0, pad_top:pad_top + p, :] = v.astype(pad_ref.dtype)
    pad_ref[1, pad_top:pad_top + p, :] = jnp.where(keep_l, v, z).astype(pad_ref.dtype)
    pad_ref[2, pad_top:pad_top + p, :] = jnp.where(keep_r, v, z).astype(pad_ref.dtype)


def _conv3x3_stacked(pad_ref, w_ref, bias, *, width, pad_top, p):
    """3x3 'same' conv as a single stacked (P, 9*C) @ (9*C, Cout) bf16 MXU matmul.

    Row (dh) zero-padding comes from the zeroed border rows; column (dw)
    wrap-around is already zeroed in the pre-masked copies, so the off-by-one
    row reads of those copies are exactly the correctly-masked taps.
    """
    taps = []
    for dh in (-1, 0, 1):
        s = pad_top + dh * width           # multiple of 8 when width % 8 == 0
        taps.append(pad_ref[2, s - 1:s - 1 + p, :])   # dw = -1
        taps.append(pad_ref[0, s:s + p, :])           # dw =  0
        taps.append(pad_ref[1, s + 1:s + 1 + p, :])   # dw = +1
    blk = jnp.concatenate(taps, axis=1)               # (P, 9*C) bf16 im2col block
    return jnp.dot(blk, w_ref[...], preferred_element_type=jnp.float32) + bias


# ----------------------------------------------------------------------------
# Pallas kernel: fully fused ResidualDoubleConv for one sample
# ----------------------------------------------------------------------------
def _rdc_kernel(x_ref, w1s_ref, b1s_ref, w2s_ref, b2_ref, o_ref,
                xpad_ref, hpad_ref, *, width, pad_top):
    """x_ref: (1, Cin, P) f32 (NCHW-flat, lane-dense); o_ref: (1, Cout, P) f32.
    w1s: (9*Cin, 2*Cout) bf16 (conv1 taps | 1x1 identity on the center tap);
    w2s: (9*Cout, Cout) bf16; b1s: (1, 2*Cout) f32 (zeros in identity half);
    b2: (1, Cout) f32.  xpad/hpad: (3, pad_top+P+pad_top, C) bf16 scratch."""
    _, cin, p = x_ref.shape
    cout = o_ref.shape[1]

    x = x_ref[0]                  # (Cin, P) f32, lane-dense HBM->VMEM block
    xt = x.T                      # (P, Cin) f32 — small in-VMEM transpose

    col = lax.broadcasted_iota(jnp.int32, (p, 1), 0) % width
    keep_l = col != 0             # left neighbour exists
    keep_r = col != (width - 1)   # right neighbour exists

    # ---- conv1 (3x3) + 1x1 identity, one stacked matmul -> (P, 2*Cout) -------
    _write_padded(xpad_ref, xt, keep_l, keep_r, pad_top)
    z1 = _conv3x3_stacked(xpad_ref, w1s_ref, b1s_ref[...],
                          width=width, pad_top=pad_top, p=p)

    # joint single-pass InstanceNorm over [y1 | yid]  (per-channel, independent)
    z1n = _instance_norm(z1, p)
    h1 = _leaky_relu(z1n[:, :cout])     # conv2 input
    yid_n = z1n[:, cout:]               # normalised identity branch, kept for end

    # ---- conv2 (3x3), stats fused, no HBM round-trip --------------------------
    _write_padded(hpad_ref, h1, keep_l, keep_r, pad_top)
    y2 = _conv3x3_stacked(hpad_ref, w2s_ref, b2_ref[...],
                          width=width, pad_top=pad_top, p=p)

    # ---- residual add + final LeakyReLU, lane-dense NCHW store ----------------
    net = _leaky_relu(_instance_norm(y2, p) + yid_n)      # (P, Cout) f32
    o_ref[0] = net.T.astype(o_ref.dtype)                  # (Cout, P), full-width vst


# ----------------------------------------------------------------------------
# Wrapper (single jit around the whole forward)
# ----------------------------------------------------------------------------
def _stack_conv3x3(w):
    """PyTorch (Cout, Cin, 3, 3) -> (9*Cin, Cout), tap-major (kh*3+kw)."""
    cout, cin = w.shape[0], w.shape[1]
    return jnp.transpose(w, (2, 3, 1, 0)).reshape(9 * cin, cout)


@functools.partial(jax.jit, static_argnames=("out_dtype",))
def residual_double_conv(x_nchw, params, *, out_dtype=jnp.float32):
    n, cin, h, w = x_nchw.shape
    assert w >= 2, "width must be >= 2"
    cout = params["w1"].shape[0]
    p = h * w
    pad_top = _round_up(w + 1, 8)       # 8-aligned top/bottom pad rows
    pad_rows = p + 2 * pad_top

    # NCHW-flat: pure reshape, no HBM transpose of the activations.
    x_flat = x_nchw.reshape(n, cin, p)

    # conv1 taps + 1x1 identity folded onto the center-tap rows -> (9*Cin, 2*Cout)
    w1_stk = _stack_conv3x3(params["w1"])
    wid_t = jnp.transpose(params["wid"][:, :, 0, 0], (1, 0))            # (Cin, Cout)
    wid_stk = jnp.zeros((9 * cin, cout), params["wid"].dtype)
    wid_stk = wid_stk.at[4 * cin:5 * cin].set(wid_t)                    # center tap
    w1s = jnp.concatenate([w1_stk, wid_stk], axis=1).astype(jnp.bfloat16)
    b1s = jnp.concatenate(
        [params["b1"], jnp.zeros((cout,), params["b1"].dtype)]
    ).reshape(1, 2 * cout).astype(jnp.float32)

    w2s = _stack_conv3x3(params["w2"]).astype(jnp.bfloat16)             # (9*Cout, Cout)
    b2 = params["b2"].reshape(1, cout).astype(jnp.float32)

    kernel = functools.partial(_rdc_kernel, width=w, pad_top=pad_top)

    out_flat = pl.pallas_call(
        kernel,
        out_shape=jax.ShapeDtypeStruct((n, cout, p), out_dtype),
        grid=(n,),
        in_specs=[
            pl.BlockSpec((1, cin, p), lambda i: (i, 0, 0)),
            pl.BlockSpec((9 * cin, 2 * cout), lambda i: (0, 0)),
            pl.BlockSpec((1, 2 * cout), lambda i: (0, 0)),
            pl.BlockSpec((9 * cout, cout), lambda i: (0, 0)),
            pl.BlockSpec((1, cout), lambda i: (0, 0)),
        ],
        out_specs=pl.BlockSpec((1, cout, p), lambda i: (i, 0, 0)),
        scratch_shapes=[
            pltpu.VMEM((3, pad_rows, cin), jnp.bfloat16),    # x pad copies (C/L/R)
            pltpu.VMEM((3, pad_rows, cout), jnp.bfloat16),   # h1 pad copies (C/L/R)
        ],
        compiler_params=pltpu.CompilerParams(
            dimension_semantics=("parallel",),
            vmem_limit_bytes=32 * 1024 * 1024,
        ),
    )(x_flat, w1s, b1s, w2s, b2)

    return out_flat.reshape(n, cout, h, w)


# ----------------------------------------------------------------------------
# Pure-JAX reference (mirrors the kernel's bf16 MXU quantization)
# ----------------------------------------------------------------------------
def _ref_forward(x, prm):
    def conv(inp, w, b, pad):
        out = lax.conv_general_dilated(
            inp.astype(jnp.bfloat16), w.astype(jnp.bfloat16),
            window_strides=(1, 1), padding=pad,
            dimension_numbers=("NCHW", "OIHW", "NCHW"),
            preferred_element_type=jnp.float32)
        if b is not None:
            out = out + b.reshape(1, -1, 1, 1)
        return out

    def inorm(y):
        m = jnp.mean(y, axis=(2, 3), keepdims=True)
        v = jnp.mean((y - m) ** 2, axis=(2, 3), keepdims=True)
        return (y - m) * lax.rsqrt(v + EPS)

    def lrelu(y):
        return jnp.where(y >= 0, y, NEG_SLOPE * y)

    h = lrelu(inorm(conv(x, prm["w1"], prm["b1"], ((1, 1), (1, 1)))))
    y2 = conv(h, prm["w2"], prm["b2"], ((1, 1), (1, 1)))
    yid = conv(x, prm["wid"], None, ((0, 0), (0, 0)))
    return lrelu(inorm(y2) + inorm(yid))


# ----------------------------------------------------------------------------
if __name__ == "__main__":
    key = jax.random.PRNGKey(0)
    kx, k1, kb1, k2, kb2, k3 = jax.random.split(key, 6)

    N, Cin, Cout, H, W = 2, 4, 32, 16, 16
    x = jax.random.normal(kx, (N, Cin, H, W), jnp.float32)

    def conv_w(k, cout, cin, ksz):
        fan_in = cin * ksz * ksz
        return jax.random.normal(k, (cout, cin, ksz, ksz), jnp.float32) / jnp.sqrt(
            jnp.float32(fan_in))

    params = {
        "w1": conv_w(k1, Cout, Cin, 3),
        "b1": jax.random.normal(kb1, (Cout,), jnp.float32) * 0.05,
        "w2": conv_w(k2, Cout, Cout, 3),
        "b2": jax.random.normal(kb2, (Cout,), jnp.float32) * 0.05,
        "wid": conv_w(k3, Cout, Cin, 1),   # 1x1 identity conv, bias=False
    }

    out = jax.block_until_ready(residual_double_conv(x, params))
    assert out.shape == (N, Cout, H, W), out.shape
    assert bool(jnp.all(jnp.isfinite(out)))

    ref = jax.block_until_ready(_ref_forward(x, params))
    max_err = float(jnp.max(jnp.abs(out - ref)))
    assert max_err < 5e-2, f"max abs err vs reference = {max_err}"

    print("KERNEL_OK")
</pallas_src>

<mosaic_0001>
module attributes {stable_mosaic.version = 11 : i64} {
  func.func @_rdc_kernel(%arg0: i32, %arg1: memref<1x4x256xf32, #tpu.memory_space<vmem>>, %arg2: memref<36x64xbf16, #tpu.memory_space<vmem>>, %arg3: memref<1x64xf32, #tpu.memory_space<vmem>>, %arg4: memref<288x32xbf16, #tpu.memory_space<vmem>>, %arg5: memref<1x32xf32, #tpu.memory_space<vmem>>, %arg6: memref<1x32x256xf32, #tpu.memory_space<vmem>>, %arg7: memref<3x304x4xbf16, #tpu.memory_space<vmem>>, %arg8: memref<3x304x32xbf16, #tpu.memory_space<vmem>>) attributes {dimension_semantics = [#tpu.dimension_semantics<parallel>], iteration_bounds = array<i64: 2>, scalar_prefetch = 0 : i64, scratch_operands = 2 : i64, tpu.core_type = #tpu.core_type<tc>, window_params = [{transform_indices = @transform_0, window_bounds = array<i64: 1, 4, 256>}, {pipeline_mode = #tpu.pipeline_mode<synchronous>, transform_indices = @transform_1, window_bounds = array<i64: 36, 64>}, {pipeline_mode = #tpu.pipeline_mode<synchronous>, transform_indices = @transform_2, window_bounds = array<i64: 1, 64>}, {pipeline_mode = #tpu.pipeline_mode<synchronous>, transform_indices = @transform_3, window_bounds = array<i64: 288, 32>}, {pipeline_mode = #tpu.pipeline_mode<synchronous>, transform_indices = @transform_4, window_bounds = array<i64: 1, 32>}, {transform_indices = @transform_5, window_bounds = array<i64: 1, 32, 256>}]} {
    %c0 = arith.constant 0 : index
    %c0_0 = arith.constant 0 : index
    %c0_1 = arith.constant 0 : index
    %0 = vector.load %arg1[%c0, %c0_0, %c0_1] : memref<1x4x256xf32, #tpu.memory_space<vmem>>, vector<1x4x256xf32>
    %1 = vector.shape_cast %0 : vector<1x4x256xf32> to vector<4x256xf32>
    %2 = tpu.transpose %1, [1, 0] : vector<4x256xf32> -> vector<256x4xf32>
    %3 = tpu.iota {dimensions = array<i32: 0>} : vector<256x1xi32>
    %c16_i32 = arith.constant 16 : i32
    %c0_i32 = arith.constant 0 : i32
    %4 = arith.cmpi eq, %c16_i32, %c0_i32 : i32
    %c1_i32 = arith.constant 1 : i32
    %5 = arith.select %4, %c1_i32, %c16_i32 : i32
    %6 = vector.broadcast %5 : i32 to vector<256x1xi32>
    %7 = arith.remsi %3, %6 : vector<256x1xi32>
    %c0_i32_2 = arith.constant 0 : i32
    %8 = vector.broadcast %c0_i32_2 : i32 to vector<256x1xi32>
    %9 = arith.cmpi ne, %7, %8 : vector<256x1xi32>
    %c0_i32_3 = arith.constant 0 : i32
    %10 = vector.broadcast %c0_i32_3 : i32 to vector<256x1xi32>
    %11 = arith.cmpi slt, %7, %10 : vector<256x1xi32>
    %c0_i32_4 = arith.constant 0 : i32
    %12 = arith.cmpi slt, %5, %c0_i32_4 : i32
    %13 = vector.broadcast %12 : i1 to vector<256x1xi1>
    %14 = vector.broadcast %13 : vector<256x1xi1> to vector<256x1xi1>
    %15 = arith.xori %11, %14 : vector<256x1xi1>
    %16 = arith.andi %15, %9 : vector<256x1xi1>
    %17 = vector.broadcast %5 : i32 to vector<256x1xi32>
    %18 = arith.addi %7, %17 : vector<256x1xi32>
    %19 = arith.select %16, %18, %7 : vector<256x1xi1>, vector<256x1xi32>
    %c0_i32_5 = arith.constant 0 : i32
    %20 = vector.broadcast %c0_i32_5 : i32 to vector<256x1xi32>
    %21 = arith.cmpi ne, %19, %20 : vector<256x1xi32>
    %c15_i32 = arith.constant 15 : i32
    %22 = vector.broadcast %c15_i32 : i32 to vector<256x1xi32>
    %23 = arith.cmpi ne, %19, %22 : vector<256x1xi32>
    %cst = arith.constant 0.000000e+00 : bf16
    %24 = vector.broadcast %cst : bf16 to vector<3x24x4xbf16>
    %c0_6 = arith.constant 0 : index
    %c0_7 = arith.constant 0 : index
    %c0_8 = arith.constant 0 : index
    %25 = vector.load %arg7[%c0_6, %c0_7, %c0_8] : memref<3x304x4xbf16, #tpu.memory_space<vmem>>, vector<3x24x4xbf16>
    tpu.vector_store %arg7[%c0_6, %c0_7, %c0_8], %24 {strides = array<i32>} : memref<3x304x4xbf16, #tpu.memory_space<vmem>>, vector<3x24x4xbf16>,
    %c0_9 = arith.constant 0 : index
    %c280 = arith.constant 280 : index
    %c0_10 = arith.constant 0 : index
    %26 = vector.load %arg7[%c0_9, %c280, %c0_10] : memref<3x304x4xbf16, #tpu.memory_space<vmem>>, vector<3x24x4xbf16>
    tpu.vector_store %arg7[%c0_9, %c280, %c0_10], %24 {strides = array<i32>} : memref<3x304x4xbf16, #tpu.memory_space<vmem>>, vector<3x24x4xbf16>,
    %cst_11 = arith.constant 0.000000e+00 : f32
    %27 = vector.broadcast %cst_11 : f32 to vector<256x4xf32>
    %28 = arith.truncf %2 : vector<256x4xf32> to vector<256x4xbf16>
    %c0_12 = arith.constant 0 : index
    %c24 = arith.constant 24 : index
    %c0_13 = arith.constant 0 : index
    %29 = vector.load %arg7[%c0_12, %c24, %c0_13] : memref<3x304x4xbf16, #tpu.memory_space<vmem>>, vector<1x256x4xbf16>
    %30 = vector.shape_cast %29 : vector<1x256x4xbf16> to vector<256x4xbf16>
    %31 = vector.shape_cast %28 : vector<256x4xbf16> to vector<1x256x4xbf16>
    tpu.vector_store %arg7[%c0_12, %c24, %c0_13], %31 {strides = array<i32>} : memref<3x304x4xbf16, #tpu.memory_space<vmem>>, vector<1x256x4xbf16>,
    %32 = vector.shape_cast %21 : vector<256x1xi1> to vector<256x1xi1>
    %33 = vector.broadcast %32 : vector<256x1xi1> to vector<256x4xi1>
    %34 = arith.select %33, %2, %27 : vector<256x4xi1>, vector<256x4xf32>
    %35 = arith.truncf %34 : vector<256x4xf32> to vector<256x4xbf16>
    %c1 = arith.constant 1 : index
    %c24_14 = arith.constant 24 : index
    %c0_15 = arith.constant 0 : index
    %36 = vector.load %arg7[%c1, %c24_14, %c0_15] : memref<3x304x4xbf16, #tpu.memory_space<vmem>>, vector<1x256x4xbf16>
    %37 = vector.shape_cast %36 : vector<1x256x4xbf16> to vector<256x4xbf16>
    %38 = vector.shape_cast %35 : vector<256x4xbf16> to vector<1x256x4xbf16>
    tpu.vector_store %arg7[%c1, %c24_14, %c0_15], %38 {strides = array<i32>} : memref<3x304x4xbf16, #tpu.memory_space<vmem>>, vector<1x256x4xbf16>,
    %39 = vector.shape_cast %23 : vector<256x1xi1> to vector<256x1xi1>
    %40 = vector.broadcast %39 : vector<256x1xi1> to vector<256x4xi1>
    %41 = arith.select %40, %2, %27 : vector<256x4xi1>, vector<256x4xf32>
    %42 = arith.truncf %41 : vector<256x4xf32> to vector<256x4xbf16>
    %c2 = arith.constant 2 : index
    %c24_16 = arith.constant 24 : index
    %c0_17 = arith.constant 0 : index
    %43 = vector.load %arg7[%c2, %c24_16, %c0_17] : memref<3x304x4xbf16, #tpu.memory_space<vmem>>, vector<1x256x4xbf16>
    %44 = vector.shape_cast %43 : vector<1x256x4xbf16> to vector<256x4xbf16>
    %45 = vector.shape_cast %42 : vector<256x4xbf16> to vector<1x256x4xbf16>
    tpu.vector_store %arg7[%c2, %c24_16, %c0_17], %45 {strides = array<i32>} : memref<3x304x4xbf16, #tpu.memory_space<vmem>>, vector<1x256x4xbf16>,
    %c0_18 = arith.constant 0 : index
    %c0_19 = arith.constant 0 : index
    %46 = vector.load %arg3[%c0_18, %c0_19] : memref<1x64xf32, #tpu.memory_space<vmem>>, vector<1x64xf32>
    %c2_20 = arith.constant 2 : index
    %c7 = arith.constant 7 : index
    %c0_21 = arith.constant 0 : index
    %47 = vector.load %arg7[%c2_20, %c7, %c0_21] : memref<3x304x4xbf16, #tpu.memory_space<vmem>>, vector<1x256x4xbf16>
    %48 = vector.shape_cast %47 : vector<1x256x4xbf16> to vector<256x4xbf16>
    %c0_22 = arith.constant 0 : index
    %c8 = arith.constant 8 : index
    %c0_23 = arith.constant 0 : index
    %49 = vector.load %arg7[%c0_22, %c8, %c0_23] : memref<3x304x4xbf16, #tpu.memory_space<vmem>>, vector<1x256x4xbf16>
    %50 = vector.shape_cast %49 : vector<1x256x4xbf16> to vector<256x4xbf16>
    %c1_24 = arith.constant 1 : index
    %c9 = arith.constant 9 : index
    %c0_25 = arith.constant 0 : index
    %51 = vector.load %arg7[%c1_24, %c9, %c0_25] : memref<3x304x4xbf16, #tpu.memory_space<vmem>>, vector<1x256x4xbf16>
    %52 = vector.shape_cast %51 : vector<1x256x4xbf16> to vector<256x4xbf16>
    %c2_26 = arith.constant 2 : index
    %c23 = arith.constant 23 : index
    %c0_27 = arith.constant 0 : index
    %53 = vector.load %arg7[%c2_26, %c23, %c0_27] : memref<3x304x4xbf16, #tpu.memory_space<vmem>>, vector<1x256x4xbf16>
    %54 = vector.shape_cast %53 : vector<1x256x4xbf16> to vector<256x4xbf16>
    %c0_28 = arith.constant 0 : index
    %c24_29 = arith.constant 24 : index
    %c0_30 = arith.constant 0 : index
    %55 = vector.load %arg7[%c0_28, %c24_29, %c0_30] : memref<3x304x4xbf16, #tpu.memory_space<vmem>>, vector<1x256x4xbf16>
    %56 = vector.shape_cast %55 : vector<1x256x4xbf16> to vector<256x4xbf16>
    %c1_31 = arith.constant 1 : index
    %c25 = arith.constant 25 : index
    %c0_32 = arith.constant 0 : index
    %57 = vector.load %arg7[%c1_31, %c25, %c0_32] : memref<3x304x4xbf16, #tpu.memory_space<vmem>>, vector<1x256x4xbf16>
    %58 = vector.shape_cast %57 : vector<1x256x4xbf16> to vector<256x4xbf16>
    %c2_33 = arith.constant 2 : index
    %c39 = arith.constant 39 : index
    %c0_34 = arith.constant 0 : index
    %59 = vector.load %arg7[%c2_33, %c39, %c0_34] : memref<3x304x4xbf16, #tpu.memory_space<vmem>>, vector<1x256x4xbf16>
    %60 = vector.shape_cast %59 : vector<1x256x4xbf16> to vector<256x4xbf16>
    %c0_35 = arith.constant 0 : index
    %c40 = arith.constant 40 : index
    %c0_36 = arith.constant 0 : index
    %61 = vector.load %arg7[%c0_35, %c40, %c0_36] : memref<3x304x4xbf16, #tpu.memory_space<vmem>>, vector<1x256x4xbf16>
    %62 = vector.shape_cast %61 : vector<1x256x4xbf16> to vector<256x4xbf16>
    %c1_37 = arith.constant 1 : index
    %c41 = arith.constant 41 : index
    %c0_38 = arith.constant 0 : index
    %63 = vector.load %arg7[%c1_37, %c41, %c0_38] : memref<3x304x4xbf16, #tpu.memory_space<vmem>>, vector<1x256x4xbf16>
    %64 = vector.shape_cast %63 : vector<1x256x4xbf16> to vector<256x4xbf16>
    %65 = tpu.concatenate %48, %50, %52, %54, %56, %58, %60, %62, %64 in 1 : vector<256x4xbf16>, vector<256x4xbf16>, vector<256x4xbf16>, vector<256x4xbf16>, vector<256x4xbf16>, vector<256x4xbf16>, vector<256x4xbf16>, vector<256x4xbf16>, vector<256x4xbf16> -> vector<256x36xbf16>
    %c0_39 = arith.constant 0 : index
    %c0_40 = arith.constant 0 : index
    %66 = vector.load %arg2[%c0_39, %c0_40] : memref<36x64xbf16, #tpu.memory_space<vmem>>, vector<36x64xbf16>
    %cst_41 = arith.constant dense<0.000000e+00> : vector<256x64xf32>
    %67 = tpu.matmul %65, %66, %cst_41 {dimension_numbers = #tpu.dot_dimension_numbers<[1], [0], [0], [1], [0, 0, 1, 1], [], []>} : vector<256x36xbf16>, vector<36x64xbf16>, vector<256x64xf32> -> vector<256x64xf32>
    %68 = vector.broadcast %46 : vector<1x64xf32> to vector<256x64xf32>
    %69 = arith.addf %67, %68 : vector<256x64xf32>
    %cst_42 = arith.constant dense<0.000000e+00> : vector<64xf32>
    %70 = vector.multi_reduction <add>, %69, %cst_42 [0] : vector<256x64xf32> to vector<64xf32>
    %71 = vector.shape_cast %70 : vector<64xf32> to vector<1x64xf32>
    %72 = arith.mulf %69, %69 : vector<256x64xf32>
    %cst_43 = arith.constant dense<0.000000e+00> : vector<64xf32>
    %73 = vector.multi_reduction <add>, %72, %cst_43 [0] : vector<256x64xf32> to vector<64xf32>
    %74 = vector.shape_cast %73 : vector<64xf32> to vector<1x64xf32>
    %cst_44 = arith.constant 3.906250e-03 : f32
    %75 = vector.broadcast %cst_44 : f32 to vector<1x64xf32>
    %76 = arith.mulf %71, %75 : vector<1x64xf32>
    %cst_45 = arith.constant 3.906250e-03 : f32
    %77 = vector.broadcast %cst_45 : f32 to vector<1x64xf32>
    %78 = arith.mulf %74, %77 : vector<1x64xf32>
    %79 = arith.mulf %76, %76 : vector<1x64xf32>
    %80 = arith.subf %78, %79 : vector<1x64xf32>
    %cst_46 = arith.constant 0.000000e+00 : f32
    %81 = vector.broadcast %cst_46 : f32 to vector<1x64xf32>
    %82 = arith.maximumf %80, %81 : vector<1x64xf32>
    %83 = vector.broadcast %76 : vector<1x64xf32> to vector<256x64xf32>
    %84 = arith.subf %69, %83 : vector<256x64xf32>
    %cst_47 = arith.constant 9.99999974E-6 : f32
    %85 = vector.broadcast %cst_47 : f32 to vector<1x64xf32>
    %86 = arith.addf %82, %85 : vector<1x64xf32>
    %87 = math.rsqrt %86 : vector<1x64xf32>
    %88 = vector.broadcast %87 : vector<1x64xf32> to vector<256x64xf32>
    %89 = arith.mulf %84, %88 : vector<256x64xf32>
    %90 = vector.extract_strided_slice %89 {offsets = [0, 0], sizes = [256, 32], strides = [1, 1]} : vector<256x64xf32> to vector<256x32xf32>
    %cst_48 = arith.constant 0.000000e+00 : f32
    %91 = vector.broadcast %cst_48 : f32 to vector<256x32xf32>
    %92 = arith.cmpf oge, %90, %91 : vector<256x32xf32>
    %cst_49 = arith.constant 0.00999999977 : f32
    %93 = vector.broadcast %cst_49 : f32 to vector<256x32xf32>
    %94 = arith.mulf %93, %90 : vector<256x32xf32>
    %95 = arith.select %92, %90, %94 : vector<256x32xi1>, vector<256x32xf32>
    %96 = vector.extract_strided_slice %89 {offsets = [0, 32], sizes = [256, 32], strides = [1, 1]} : vector<256x64xf32> to vector<256x32xf32>
    %cst_50 = arith.constant 0.000000e+00 : bf16
    %97 = vector.broadcast %cst_50 : bf16 to vector<3x24x32xbf16>
    %c0_51 = arith.constant 0 : index
    %c0_52 = arith.constant 0 : index
    %c0_53 = arith.constant 0 : index
    %98 = vector.load %arg8[%c0_51, %c0_52, %c0_53] : memref<3x304x32xbf16, #tpu.memory_space<vmem>>, vector<3x24x32xbf16>
    tpu.vector_store %arg8[%c0_51, %c0_52, %c0_53], %97 {strides = array<i32>} : memref<3x304x32xbf16, #tpu.memory_space<vmem>>, vector<3x24x32xbf16>,
    %c0_54 = arith.constant 0 : index
    %c280_55 = arith.constant 280 : index
    %c0_56 = arith.constant 0 : index
    %99 = vector.load %arg8[%c0_54, %c280_55, %c0_56] : memref<3x304x32xbf16, #tpu.memory_space<vmem>>, vector<3x24x32xbf16>
    tpu.vector_store %arg8[%c0_54, %c280_55, %c0_56], %97 {strides = array<i32>} : memref<3x304x32xbf16, #tpu.memory_space<vmem>>, vector<3x24x32xbf16>,
    %cst_57 = arith.constant 0.000000e+00 : f32
    %100 = vector.broadcast %cst_57 : f32 to vector<256x32xf32>
    %101 = arith.truncf %95 : vector<256x32xf32> to vector<256x32xbf16>
    %c0_58 = arith.constant 0 : index
    %c24_59 = arith.constant 24 : index
    %c0_60 = arith.constant 0 : index
    %102 = vector.load %arg8[%c0_58, %c24_59, %c0_60] : memref<3x304x32xbf16, #tpu.memory_space<vmem>>, vector<1x256x32xbf16>
    %103 = vector.shape_cast %102 : vector<1x256x32xbf16> to vector<256x32xbf16>
    %104 = vector.shape_cast %101 : vector<256x32xbf16> to vector<1x256x32xbf16>
    tpu.vector_store %arg8[%c0_58, %c24_59, %c0_60], %104 {strides = array<i32>} : memref<3x304x32xbf16, #tpu.memory_space<vmem>>, vector<1x256x32xbf16>,
    %105 = vector.shape_cast %21 : vector<256x1xi1> to vector<256x1xi1>
    %106 = vector.broadcast %105 : vector<256x1xi1> to vector<256x32xi1>
    %107 = arith.select %106, %95, %100 : vector<256x32xi1>, vector<256x32xf32>
    %108 = arith.truncf %107 : vector<256x32xf32> to vector<256x32xbf16>
    %c1_61 = arith.constant 1 : index
    %c24_62 = arith.constant 24 : index
    %c0_63 = arith.constant 0 : index
    %109 = vector.load %arg8[%c1_61, %c24_62, %c0_63] : memref<3x304x32xbf16, #tpu.memory_space<vmem>>, vector<1x256x32xbf16>
    %110 = vector.shape_cast %109 : vector<1x256x32xbf16> to vector<256x32xbf16>
    %111 = vector.shape_cast %108 : vector<256x32xbf16> to vector<1x256x32xbf16>
    tpu.vector_store %arg8[%c1_61, %c24_62, %c0_63], %111 {strides = array<i32>} : memref<3x304x32xbf16, #tpu.memory_space<vmem>>, vector<1x256x32xbf16>,
    %112 = vector.shape_cast %23 : vector<256x1xi1> to vector<256x1xi1>
    %113 = vector.broadcast %112 : vector<256x1xi1> to vector<256x32xi1>
    %114 = arith.select %113, %95, %100 : vector<256x32xi1>, vector<256x32xf32>
    %115 = arith.truncf %114 : vector<256x32xf32> to vector<256x32xbf16>
    %c2_64 = arith.constant 2 : index
    %c24_65 = arith.constant 24 : index
    %c0_66 = arith.constant 0 : index
    %116 = vector.load %arg8[%c2_64, %c24_65, %c0_66] : memref<3x304x32xbf16, #tpu.memory_space<vmem>>, vector<1x256x32xbf16>
    %117 = vector.shape_cast %116 : vector<1x256x32xbf16> to vector<256x32xbf16>
    %118 = vector.shape_cast %115 : vector<256x32xbf16> to vector<1x256x32xbf16>
    tpu.vector_store %arg8[%c2_64, %c24_65, %c0_66], %118 {strides = array<i32>} : memref<3x304x32xbf16, #tpu.memory_space<vmem>>, vector<1x256x32xbf16>,
    %c0_67 = arith.constant 0 : index
    %c0_68 = arith.constant 0 : index
    %119 = vector.load %arg5[%c0_67, %c0_68] : memref<1x32xf32, #tpu.memory_space<vmem>>, vector<1x32xf32>
    %c2_69 = arith.constant 2 : index
    %c7_70 = arith.constant 7 : index
    %c0_71 = arith.constant 0 : index
    %120 = vector.load %arg8[%c2_69, %c7_70, %c0_71] : memref<3x304x32xbf16, #tpu.memory_space<vmem>>, vector<1x256x32xbf16>
    %121 = vector.shape_cast %120 : vector<1x256x32xbf16> to vector<256x32xbf16>
    %c0_72 = arith.constant 0 : index
    %c8_73 = arith.constant 8 : index
    %c0_74 = arith.constant 0 : index
    %122 = vector.load %arg8[%c0_72, %c8_73, %c0_74] : memref<3x304x32xbf16, #tpu.memory_space<vmem>>, vector<1x256x32xbf16>
    %123 = vector.shape_cast %122 : vector<1x256x32xbf16> to vector<256x32xbf16>
    %c1_75 = arith.constant 1 : index
    %c9_76 = arith.constant 9 : index
    %c0_77 = arith.constant 0 : index
    %124 = vector.load %arg8[%c1_75, %c9_76, %c0_77] : memref<3x304x32xbf16, #tpu.memory_space<vmem>>, vector<1x256x32xbf16>
    %125 = vector.shape_cast %124 : vector<1x256x32xbf16> to vector<256x32xbf16>
    %c2_78 = arith.constant 2 : index
    %c23_79 = arith.constant 23 : index
    %c0_80 = arith.constant 0 : index
    %126 = vector.load %arg8[%c2_78, %c23_79, %c0_80] : memref<3x304x32xbf16, #tpu.memory_space<vmem>>, vector<1x256x32xbf16>
    %127 = vector.shape_cast %126 : vector<1x256x32xbf16> to vector<256x32xbf16>
    %c0_81 = arith.constant 0 : index
    %c24_82 = arith.constant 24 : index
    %c0_83 = arith.constant 0 : index
    %128 = vector.load %arg8[%c0_81, %c24_82, %c0_83] : memref<3x304x32xbf16, #tpu.memory_space<vmem>>, vector<1x256x32xbf16>
    %129 = vector.shape_cast %128 : vector<1x256x32xbf16> to vector<256x32xbf16>
    %c1_84 = arith.constant 1 : index
    %c25_85 = arith.constant 25 : index
    %c0_86 = arith.constant 0 : index
    %130 = vector.load %arg8[%c1_84, %c25_85, %c0_86] : memref<3x304x32xbf16, #tpu.memory_space<vmem>>, vector<1x256x32xbf16>
    %131 = vector.shape_cast %130 : vector<1x256x32xbf16> to vector<256x32xbf16>
    %c2_87 = arith.constant 2 : index
    %c39_88 = arith.constant 39 : index
    %c0_89 = arith.constant 0 : index
    %132 = vector.load %arg8[%c2_87, %c39_88, %c0_89] : memref<3x304x32xbf16, #tpu.memory_space<vmem>>, vector<1x256x32xbf16>
    %133 = vector.shape_cast %132 : vector<1x256x32xbf16> to vector<256x32xbf16>
    %c0_90 = arith.constant 0 : index
    %c40_91 = arith.constant 40 : index
    %c0_92 = arith.constant 0 : index
    %134 = vector.load %arg8[%c0_90, %c40_91, %c0_92] : memref<3x304x32xbf16, #tpu.memory_space<vmem>>, vector<1x256x32xbf16>
    %135 = vector.shape_cast %134 : vector<1x256x32xbf16> to vector<256x32xbf16>
    %c1_93 = arith.constant 1 : index
    %c41_94 = arith.constant 41 : index
    %c0_95 = arith.constant 0 : index
    %136 = vector.load %arg8[%c1_93, %c41_94, %c0_95] : memref<3x304x32xbf16, #tpu.memory_space<vmem>>, vector<1x256x32xbf16>
    %137 = vector.shape_cast %136 : vector<1x256x32xbf16> to vector<256x32xbf16>
    %138 = tpu.concatenate %121, %123, %125, %127, %129, %131, %133, %135, %137 in 1 : vector<256x32xbf16>, vector<256x32xbf16>, vector<256x32xbf16>, vector<256x32xbf16>, vector<256x32xbf16>, vector<256x32xbf16>, vector<256x32xbf16>, vector<256x32xbf16>, vector<256x32xbf16> -> vector<256x288xbf16>
    %c0_96 = arith.constant 0 : index
    %c0_97 = arith.constant 0 : index
    %139 = vector.load %arg4[%c0_96, %c0_97] : memref<288x32xbf16, #tpu.memory_space<vmem>>, vector<288x32xbf16>
    %cst_98 = arith.constant dense<0.000000e+00> : vector<256x32xf32>
    %140 = tpu.matmul %138, %139, %cst_98 {dimension_numbers = #tpu.dot_dimension_numbers<[1], [0], [0], [1], [0, 0, 1, 1], [], []>} : vector<256x288xbf16>, vector<288x32xbf16>, vector<256x32xf32> -> vector<256x32xf32>
    %141 = vector.broadcast %119 : vector<1x32xf32> to vector<256x32xf32>
    %142 = arith.addf %140, %141 : vector<256x32xf32>
    %cst_99 = arith.constant dense<0.000000e+00> : vector<32xf32>
    %143 = vector.multi_reduction <add>, %142, %cst_99 [0] : vector<256x32xf32> to vector<32xf32>
    %144 = vector.shape_cast %143 : vector<32xf32> to vector<1x32xf32>
    %145 = arith.mulf %142, %142 : vector<256x32xf32>
    %cst_100 = arith.constant dense<0.000000e+00> : vector<32xf32>
    %146 = vector.multi_reduction <add>, %145, %cst_100 [0] : vector<256x32xf32> to vector<32xf32>
    %147 = vector.shape_cast %146 : vector<32xf32> to vector<1x32xf32>
    %cst_101 = arith.constant 3.906250e-03 : f32
    %148 = vector.broadcast %cst_101 : f32 to vector<1x32xf32>
    %149 = arith.mulf %144, %148 : vector<1x32xf32>
    %cst_102 = arith.constant 3.906250e-03 : f32
    %150 = vector.broadcast %cst_102 : f32 to vector<1x32xf32>
    %151 = arith.mulf %147, %150 : vector<1x32xf32>
    %152 = arith.mulf %149, %149 : vector<1x32xf32>
    %153 = arith.subf %151, %152 : vector<1x32xf32>
    %cst_103 = arith.constant 0.000000e+00 : f32
    %154 = vector.broadcast %cst_103 : f32 to vector<1x32xf32>
    %155 = arith.maximumf %153, %154 : vector<1x32xf32>
    %156 = vector.broadcast %149 : vector<1x32xf32> to vector<256x32xf32>
    %157 = arith.subf %142, %156 : vector<256x32xf32>
    %cst_104 = arith.constant 9.99999974E-6 : f32
    %158 = vector.broadcast %cst_104 : f32 to vector<1x32xf32>
    %159 = arith.addf %155, %158 : vector<1x32xf32>
    %160 = math.rsqrt %159 : vector<1x32xf32>
    %161 = vector.broadcast %160 : vector<1x32xf32> to vector<256x32xf32>
    %162 = arith.mulf %157, %161 : vector<256x32xf32>
    %163 = arith.addf %162, %96 : vector<256x32xf32>
    %cst_105 = arith.constant 0.000000e+00 : f32
    %164 = vector.broadcast %cst_105 : f32 to vector<256x32xf32>
    %165 = arith.cmpf oge, %163, %164 : vector<256x32xf32>
    %cst_106 = arith.constant 0.00999999977 : f32
    %166 = vector.broadcast %cst_106 : f32 to vector<256x32xf32>
    %167 = arith.mulf %166, %163 : vector<256x32xf32>
    %168 = arith.select %165, %163, %167 : vector<256x32xi1>, vector<256x32xf32>
    %169 = tpu.transpose %168, [1, 0] : vector<256x32xf32> -> vector<32x256xf32>
    %c0_107 = arith.constant 0 : index
    %c0_108 = arith.constant 0 : index
    %c0_109 = arith.constant 0 : index
    %170 = vector.load %arg6[%c0_107, %c0_108, %c0_109] : memref<1x32x256xf32, #tpu.memory_space<vmem>>, vector<1x32x256xf32>
    %171 = vector.shape_cast %170 : vector<1x32x256xf32> to vector<32x256xf32>
    %172 = vector.shape_cast %169 : vector<32x256xf32> to vector<1x32x256xf32>
    tpu.vector_store %arg6[%c0_107, %c0_108, %c0_109], %172 {strides = array<i32>} : memref<1x32x256xf32, #tpu.memory_space<vmem>>, vector<1x32x256xf32>,
    return
  }
  func.func @transform_0(%arg0: i32) -> (i32, i32, i32) {
    %c0_i32 = arith.constant 0 : i32
    %c0_i32_0 = arith.constant 0 : i32
    %c0_i32_1 = arith.constant 0 : i32
    return %arg0, %c0_i32, %c0_i32_0 : i32, i32, i32
  }
  func.func @transform_1(%arg0: i32) -> (i32, i32) {
    %c0_i32 = arith.constant 0 : i32
    %c0_i32_0 = arith.constant 0 : i32
    %c0_i32_1 = arith.constant 0 : i32
    return %c0_i32, %c0_i32_0 : i32, i32
  }
  func.func @transform_2(%arg0: i32) -> (i32, i32) {
    %c0_i32 = arith.constant 0 : i32
    %c0_i32_0 = arith.constant 0 : i32
    %c0_i32_1 = arith.constant 0 : i32
    return %c0_i32, %c0_i32_0 : i32, i32
  }
  func.func @transform_3(%arg0: i32) -> (i32, i32) {
    %c0_i32 = arith.constant 0 : i32
    %c0_i32_0 = arith.constant 0 : i32
    %c0_i32_1 = arith.constant 0 : i32
    return %c0_i32, %c0_i32_0 : i32, i32
  }
  func.func @transform_4(%arg0: i32) -> (i32, i32) {
    %c0_i32 = arith.constant 0 : i32
    %c0_i32_0 = arith.constant 0 : i32
    %c0_i32_1 = arith.constant 0 : i32
    return %c0_i32, %c0_i32_0 : i32, i32
  }
  func.func @transform_5(%arg0: i32) -> (i32, i32, i32) {
    %c0_i32 = arith.constant 0 : i32
    %c0_i32_0 = arith.constant 0 : i32
    %c0_i32_1 = arith.constant 0 : i32
    return %arg0, %c0_i32, %c0_i32_0 : i32, i32, i32
  }
}

</mosaic_0001>

<llo_original>
// kernel: residual_double_conv.1
$region0: #{residual_double_conv.1}
  #allocation0 [shape = 'u32[]', space=smem, size = 0x4, offset = 0x4, fixed_abs, tag = 'smem constant byte address 0x4 - core index']
  #allocation1 [shape = 'u32[144,128]{1,0:T(1,128)}', space=vmem, size = 0x12000, scoped, tag = 'internal scratch']
  #allocation2 [shape = 'bf16[3,304,4]{2,1,0:T(16,128)(2,1)}', space=vmem, size = 0x39000, scoped, tag = 'scratch operand']
  #allocation3 [shape = 'bf16[3,304,32]{2,1,0:T(16,128)(2,1)}', space=vmem, size = 0x39000, scoped, tag = 'scratch operand']
  %s0 = inlined_call_operand.vmem [shape: f32[2,4,256], index: 0, kind: input, shape index: {}]
  %s1 = inlined_call_operand.vmem [shape: bf16[36,64], index: 1, kind: input, shape index: {}]
  %s2 = inlined_call_operand.vmem [shape: f32[1,64], index: 2, kind: input, shape index: {}]
  %s3 = inlined_call_operand.vmem [shape: bf16[288,32], index: 3, kind: input, shape index: {}]
  %s4 = inlined_call_operand.vmem [shape: f32[1,32], index: 4, kind: input, shape index: {}]
  %s5 = inlined_call_operand.vmem [shape: f32[2,32,256], index: 5, kind: output, shape index: {}]
  %s6 = sld [smem:[#allocation0]]
  $region53: #{residual_double_conv.1} parent=0
    _
  %s8 = ssub.s32 1, %s6
  %s9 = scalar_select 0, %s8, %s6
  loop: start=0, step=1, limit=4
  $region2: #{residual_double_conv.1} parent=0 // loop_pre_header
    _
  $region3: #{residual_double_conv.1} parent=0 // loop_header
    %s11 = sphi 0, %s15
    %p12 = scmp.ge.s32.totalorder %s11, 4
    %s21 = sphi 0, %s23
    %s24 = sphi 0, %s21
    %s25 = sphi 0, %s24
    %s41 = sphi 0, %s25
    %s45 = sphi 0, %s45
    %s47 = sphi 0, %s45
    %s48 = sphi 0, %s47
    %s62 = sphi 0, %s48
    %s66 = sphi 0, %s66
    %s68 = sphi 0, %s66
    %s69 = sphi 0, %s68
    %s83 = sphi 0, %s69
    %s87 = sphi 0, %s87
    %s89 = sphi 0, %s87
    %s90 = sphi 0, %s89
    %s104 = sphi 0, %s90
    %s108 = sphi 0, %s108
    %s110 = sphi 0, %s108
    %s111 = sphi 0, %s110
    %s125 = sphi 0, %s111
    %s131 = sphi 0, %s133
    %s134 = sphi 0, %s131
    %s135 = sphi 0, %s134
    %s151 = sphi 0, %s135
  $region4: #{residual_double_conv.1} parent=0 // loop_header_branch
    %14 = sbr.rel (%p12) target = $region8
  $region5: #{residual_double_conv.1} parent=0 // loop_body
    %s16 = ssub.s32 %s11, 1
    %s17 = ssub.s32 %s11, 2
    %s18 = sadd.s32 %s11, 1
    %s19 = ssub.s32 %s11, %s18
    %p20 = scmp.eq.s32.totalorder %s19, 0
    %s22 = sadd.s32 %s21, 1
    %s23 = scalar_select %p20, %s21, %s22
    %p26 = pneg %p20
    %p27 = scmp.eq.s32.totalorder %s11, 1
    %p28 = por %p26, %p27
    %p29 = scmp.ne.s32.totalorder %s21, %s24
    %p30 = scmp.eq.s32.totalorder %s11, 0
    %p31 = por %p29, %p30
    %p32 = scmp.ne.s32.totalorder %s21, %s24
    %p33 = scmp.eq.s32.totalorder %s16, 1
    %p34 = por %p32, %p33
    %p35 = scmp.ne.s32.totalorder %s24, %s25
    %p36 = scmp.eq.s32.totalorder %s16, 0
    %p37 = por %p35, %p36
    %p38 = scmp.ne.s32.totalorder %s24, %s25
    %p39 = scmp.eq.s32.totalorder %s17, 1
    %p40 = por %p38, %p39
    %p42 = scmp.ne.s32.totalorder %s25, %s41
    %p43 = scmp.eq.s32.totalorder %s17, 0
    %p44 = por %p42, %p43
    %s46 = sadd.s32 %s45, 1
    %p49 = scmp.eq.s32.totalorder %s11, 1
    %p50 = scmp.ne.s32.totalorder %s45, %s47
    %p51 = scmp.eq.s32.totalorder %s11, 0
    %p52 = por %p50, %p51
    %p53 = scmp.ne.s32.totalorder %s45, %s47
    %p54 = scmp.eq.s32.totalorder %s16, 1
    %p55 = por %p53, %p54
    %p56 = scmp.ne.s32.totalorder %s47, %s48
    %p57 = scmp.eq.s32.totalorder %s16, 0
    %p58 = por %p56, %p57
    %p59 = scmp.ne.s32.totalorder %s47, %s48
    %p60 = scmp.eq.s32.totalorder %s17, 1
    %p61 = por %p59, %p60
    %p63 = scmp.ne.s32.totalorder %s48, %s62
    %p64 = scmp.eq.s32.totalorder %s17, 0
    %p65 = por %p63, %p64
    %s67 = sadd.s32 %s66, 1
    %p70 = scmp.eq.s32.totalorder %s11, 1
    %p71 = scmp.ne.s32.totalorder %s66, %s68
    %p72 = scmp.eq.s32.totalorder %s11, 0
    %p73 = por %p71, %p72
    %p74 = scmp.ne.s32.totalorder %s66, %s68
    %p75 = scmp.eq.s32.totalorder %s16, 1
    %p76 = por %p74, %p75
    %p77 = scmp.ne.s32.totalorder %s68, %s69
    %p78 = scmp.eq.s32.totalorder %s16, 0
    %p79 = por %p77, %p78
    %p80 = scmp.ne.s32.totalorder %s68, %s69
    %p81 = scmp.eq.s32.totalorder %s17, 1
    %p82 = por %p80, %p81
    %p84 = scmp.ne.s32.totalorder %s69, %s83
    %p85 = scmp.eq.s32.totalorder %s17, 0
    %p86 = por %p84, %p85
    %s88 = sadd.s32 %s87, 1
    %p91 = scmp.eq.s32.totalorder %s11, 1
    %p92 = scmp.ne.s32.totalorder %s87, %s89
    %p93 = scmp.eq.s32.totalorder %s11, 0
    %p94 = por %p92, %p93
    %p95 = scmp.ne.s32.totalorder %s87, %s89
    %p96 = scmp.eq.s32.totalorder %s16, 1
    %p97 = por %p95, %p96
    %p98 = scmp.ne.s32.totalorder %s89, %s90
    %p99 = scmp.eq.s32.totalorder %s16, 0
    %p100 = por %p98, %p99
    %p101 = scmp.ne.s32.totalorder %s89, %s90
    %p102 = scmp.eq.s32.totalorder %s17, 1
    %p103 = por %p101, %p102
    %p105 = scmp.ne.s32.totalorder %s90, %s104
    %p106 = scmp.eq.s32.totalorder %s17, 0
    %p107 = por %p105, %p106
    %s109 = sadd.s32 %s108, 1
    %p112 = scmp.eq.s32.totalorder %s11, 1
    %p113 = scmp.ne.s32.totalorder %s108, %s110
    %p114 = scmp.eq.s32.totalorder %s11, 0
    %p115 = por %p113, %p114
    %p116 = scmp.ne.s32.totalorder %s108, %s110
    %p117 = scmp.eq.s32.totalorder %s16, 1
    %p118 = por %p116, %p117
    %p119 = scmp.ne.s32.totalorder %s110, %s111
    %p120 = scmp.eq.s32.totalorder %s16, 0
    %p121 = por %p119, %p120
    %p122 = scmp.ne.s32.totalorder %s110, %s111
    %p123 = scmp.eq.s32.totalorder %s17, 1
    %p124 = por %p122, %p123
    %p126 = scmp.ne.s32.totalorder %s111, %s125
    %p127 = scmp.eq.s32.totalorder %s17, 0
    %p128 = por %p126, %p127
    %s129 = ssub.s32 %s11, %s18
    %p130 = scmp.eq.s32.totalorder %s129, 0
    %s132 = sadd.s32 %s131, 1
    %s133 = scalar_select %p130, %s131, %s132
    %p136 = pneg %p130
    %p137 = scmp.eq.s32.totalorder %s11, 1
    %p138 = por %p136, %p137
    %p139 = scmp.ne.s32.totalorder %s131, %s134
    %p140 = scmp.eq.s32.totalorder %s11, 0
    %p141 = por %p139, %p140
    %p142 = scmp.ne.s32.totalorder %s131, %s134
    %p143 = scmp.eq.s32.totalorder %s16, 1
    %p144 = por %p142, %p143
    %p145 = scmp.ne.s32.totalorder %s134, %s135
    %p146 = scmp.eq.s32.totalorder %s16, 0
    %p147 = por %p145, %p146
    %p148 = scmp.ne.s32.totalorder %s134, %s135
    %p149 = scmp.eq.s32.totalorder %s17, 1
    %p150 = por %p148, %p149
    %p152 = scmp.ne.s32.totalorder %s135, %s151
    %p153 = scmp.eq.s32.totalorder %s17, 0
    %p154 = por %p152, %p153
    %p155 = scmp.le.s32.totalorder 1, %s11
    %p156 = scmp.lt.s32.totalorder %s11, 3
    %p157 = pnand %p155, %p156
    %p158 = pneg %p157
    // Predicated region
    $region9: #{residual_double_conv.1} parent=5 // pred_check
      _
    $region10: #{residual_double_conv.1} parent=5 // pred_check_branch
      %160 = sbr.rel (%p157) target = $region12
    $region11: #{residual_double_conv.1} parent=5 // pred_region
      %s161 = ssub.s32 %s11, 1
      // Predicated region
      $region13: #{residual_double_conv.1} parent=11 // pred_check
        %p162 = pneg %p58
      $region14: #{residual_double_conv.1} parent=11 // pred_check_branch
        %164 = sbr.rel (%p162) target = $region16
      $region15: #{residual_double_conv.1} parent=11 // pred_region
        _
      $region16: #{residual_double_conv.1} parent=11 // pred_fallthru
        _
      // Predicated region
      $region17: #{residual_double_conv.1} parent=11 // pred_check
        %p165 = pneg %p79
      $region18: #{residual_double_conv.1} parent=11 // pred_check_branch
        %167 = sbr.rel (%p165) target = $region20
      $region19: #{residual_double_conv.1} parent=11 // pred_region
        _
      $region20: #{residual_double_conv.1} parent=11 // pred_fallthru
        _
      // Predicated region
      $region21: #{residual_double_conv.1} parent=11 // pred_check
        %p168 = pneg %p100
      $region22: #{residual_double_conv.1} parent=11 // pred_check_branch
        %170 = sbr.rel (%p168) target = $region24
      $region23: #{residual_double_conv.1} parent=11 // pred_region
        _
      $region24: #{residual_double_conv.1} parent=11 // pred_fallthru
        _
      // Predicated region
      $region25: #{residual_double_conv.1} parent=11 // pred_check
        %p171 = pneg %p121
      $region26: #{residual_double_conv.1} parent=11 // pred_check_branch
        %173 = sbr.rel (%p171) target = $region28
      $region27: #{residual_double_conv.1} parent=11 // pred_region
        _
      $region28: #{residual_double_conv.1} parent=11 // pred_fallthru
        _
    $region12: #{residual_double_conv.1} parent=5 // pred_fallthru
      _
    %p174 = scmp.lt.s32.totalorder %s11, 2
    // Predicated region
    $region29: #{residual_double_conv.1} parent=5 // pred_check
      %p175 = pneg %p174
    $region30: #{residual_double_conv.1} parent=5 // pred_check_branch
      %177 = sbr.rel (%p175) target = $region32
    $region31: #{residual_double_conv.1} parent=5 // pred_region
      // Predicated region
      $region33: #{residual_double_conv.1} parent=31 // pred_check
        %p178 = pneg %p31
      $region34: #{residual_double_conv.1} parent=31 // pred_check_branch
        %180 = sbr.rel (%p178) target = $region36
      $region35: #{residual_double_conv.1} parent=31 // pred_region
        %p181 = scmp.lt.s32.totalorder %s11, 1
        %s182 = scalar_select %p181, %s11, 1
        %s183 = smul.addr %s182, 2
        %s184 = smul.addr %s183, 4
        %s185 = scalar_lea.vmem %s0, %s184
      $region36: #{residual_double_conv.1} parent=31 // pred_fallthru
        _
    $region32: #{residual_double_conv.1} parent=5 // pred_fallthru
      _
    %p186 = scmp.le.s32.totalorder 1, %s11
    %p187 = scmp.lt.s32.totalorder %s11, 3
    %p188 = pnand %p186, %p187
    %p189 = pneg %p188
    // Predicated region
    $region37: #{residual_double_conv.1} parent=5 // pred_check
      _
    $region38: #{residual_double_conv.1} parent=5 // pred_check_branch
      %191 = sbr.rel (%p188) target = $region40
    $region39: #{residual_double_conv.1} parent=5 // pred_region
      %s192 = ssub.s32 %s11, 1
      %p193 = scmp.lt.s32.totalorder %s16, 1
      %s194 = scalar_select %p193, %s16, 1
      %s195 = smul.addr %s194, 2
      %s196 = smul.addr %s195, 4
      %s197 = scalar_lea.vmem %s0, %s196
      %p198 = pneg %p37
      %p199 = pneg %p34
      %p200 = pneg %p58
      %p201 = pneg %p55
      %p202 = pneg %p79
      %p203 = pneg %p76
      %p204 = pneg %p100
      %p205 = pneg %p97
      %p206 = pneg %p121
      %p207 = pneg %p118
      %p208 = pneg %p147
      %p209 = pneg %p144
      %p210 = scmp.lt.s32.totalorder %s16, 1
      %s211 = scalar_select %p210, %s16, 1
      %s212 = smul.addr %s211, 8
      %s213 = smul.addr %s212, 8
      %s214 = scalar_lea.vmem %s5, %s213
      %p215 = scmp.lt.s32.totalorder %s16, 1
      %s216 = scalar_select %p215, %s16, 1
      %s217 = smul.addr %s216, 2
      %s218 = smul.addr %s217, 4
      %s219 = scalar_lea.vmem %s0, %s218
      %p220 = scmp.lt.s32.totalorder %s16, 1
      %s221 = scalar_select %p220, %s16, 1
      %s222 = smul.addr %s221, 8
      %s223 = smul.addr %s222, 8
      %s224 = scalar_lea.vmem %s5, %s223
      %v226 = vld [vmem:[%s219] sm:$0xff]
      %v228 = vcombine.high %v226, %v226
      %230 = vxpose.xlu0.b32.start [1/16] %v226, 128
      %231 = vxpose.xlu0.b32.cont [2/16] 0.0, 128
      %232 = vxpose.xlu0.b32.cont [3/16] 0.0, 128
      %233 = vxpose.xlu0.b32.cont [4/16] 0.0, 128
      %234 = vxpose.xlu0.b32.cont [5/16] 0.0, 128
      %235 = vxpose.xlu0.b32.cont [6/16] 0.0, 128
      %236 = vxpose.xlu0.b32.cont [7/16] 0.0, 128
      %237 = vxpose.xlu0.b32.cont [8/16] 0.0, 128
      %238 = vxpose.xlu0.b32.cont [9/16] 0.0, 128
      %239 = vxpose.xlu0.b32.cont [10/16] 0.0, 128
      %240 = vxpose.xlu0.b32.cont [11/16] 0.0, 128
      %241 = vxpose.xlu0.b32.cont [12/16] 0.0, 128
      %242 = vxpose.xlu0.b32.cont [13/16] 0.0, 128
      %243 = vxpose.xlu0.b32.cont [14/16] 0.0, 128
      %244 = vxpose.xlu0.b32.cont [15/16] 0.0, 128
      %245 = vxpose.xlu0.b32.end [16/16] 0.0, 128
      %v246 = vpop.trf.xlu0
      %v247 = vpop.trf.xlu0
      %v248 = vpop.trf.xlu0
      %v249 = vpop.trf.xlu0
      %v250 = vpop.trf.xlu0
      %v251 = vpop.trf.xlu0
      %v252 = vpop.trf.xlu0
      %v253 = vpop.trf.xlu0
      %v254 = vpop.trf.xlu0
      %v255 = vpop.trf.xlu0
      %v256 = vpop.trf.xlu0
      %v257 = vpop.trf.xlu0
      %v258 = vpop.trf.xlu0
      %v259 = vpop.trf.xlu0
      %v260 = vpop.trf.xlu0
      %v261 = vpop.trf.xlu0
      %262 = vxpose.xlu0.b32.start [1/16] %v228, 128
      %263 = vxpose.xlu0.b32.cont [2/16] 0.0, 128
      %264 = vxpose.xlu0.b32.cont [3/16] 0.0, 128
      %265 = vxpose.xlu0.b32.cont [4/16] 0.0, 128
      %266 = vxpose.xlu0.b32.cont [5/16] 0.0, 128
      %267 = vxpose.xlu0.b32.cont [6/16] 0.0, 128
      %268 = vxpose.xlu0.b32.cont [7/16] 0.0, 128
      %269 = vxpose.xlu0.b32.cont [8/16] 0.0, 128
      %270 = vxpose.xlu0.b32.cont [9/16] 0.0, 128
      %271 = vxpose.xlu0.b32.cont [10/16] 0.0, 128
      %272 = vxpose.xlu0.b32.cont [11/16] 0.0, 128
      %273 = vxpose.xlu0.b32.cont [12/16] 0.0, 128
      %274 = vxpose.xlu0.b32.cont [13/16] 0.0, 128
      %275 = vxpose.xlu0.b32.cont [14/16] 0.0, 128
      %276 = vxpose.xlu0.b32.cont [15/16] 0.0, 128
      %277 = vxpose.xlu0.b32.end [16/16] 0.0, 128
      %v278 = vpop.trf.xlu0
      %v279 = vpop.trf.xlu0
      %v280 = vpop.trf.xlu0
      %v281 = vpop.trf.xlu0
      %v282 = vpop.trf.xlu0
      %v283 = vpop.trf.xlu0
      %v284 = vpop.trf.xlu0
      %v285 = vpop.trf.xlu0
      %v286 = vpop.trf.xlu0
      %v287 = vpop.trf.xlu0
      %v288 = vpop.trf.xlu0
      %v289 = vpop.trf.xlu0
      %v290 = vpop.trf.xlu0
      %v291 = vpop.trf.xlu0
      %v292 = vpop.trf.xlu0
      %v293 = vpop.trf.xlu0
      %v294 = vlaneseq
      %v295 = vshrl.u32 %v294, 7
      %v296 = vadd.s32 %v295, 8
      %v297 = vadd.s32 %v295, 16
      %v298 = vadd.s32 %v295, 24
      %v299 = vadd.s32 %v295, 32
      %v300 = vadd.s32 %v295, 40
      %v301 = vadd.s32 %v295, 48
      %v302 = vadd.s32 %v295, 56
      %v303 = vadd.s32 %v295, 64
      %v304 = vadd.s32 %v295, 72
      %v305 = vadd.s32 %v295, 80
      %v306 = vadd.s32 %v295, 88
      %v307 = vadd.s32 %v295, 96
      %v308 = vadd.s32 %v295, 104
      %v309 = vadd.s32 %v295, 112
      %v310 = vadd.s32 %v295, 120
      %v311 = vadd.s32 %v295, 128
      %v312 = vadd.s32 %v295, 136
      %v313 = vadd.s32 %v295, 144
      %v314 = vadd.s32 %v295, 152
      %v315 = vadd.s32 %v295, 160
      %v316 = vadd.s32 %v295, 168
      %v317 = vadd.s32 %v295, 176
      %v318 = vadd.s32 %v295, 184
      %v319 = vadd.s32 %v295, 192
      %v320 = vadd.s32 %v295, 200
      %v321 = vadd.s32 %v295, 208
      %v322 = vadd.s32 %v295, 216
      %v323 = vadd.s32 %v295, 224
      %v324 = vadd.s32 %v295, 232
      %v325 = vadd.s32 %v295, 240
      %v326 = vadd.s32 %v295, 248
      %vm327 = vcmp.lt.s32.totalorder %v295, 0
      %v328 = vsub.s32 0, %v295
      %v329 = vsel %vm327, %v328, %v295
      %v330 = vshrl.u32 %v329, 4
      %v331 = vand.u32 %v329, 15
      %v332 = vsub.s32 0, %v331
      %v333 = vsel %vm327, %v332, %v331
      %vm334 = vcmp.lt.s32.totalorder %v296, 0
      %v335 = vsub.s32 0, %v296
      %v336 = vsel %vm334, %v335, %v296
      %v337 = vshrl.u32 %v336, 4
      %v338 = vand.u32 %v336, 15
      %v339 = vsub.s32 0, %v338
      %v340 = vsel %vm334, %v339, %v338
      %vm341 = vcmp.lt.s32.totalorder %v297, 0
      %v342 = vsub.s32 0, %v297
      %v343 = vsel %vm341, %v342, %v297
      %v344 = vshrl.u32 %v343, 4
      %v345 = vand.u32 %v343, 15
      %v346 = vsub.s32 0, %v345
      %v347 = vsel %vm341, %v346, %v345
      %vm348 = vcmp.lt.s32.totalorder %v298, 0
      %v349 = vsub.s32 0, %v298
      %v350 = vsel %vm348, %v349, %v298
      %v351 = vshrl.u32 %v350, 4
      %v352 = vand.u32 %v350, 15
      %v353 = vsub.s32 0, %v352
      %v354 = vsel %vm348, %v353, %v352
      %vm355 = vcmp.lt.s32.totalorder %v299, 0
      %v356 = vsub.s32 0, %v299
      %v357 = vsel %vm355, %v356, %v299
      %v358 = vshrl.u32 %v357, 4
      %v359 = vand.u32 %v357, 15
      %v360 = vsub.s32 0, %v359
      %v361 = vsel %vm355, %v360, %v359
      %vm362 = vcmp.lt.s32.totalorder %v300, 0
      %v363 = vsub.s32 0, %v300
      %v364 = vsel %vm362, %v363, %v300
      %v365 = vshrl.u32 %v364, 4
      %v366 = vand.u32 %v364, 15
      %v367 = vsub.s32 0, %v366
      %v368 = vsel %vm362, %v367, %v366
      %vm369 = vcmp.lt.s32.totalorder %v301, 0
      %v370 = vsub.s32 0, %v301
      %v371 = vsel %vm369, %v370, %v301
      %v372 = vshrl.u32 %v371, 4
      %v373 = vand.u32 %v371, 15
      %v374 = vsub.s32 0, %v373
      %v375 = vsel %vm369, %v374, %v373
      %vm376 = vcmp.lt.s32.totalorder %v302, 0
      %v377 = vsub.s32 0, %v302
      %v378 = vsel %vm376, %v377, %v302
      %v379 = vshrl.u32 %v378, 4
      %v380 = vand.u32 %v378, 15
      %v381 = vsub.s32 0, %v380
      %v382 = vsel %vm376, %v381, %v380
      %vm383 = vcmp.lt.s32.totalorder %v303, 0
      %v384 = vsub.s32 0, %v303
      %v385 = vsel %vm383, %v384, %v303
      %v386 = vshrl.u32 %v385, 4
      %v387 = vand.u32 %v385, 15
      %v388 = vsub.s32 0, %v387
      %v389 = vsel %vm383, %v388, %v387
      %vm390 = vcmp.lt.s32.totalorder %v304, 0
      %v391 = vsub.s32 0, %v304
      %v392 = vsel %vm390, %v391, %v304
      %v393 = vshrl.u32 %v392, 4
      %v394 = vand.u32 %v392, 15
      %v395 = vsub.s32 0, %v394
      %v396 = vsel %vm390, %v395, %v394
      %vm397 = vcmp.lt.s32.totalorder %v305, 0
      %v398 = vsub.s32 0, %v305
      %v399 = vsel %vm397, %v398, %v305
      %v400 = vshrl.u32 %v399, 4
      %v401 = vand.u32 %v399, 15
      %v402 = vsub.s32 0, %v401
      %v403 = vsel %vm397, %v402, %v401
      %vm404 = vcmp.lt.s32.totalorder %v306, 0
      %v405 = vsub.s32 0, %v306
      %v406 = vsel %vm404, %v405, %v306
      %v407 = vshrl.u32 %v406, 4
      %v408 = vand.u32 %v406, 15
      %v409 = vsub.s32 0, %v408
      %v410 = vsel %vm404, %v409, %v408
      %vm411 = vcmp.lt.s32.totalorder %v307, 0
      %v412 = vsub.s32 0, %v307
      %v413 = vsel %vm411, %v412, %v307
      %v414 = vshrl.u32 %v413, 4
      %v415 = vand.u32 %v413, 15
      %v416 = vsub.s32 0, %v415
      %v417 = vsel %vm411, %v416, %v415
      %vm418 = vcmp.lt.s32.totalorder %v308, 0
      %v419 = vsub.s32 0, %v308
      %v420 = vsel %vm418, %v419, %v308
      %v421 = vshrl.u32 %v420, 4
      %v422 = vand.u32 %v420, 15
      %v423 = vsub.s32 0, %v422
      %v424 = vsel %vm418, %v423, %v422
      %vm425 = vcmp.lt.s32.totalorder %v309, 0
      %v426 = vsub.s32 0, %v309
      %v427 = vsel %vm425, %v426, %v309
      %v428 = vshrl.u32 %v427, 4
      %v429 = vand.u32 %v427, 15
      %v430 = vsub.s32 0, %v429
      %v431 = vsel %vm425, %v430, %v429
      %vm432 = vcmp.lt.s32.totalorder %v310, 0
      %v433 = vsub.s32 0, %v310
      %v434 = vsel %vm432, %v433, %v310
      %v435 = vshrl.u32 %v434, 4
      %v436 = vand.u32 %v434, 15
      %v437 = vsub.s32 0, %v436
      %v438 = vsel %vm432, %v437, %v436
      %vm439 = vcmp.lt.s32.totalorder %v311, 0
      %v440 = vsub.s32 0, %v311
      %v441 = vsel %vm439, %v440, %v311
      %v442 = vshrl.u32 %v441, 4
      %v443 = vand.u32 %v441, 15
      %v444 = vsub.s32 0, %v443
      %v445 = vsel %vm439, %v444, %v443
      %vm446 = vcmp.lt.s32.totalorder %v312, 0
      %v447 = vsub.s32 0, %v312
      %v448 = vsel %vm446, %v447, %v312
      %v449 = vshrl.u32 %v448, 4
      %v450 = vand.u32 %v448, 15
      %v451 = vsub.s32 0, %v450
      %v452 = vsel %vm446, %v451, %v450
      %vm453 = vcmp.lt.s32.totalorder %v313, 0
      %v454 = vsub.s32 0, %v313
      %v455 = vsel %vm453, %v454, %v313
      %v456 = vshrl.u32 %v455, 4
      %v457 = vand.u32 %v455, 15
      %v458 = vsub.s32 0, %v457
      %v459 = vsel %vm453, %v458, %v457
      %vm460 = vcmp.lt.s32.totalorder %v314, 0
      %v461 = vsub.s32 0, %v314
      %v462 = vsel %vm460, %v461, %v314
      %v463 = vshrl.u32 %v462, 4
      %v464 = vand.u32 %v462, 15
      %v465 = vsub.s32 0, %v464
      %v466 = vsel %vm460, %v465, %v464
      %vm467 = vcmp.lt.s32.totalorder %v315, 0
      %v468 = vsub.s32 0, %v315
      %v469 = vsel %vm467, %v468, %v315
      %v470 = vshrl.u32 %v469, 4
      %v471 = vand.u32 %v469, 15
      %v472 = vsub.s32 0, %v471
      %v473 = vsel %vm467, %v472, %v471
      %vm474 = vcmp.lt.s32.totalorder %v316, 0
      %v475 = vsub.s32 0, %v316
      %v476 = vsel %vm474, %v475, %v316
      %v477 = vshrl.u32 %v476, 4
      %v478 = vand.u32 %v476, 15
      %v479 = vsub.s32 0, %v478
      %v480 = vsel %vm474, %v479, %v478
      %vm481 = vcmp.lt.s32.totalorder %v317, 0
      %v482 = vsub.s32 0, %v317
      %v483 = vsel %vm481, %v482, %v317
      %v484 = vshrl.u32 %v483, 4
      %v485 = vand.u32 %v483, 15
      %v486 = vsub.s32 0, %v485
      %v487 = vsel %vm481, %v486, %v485
      %vm488 = vcmp.lt.s32.totalorder %v318, 0
      %v489 = vsub.s32 0, %v318
      %v490 = vsel %vm488, %v489, %v318
      %v491 = vshrl.u32 %v490, 4
      %v492 = vand.u32 %v490, 15
      %v493 = vsub.s32 0, %v492
      %v494 = vsel %vm488, %v493, %v492
      %vm495 = vcmp.lt.s32.totalorder %v319, 0
      %v496 = vsub.s32 0, %v319
      %v497 = vsel %vm495, %v496, %v319
      %v498 = vshrl.u32 %v497, 4
      %v499 = vand.u32 %v497, 15
      %v500 = vsub.s32 0, %v499
      %v501 = vsel %vm495, %v500, %v499
      %vm502 = vcmp.lt.s32.totalorder %v320, 0
      %v503 = vsub.s32 0, %v320
      %v504 = vsel %vm502, %v503, %v320
      %v505 = vshrl.u32 %v504, 4
      %v506 = vand.u32 %v504, 15
      %v507 = vsub.s32 0, %v506
      %v508 = vsel %vm502, %v507, %v506
      %vm509 = vcmp.lt.s32.totalorder %v321, 0
      %v510 = vsub.s32 0, %v321
      %v511 = vsel %vm509, %v510, %v321
      %v512 = vshrl.u32 %v511, 4
      %v513 = vand.u32 %v511, 15
      %v514 = vsub.s32 0, %v513
      %v515 = vsel %vm509, %v514, %v513
      %vm516 = vcmp.lt.s32.totalorder %v322, 0
      %v517 = vsub.s32 0, %v322
      %v518 = vsel %vm516, %v517, %v322
      %v519 = vshrl.u32 %v518, 4
      %v520 = vand.u32 %v518, 15
      %v521 = vsub.s32 0, %v520
      %v522 = vsel %vm516, %v521, %v520
      %vm523 = vcmp.lt.s32.totalorder %v323, 0
      %v524 = vsub.s32 0, %v323
      %v525 = vsel %vm523, %v524, %v323
      %v526 = vshrl.u32 %v525, 4
      %v527 = vand.u32 %v525, 15
      %v528 = vsub.s32 0, %v527
      %v529 = vsel %vm523, %v528, %v527
      %vm530 = vcmp.lt.s32.totalorder %v324, 0
      %v531 = vsub.s32 0, %v324
      %v532 = vsel %vm530, %v531, %v324
      %v533 = vshrl.u32 %v532, 4
      %v534 = vand.u32 %v532, 15
      %v535 = vsub.s32 0, %v534
      %v536 = vsel %vm530, %v535, %v534
      %vm537 = vcmp.lt.s32.totalorder %v325, 0
      %v538 = vsub.s32 0, %v325
      %v539 = vsel %vm537, %v538, %v325
      %v540 = vshrl.u32 %v539, 4
      %v541 = vand.u32 %v539, 15
      %v542 = vsub.s32 0, %v541
      %v543 = vsel %vm537, %v542, %v541
      %vm544 = vcmp.lt.s32.totalorder %v326, 0
      %v545 = vsub.s32 0, %v326
      %v546 = vsel %vm544, %v545, %v326
      %v547 = vshrl.u32 %v546, 4
      %v548 = vand.u32 %v546, 15
      %v549 = vsub.s32 0, %v548
      %v550 = vsel %vm544, %v549, %v548
      %vm551 = vcmp.ne.s32.totalorder %v333, 0
      %vm552 = vcmp.ne.s32.totalorder %v340, 0
      %vm553 = vcmp.ne.s32.totalorder %v347, 0
      %vm554 = vcmp.ne.s32.totalorder %v354, 0
      %vm555 = vcmp.ne.s32.totalorder %v361, 0
      %vm556 = vcmp.ne.s32.totalorder %v368, 0
      %vm557 = vcmp.ne.s32.totalorder %v375, 0
      %vm558 = vcmp.ne.s32.totalorder %v382, 0
      %vm559 = vcmp.ne.s32.totalorder %v389, 0
      %vm560 = vcmp.ne.s32.totalorder %v396, 0
      %vm561 = vcmp.ne.s32.totalorder %v403, 0
      %vm562 = vcmp.ne.s32.totalorder %v410, 0
      %vm563 = vcmp.ne.s32.totalorder %v417, 0
      %vm564 = vcmp.ne.s32.totalorder %v424, 0
      %vm565 = vcmp.ne.s32.totalorder %v431, 0
      %vm566 = vcmp.ne.s32.totalorder %v438, 0
      %vm567 = vcmp.ne.s32.totalorder %v445, 0
      %vm568 = vcmp.ne.s32.totalorder %v452, 0
      %vm569 = vcmp.ne.s32.totalorder %v459, 0
      %vm570 = vcmp.ne.s32.totalorder %v466, 0
      %vm571 = vcmp.ne.s32.totalorder %v473, 0
      %vm572 = vcmp.ne.s32.totalorder %v480, 0
      %vm573 = vcmp.ne.s32.totalorder %v487, 0
      %vm574 = vcmp.ne.s32.totalorder %v494, 0
      %vm575 = vcmp.ne.s32.totalorder %v501, 0
      %vm576 = vcmp.ne.s32.totalorder %v508, 0
      %vm577 = vcmp.ne.s32.totalorder %v515, 0
      %vm578 = vcmp.ne.s32.totalorder %v522, 0
      %vm579 = vcmp.ne.s32.totalorder %v529, 0
      %vm580 = vcmp.ne.s32.totalorder %v536, 0
      %vm581 = vcmp.ne.s32.totalorder %v543, 0
      %vm582 = vcmp.ne.s32.totalorder %v550, 0
      %vm583 = vcmp.lt.s32.totalorder %v333, 0
      %vm584 = vcmp.lt.s32.totalorder %v340, 0
      %vm585 = vcmp.lt.s32.totalorder %v347, 0
      %vm586 = vcmp.lt.s32.totalorder %v354, 0
      %vm587 = vcmp.lt.s32.totalorder %v361, 0
      %vm588 = vcmp.lt.s32.totalorder %v368, 0
      %vm589 = vcmp.lt.s32.totalorder %v375, 0
      %vm590 = vcmp.lt.s32.totalorder %v382, 0
      %vm591 = vcmp.lt.s32.totalorder %v389, 0
      %vm592 = vcmp.lt.s32.totalorder %v396, 0
      %vm593 = vcmp.lt.s32.totalorder %v403, 0
      %vm594 = vcmp.lt.s32.totalorder %v410, 0
      %vm595 = vcmp.lt.s32.totalorder %v417, 0
      %vm596 = vcmp.lt.s32.totalorder %v424, 0
      %vm597 = vcmp.lt.s32.totalorder %v431, 0
      %vm598 = vcmp.lt.s32.totalorder %v438, 0
      %vm599 = vcmp.lt.s32.totalorder %v445, 0
      %vm600 = vcmp.lt.s32.totalorder %v452, 0
      %vm601 = vcmp.lt.s32.totalorder %v459, 0
      %vm602 = vcmp.lt.s32.totalorder %v466, 0
      %vm603 = vcmp.lt.s32.totalorder %v473, 0
      %vm604 = vcmp.lt.s32.totalorder %v480, 0
      %vm605 = vcmp.lt.s32.totalorder %v487, 0
      %vm606 = vcmp.lt.s32.totalorder %v494, 0
      %vm607 = vcmp.lt.s32.totalorder %v501, 0
      %vm608 = vcmp.lt.s32.totalorder %v508, 0
      %vm609 = vcmp.lt.s32.totalorder %v515, 0
      %vm610 = vcmp.lt.s32.totalorder %v522, 0
      %vm611 = vcmp.lt.s32.totalorder %v529, 0
      %vm612 = vcmp.lt.s32.totalorder %v536, 0
      %vm613 = vcmp.lt.s32.totalorder %v543, 0
      %vm614 = vcmp.lt.s32.totalorder %v550, 0
      %vm615 = vmand %vm583, %vm551
      %vm616 = vmand %vm584, %vm552
      %vm617 = vmand %vm585, %vm553
      %vm618 = vmand %vm586, %vm554
      %vm619 = vmand %vm587, %vm555
      %vm620 = vmand %vm588, %vm556
      %vm621 = vmand %vm589, %vm557
      %vm622 = vmand %vm590, %vm558
      %vm623 = vmand %vm591, %vm559
      %vm624 = vmand %vm592, %vm560
      %vm625 = vmand %vm593, %vm561
      %vm626 = vmand %vm594, %vm562
      %vm627 = vmand %vm595, %vm563
      %vm628 = vmand %vm596, %vm564
      %vm629 = vmand %vm597, %vm565
      %vm630 = vmand %vm598, %vm566
      %vm631 = vmand %vm599, %vm567
      %vm632 = vmand %vm600, %vm568
      %vm633 = vmand %vm601, %vm569
      %vm634 = vmand %vm602, %vm570
      %vm635 = vmand %vm603, %vm571
      %vm636 = vmand %vm604, %vm572
      %vm637 = vmand %vm605, %vm573
      %vm638 = vmand %vm606, %vm574
      %vm639 = vmand %vm607, %vm575
      %vm640 = vmand %vm608, %vm576
      %vm641 = vmand %vm609, %vm577
      %vm642 = vmand %vm610, %vm578
      %vm643 = vmand %vm611, %vm579
      %vm644 = vmand %vm612, %vm580
      %vm645 = vmand %vm613, %vm581
      %vm646 = vmand %vm614, %vm582
      %v647 = vadd.s32 %v333, 16
      %v648 = vadd.s32 %v340, 16
      %v649 = vadd.s32 %v347, 16
      %v650 = vadd.s32 %v354, 16
      %v651 = vadd.s32 %v361, 16
      %v652 = vadd.s32 %v368, 16
      %v653 = vadd.s32 %v375, 16
      %v654 = vadd.s32 %v382, 16
      %v655 = vadd.s32 %v389, 16
      %v656 = vadd.s32 %v396, 16
      %v657 = vadd.s32 %v403, 16
      %v658 = vadd.s32 %v410, 16
      %v659 = vadd.s32 %v417, 16
      %v660 = vadd.s32 %v424, 16
      %v661 = vadd.s32 %v431, 16
      %v662 = vadd.s32 %v438, 16
      %v663 = vadd.s32 %v445, 16
      %v664 = vadd.s32 %v452, 16
      %v665 = vadd.s32 %v459, 16
      %v666 = vadd.s32 %v466, 16
      %v667 = vadd.s32 %v473, 16
      %v668 = vadd.s32 %v480, 16
      %v669 = vadd.s32 %v487, 16
      %v670 = vadd.s32 %v494, 16
      %v671 = vadd.s32 %v501, 16
      %v672 = vadd.s32 %v508, 16
      %v673 = vadd.s32 %v515, 16
      %v674 = vadd.s32 %v522, 16
      %v675 = vadd.s32 %v529, 16
      %v676 = vadd.s32 %v536, 16
      %v677 = vadd.s32 %v543, 16
      %v678 = vadd.s32 %v550, 16
      %v679 = vsel %vm615, %v647, %v333
      %v680 = vsel %vm616, %v648, %v340
      %v681 = vsel %vm617, %v649, %v347
      %v682 = vsel %vm618, %v650, %v354
      %v683 = vsel %vm619, %v651, %v361
      %v684 = vsel %vm620, %v652, %v368
      %v685 = vsel %vm621, %v653, %v375
      %v686 = vsel %vm622, %v654, %v382
      %v687 = vsel %vm623, %v655, %v389
      %v688 = vsel %vm624, %v656, %v396
      %v689 = vsel %vm625, %v657, %v403
      %v690 = vsel %vm626, %v658, %v410
      %v691 = vsel %vm627, %v659, %v417
      %v692 = vsel %vm628, %v660, %v424
      %v693 = vsel %vm629, %v661, %v431
      %v694 = vsel %vm630, %v662, %v438
      %v695 = vsel %vm631, %v663, %v445
      %v696 = vsel %vm632, %v664, %v452
      %v697 = vsel %vm633, %v665, %v459
      %v698 = vsel %vm634, %v666, %v466
      %v699 = vsel %vm635, %v667, %v473
      %v700 = vsel %vm636, %v668, %v480
      %v701 = vsel %vm637, %v669, %v487
      %v702 = vsel %vm638, %v670, %v494
      %v703 = vsel %vm639, %v671, %v501
      %v704 = vsel %vm640, %v672, %v508
      %v705 = vsel %vm641, %v673, %v515
      %v706 = vsel %vm642, %v674, %v522
      %v707 = vsel %vm643, %v675, %v529
      %v708 = vsel %vm644, %v676, %v536
      %v709 = vsel %vm645, %v677, %v543
      %v710 = vsel %vm646, %v678, %v550
      %vm711 = vcmp.ne.s32.totalorder %v679, 0
      %vm712 = vcmp.ne.s32.totalorder %v680, 0
      %vm713 = vcmp.ne.s32.totalorder %v681, 0
      %vm714 = vcmp.ne.s32.totalorder %v682, 0
      %vm715 = vcmp.ne.s32.totalorder %v683, 0
      %vm716 = vcmp.ne.s32.totalorder %v684, 0
      %vm717 = vcmp.ne.s32.totalorder %v685, 0
      %vm718 = vcmp.ne.s32.totalorder %v686, 0
      %vm719 = vcmp.ne.s32.totalorder %v687, 0
      %vm720 = vcmp.ne.s32.totalorder %v688, 0
      %vm721 = vcmp.ne.s32.totalorder %v689, 0
      %vm722 = vcmp.ne.s32.totalorder %v690, 0
      %vm723 = vcmp.ne.s32.totalorder %v691, 0
      %vm724 = vcmp.ne.s32.totalorder %v692, 0
      %vm725 = vcmp.ne.s32.totalorder %v693, 0
      %vm726 = vcmp.ne.s32.totalorder %v694, 0
      %vm727 = vcmp.ne.s32.totalorder %v695, 0
      %vm728 = vcmp.ne.s32.totalorder %v696, 0
      %vm729 = vcmp.ne.s32.totalorder %v697, 0
      %vm730 = vcmp.ne.s32.totalorder %v698, 0
      %vm731 = vcmp.ne.s32.totalorder %v699, 0
      %vm732 = vcmp.ne.s32.totalorder %v700, 0
      %vm733 = vcmp.ne.s32.totalorder %v701, 0
      %vm734 = vcmp.ne.s32.totalorder %v702, 0
      %vm735 = vcmp.ne.s32.totalorder %v703, 0
      %vm736 = vcmp.ne.s32.totalorder %v704, 0
      %vm737 = vcmp.ne.s32.totalorder %v705, 0
      %vm738 = vcmp.ne.s32.totalorder %v706, 0
      %vm739 = vcmp.ne.s32.totalorder %v707, 0
      %vm740 = vcmp.ne.s32.totalorder %v708, 0
      %vm741 = vcmp.ne.s32.totalorder %v709, 0
      %vm742 = vcmp.ne.s32.totalorder %v710, 0
      %vm743 = vcmp.ne.s32.totalorder %v679, 15
      %vm744 = vcmp.ne.s32.totalorder %v680, 15
      %vm745 = vcmp.ne.s32.totalorder %v681, 15
      %vm746 = vcmp.ne.s32.totalorder %v682, 15
      %vm747 = vcmp.ne.s32.totalorder %v683, 15
      %vm748 = vcmp.ne.s32.totalorder %v684, 15
      %vm749 = vcmp.ne.s32.totalorder %v685, 15
      %vm750 = vcmp.ne.s32.totalorder %v686, 15
      %vm751 = vcmp.ne.s32.totalorder %v687, 15
      %vm752 = vcmp.ne.s32.totalorder %v688, 15
      %vm753 = vcmp.ne.s32.totalorder %v689, 15
      %vm754 = vcmp.ne.s32.totalorder %v690, 15
      %vm755 = vcmp.ne.s32.totalorder %v691, 15
      %vm756 = vcmp.ne.s32.totalorder %v692, 15
      %vm757 = vcmp.ne.s32.totalorder %v693, 15
      %vm758 = vcmp.ne.s32.totalorder %v694, 15
      %vm759 = vcmp.ne.s32.totalorder %v695, 15
      %vm760 = vcmp.ne.s32.totalorder %v696, 15
      %vm761 = vcmp.ne.s32.totalorder %v697, 15
      %vm762 = vcmp.ne.s32.totalorder %v698, 15
      %vm763 = vcmp.ne.s32.totalorder %v699, 15
      %vm764 = vcmp.ne.s32.totalorder %v700, 15
      %vm765 = vcmp.ne.s32.totalorder %v701, 15
      %vm766 = vcmp.ne.s32.totalorder %v702, 15
      %vm767 = vcmp.ne.s32.totalorder %v703, 15
      %vm768 = vcmp.ne.s32.totalorder %v704, 15
      %vm769 = vcmp.ne.s32.totalorder %v705, 15
      %vm770 = vcmp.ne.s32.totalorder %v706, 15
      %vm771 = vcmp.ne.s32.totalorder %v707, 15
      %vm772 = vcmp.ne.s32.totalorder %v708, 15
      %vm773 = vcmp.ne.s32.totalorder %v709, 15
      %vm774 = vcmp.ne.s32.totalorder %v710, 15
      %vm775 = vcmask 31744
      %776 = vst.msk [vmem:[#allocation2] sm:$0xff] %vm775, 0
      %vm777 = vcmask 27648
      %778 = vst.msk [vmem:[#allocation2 + $0x8] sm:$0xf] %vm777, 0
      %779 = vst.msk [vmem:[#allocation2 + $0x98] sm:$0xff] %vm775, 0
      %780 = vst.msk [vmem:[#allocation2 + $0xa0] sm:$0xf] %vm777, 0
      %781 = vst.msk [vmem:[#allocation2 + $0x130] sm:$0xff] %vm775, 0
      %782 = vst.msk [vmem:[#allocation2 + $0x138] sm:$0xf] %vm777, 0
      %vm783 = vcmask 31748
      %784 = vst.msk [vmem:[#allocation2 + $0x88] sm:$0xf0] %vm783, 0
      %785 = vst.msk [vmem:[#allocation2 + $0x90] sm:$0xff] %vm775, 0
      %786 = vst.msk [vmem:[#allocation2 + $0x120] sm:$0xf0] %vm783, 0
      %787 = vst.msk [vmem:[#allocation2 + $0x128] sm:$0xff] %vm775, 0
      %788 = vst.msk [vmem:[#allocation2 + $0x1b8] sm:$0xf0] %vm783, 0
      %789 = vst.msk [vmem:[#allocation2 + $0x1c0] sm:$0xff] %vm775, 0
      %v790 = vpack.c.bf16 %v247, %v246
      %v791 = vpack.c.bf16 %v249, %v248
      %v792 = vpack.c.bf16 %v251, %v250
      %v793 = vpack.c.bf16 %v253, %v252
      %v794 = vpack.c.bf16 %v255, %v254
      %v795 = vpack.c.bf16 %v257, %v256
      %v796 = vpack.c.bf16 %v259, %v258
      %v797 = vpack.c.bf16 %v261, %v260
      %v798 = vpack.c.bf16 %v279, %v278
      %v799 = vpack.c.bf16 %v281, %v280
      %v800 = vpack.c.bf16 %v283, %v282
      %v801 = vpack.c.bf16 %v285, %v284
      %v802 = vpack.c.bf16 %v287, %v286
      %v803 = vpack.c.bf16 %v289, %v288
      %v804 = vpack.c.bf16 %v291, %v290
      %v805 = vpack.c.bf16 %v293, %v292
      %vm822 = vcmask 1043456
      %v823 = vrot.slane %v790, 4
      %v824 = vrot.slane %v791, 4
      %v825 = vsel %vm822, %v823, %v824
      %v826 = vrot.slane %v792, 4
      %v827 = vsel %vm822, %v824, %v826
      %v828 = vrot.slane %v793, 4
      %v829 = vsel %vm822, %v826, %v828
      %v830 = vrot.slane %v794, 4
      %v831 = vsel %vm822, %v828, %v830
      %v832 = vrot.slane %v795, 4
      %v833 = vsel %vm822, %v830, %v832
      %v834 = vrot.slane %v796, 4
      %v835 = vsel %vm822, %v832, %v834
      %v836 = vrot.slane %v797, 4
      %v837 = vsel %vm822, %v834, %v836
      %v838 = vrot.slane %v798, 4
      %v839 = vsel %vm822, %v836, %v838
      %v840 = vrot.slane %v799, 4
      %v841 = vsel %vm822, %v838, %v840
      %v842 = vrot.slane %v800, 4
      %v843 = vsel %vm822, %v840, %v842
      %v844 = vrot.slane %v801, 4
      %v845 = vsel %vm822, %v842, %v844
      %v846 = vrot.slane %v802, 4
      %v847 = vsel %vm822, %v844, %v846
      %v848 = vrot.slane %v803, 4
      %v849 = vsel %vm822, %v846, %v848
      %v850 = vrot.slane %v804, 4
      %v851 = vsel %vm822, %v848, %v850
      %v852 = vrot.slane %v805, 4
      %v853 = vsel %vm822, %v850, %v852
      %871 = vst.msk [vmem:[#allocation2 + $0x8] sm:$0xf0] %vm783, %v823
      %872 = vst.msk [vmem:[#allocation2 + $0x10] sm:$0xff] %vm775, %v825
      %873 = vst.msk [vmem:[#allocation2 + $0x18] sm:$0xff] %vm775, %v827
      %874 = vst.msk [vmem:[#allocation2 + $0x20] sm:$0xff] %vm775, %v829
      %875 = vst.msk [vmem:[#allocation2 + $0x28] sm:$0xff] %vm775, %v831
      %876 = vst.msk [vmem:[#allocation2 + $0x30] sm:$0xff] %vm775, %v833
      %877 = vst.msk [vmem:[#allocation2 + $0x38] sm:$0xff] %vm775, %v835
      %878 = vst.msk [vmem:[#allocation2 + $0x40] sm:$0xff] %vm775, %v837
      %879 = vst.msk [vmem:[#allocation2 + $0x48] sm:$0xff] %vm775, %v839
      %880 = vst.msk [vmem:[#allocation2 + $0x50] sm:$0xff] %vm775, %v841
      %881 = vst.msk [vmem:[#allocation2 + $0x58] sm:$0xff] %vm775, %v843
      %882 = vst.msk [vmem:[#allocation2 + $0x60] sm:$0xff] %vm775, %v845
      %883 = vst.msk [vmem:[#allocation2 + $0x68] sm:$0xff] %vm775, %v847
      %884 = vst.msk [vmem:[#allocation2 + $0x70] sm:$0xff] %vm775, %v849
      %885 = vst.msk [vmem:[#allocation2 + $0x78] sm:$0xff] %vm775, %v851
      %886 = vst.msk [vmem:[#allocation2 + $0x80] sm:$0xff] %vm775, %v853
      %887 = vst.msk [vmem:[#allocation2 + $0x88] sm:$0xf] %vm777, %v852
      %v888 = vsel %vm711, 1, 0
      %v889 = vsel %vm712, 1, 0
      %v890 = vsel %vm713, 1, 0
      %v891 = vsel %vm714, 1, 0
      %v892 = vsel %vm715, 1, 0
      %v893 = vsel %vm716, 1, 0
      %v894 = vsel %vm717, 1, 0
      %v895 = vsel %vm718, 1, 0
      %v896 = vsel %vm719, 1, 0
      %v897 = vsel %vm720, 1, 0
      %v898 = vsel %vm721, 1, 0
      %v899 = vsel %vm722, 1, 0
      %v900 = vsel %vm723, 1, 0
      %v901 = vsel %vm724, 1, 0
      %v902 = vsel %vm725, 1, 0
      %v903 = vsel %vm726, 1, 0
      %v904 = vsel %vm727, 1, 0
      %v905 = vsel %vm728, 1, 0
      %v906 = vsel %vm729, 1, 0
      %v907 = vsel %vm730, 1, 0
      %v908 = vsel %vm731, 1, 0
      %v909 = vsel %vm732, 1, 0
      %v910 = vsel %vm733, 1, 0
      %v911 = vsel %vm734, 1, 0
      %v912 = vsel %vm735, 1, 0
      %v913 = vsel %vm736, 1, 0
      %v914 = vsel %vm737, 1, 0
      %v915 = vsel %vm738, 1, 0
      %v916 = vsel %vm739, 1, 0
      %v917 = vsel %vm740, 1, 0
      %v918 = vsel %vm741, 1, 0
      %v919 = vsel %vm742, 1, 0
      %vm920 = vcmp.eq.s32.totalorder %v888, 1
      %vm921 = vcmp.eq.s32.totalorder %v889, 1
      %vm922 = vcmp.eq.s32.totalorder %v890, 1
      %vm923 = vcmp.eq.s32.totalorder %v891, 1
      %vm924 = vcmp.eq.s32.totalorder %v892, 1
      %vm925 = vcmp.eq.s32.totalorder %v893, 1
      %vm926 = vcmp.eq.s32.totalorder %v894, 1
      %vm927 = vcmp.eq.s32.totalorder %v895, 1
      %vm928 = vcmp.eq.s32.totalorder %v896, 1
      %vm929 = vcmp.eq.s32.totalorder %v897, 1
      %vm930 = vcmp.eq.s32.totalorder %v898, 1
      %vm931 = vcmp.eq.s32.totalorder %v899, 1
      %vm932 = vcmp.eq.s32.totalorder %v900, 1
      %vm933 = vcmp.eq.s32.totalorder %v901, 1
      %vm934 = vcmp.eq.s32.totalorder %v902, 1
      %vm935 = vcmp.eq.s32.totalorder %v903, 1
      %vm936 = vcmp.eq.s32.totalorder %v904, 1
      %vm937 = vcmp.eq.s32.totalorder %v905, 1
      %vm938 = vcmp.eq.s32.totalorder %v906, 1
      %vm939 = vcmp.eq.s32.totalorder %v907, 1
      %vm940 = vcmp.eq.s32.totalorder %v908, 1
      %vm941 = vcmp.eq.s32.totalorder %v909, 1
      %vm942 = vcmp.eq.s32.totalorder %v910, 1
      %vm943 = vcmp.eq.s32.totalorder %v911, 1
      %vm944 = vcmp.eq.s32.totalorder %v912, 1
      %vm945 = vcmp.eq.s32.totalorder %v913, 1
      %vm946 = vcmp.eq.s32.totalorder %v914, 1
      %vm947 = vcmp.eq.s32.totalorder %v915, 1
      %vm948 = vcmp.eq.s32.totalorder %v916, 1
      %vm949 = vcmp.eq.s32.totalorder %v917, 1
      %vm950 = vcmp.eq.s32.totalorder %v918, 1
      %vm951 = vcmp.eq.s32.totalorder %v919, 1
      %v952 = vsel %vm920, %v246, 0.0
      %v953 = vsel %vm921, %v247, 0.0
      %v954 = vsel %vm922, %v248, 0.0
      %v955 = vsel %vm923, %v249, 0.0
      %v956 = vsel %vm924, %v250, 0.0
      %v957 = vsel %vm925, %v251, 0.0
      %v958 = vsel %vm926, %v252, 0.0
      %v959 = vsel %vm927, %v253, 0.0
      %v960 = vsel %vm928, %v254, 0.0
      %v961 = vsel %vm929, %v255, 0.0
      %v962 = vsel %vm930, %v256, 0.0
      %v963 = vsel %vm931, %v257, 0.0
      %v964 = vsel %vm932, %v258, 0.0
      %v965 = vsel %vm933, %v259, 0.0
      %v966 = vsel %vm934, %v260, 0.0
      %v967 = vsel %vm935, %v261, 0.0
      %v968 = vsel %vm936, %v278, 0.0
      %v969 = vsel %vm937, %v279, 0.0
      %v970 = vsel %vm938, %v280, 0.0
      %v971 = vsel %vm939, %v281, 0.0
      %v972 = vsel %vm940, %v282, 0.0
      %v973 = vsel %vm941, %v283, 0.0
      %v974 = vsel %vm942, %v284, 0.0
      %v975 = vsel %vm943, %v285, 0.0
      %v976 = vsel %vm944, %v286, 0.0
      %v977 = vsel %vm945, %v287, 0.0
      %v978 = vsel %vm946, %v288, 0.0
      %v979 = vsel %vm947, %v289, 0.0
      %v980 = vsel %vm948, %v290, 0.0
      %v981 = vsel %vm949, %v291, 0.0
      %v982 = vsel %vm950, %v292, 0.0
      %v983 = vsel %vm951, %v293, 0.0
      %v984 = vpack.c.bf16 %v953, %v952
      %v985 = vpack.c.bf16 %v955, %v954
      %v986 = vpack.c.bf16 %v957, %v956
      %v987 = vpack.c.bf16 %v959, %v958
      %v988 = vpack.c.bf16 %v961, %v960
      %v989 = vpack.c.bf16 %v963, %v962
      %v990 = vpack.c.bf16 %v965, %v964
      %v991 = vpack.c.bf16 %v967, %v966
      %v992 = vpack.c.bf16 %v969, %v968
      %v993 = vpack.c.bf16 %v971, %v970
      %v994 = vpack.c.bf16 %v973, %v972
      %v995 = vpack.c.bf16 %v975, %v974
      %v996 = vpack.c.bf16 %v977, %v976
      %v997 = vpack.c.bf16 %v979, %v978
      %v998 = vpack.c.bf16 %v981, %v980
      %v999 = vpack.c.bf16 %v983, %v982
      %v1016 = vrot.slane %v984, 4
      %v1017 = vrot.slane %v985, 4
      %v1018 = vsel %vm822, %v1016, %v1017
      %v1019 = vrot.slane %v986, 4
      %v1020 = vsel %vm822, %v1017, %v1019
      %v1021 = vrot.slane %v987, 4
      %v1022 = vsel %vm822, %v1019, %v1021
      %v1023 = vrot.slane %v988, 4
      %v1024 = vsel %vm822, %v1021, %v1023
      %v1025 = vrot.slane %v989, 4
      %v1026 = vsel %vm822, %v1023, %v1025
      %v1027 = vrot.slane %v990, 4
      %v1028 = vsel %vm822, %v1025, %v1027
      %v1029 = vrot.slane %v991, 4
      %v1030 = vsel %vm822, %v1027, %v1029
      %v1031 = vrot.slane %v992, 4
      %v1032 = vsel %vm822, %v1029, %v1031
      %v1033 = vrot.slane %v993, 4
      %v1034 = vsel %vm822, %v1031, %v1033
      %v1035 = vrot.slane %v994, 4
      %v1036 = vsel %vm822, %v1033, %v1035
      %v1037 = vrot.slane %v995, 4
      %v1038 = vsel %vm822, %v1035, %v1037
      %v1039 = vrot.slane %v996, 4
      %v1040 = vsel %vm822, %v1037, %v1039
      %v1041 = vrot.slane %v997, 4
      %v1042 = vsel %vm822, %v1039, %v1041
      %v1043 = vrot.slane %v998, 4
      %v1044 = vsel %vm822, %v1041, %v1043
      %v1045 = vrot.slane %v999, 4
      %v1046 = vsel %vm822, %v1043, %v1045
      %s1064 = scalar_lea.vmem [#allocation2], 152
      %1065 = vst.msk [vmem:[%s1064 + $0x8] sm:$0xf0] %vm783, %v1016
      %1066 = vst.msk [vmem:[%s1064 + $0x10] sm:$0xff] %vm775, %v1018
      %1067 = vst.msk [vmem:[%s1064 + $0x18] sm:$0xff] %vm775, %v1020
      %1068 = vst.msk [vmem:[%s1064 + $0x20] sm:$0xff] %vm775, %v1022
      %1069 = vst.msk [vmem:[%s1064 + $0x28] sm:$0xff] %vm775, %v1024
      %1070 = vst.msk [vmem:[%s1064 + $0x30] sm:$0xff] %vm775, %v1026
      %1071 = vst.msk [vmem:[%s1064 + $0x38] sm:$0xff] %vm775, %v1028
      %1072 = vst.msk [vmem:[%s1064 + $0x40] sm:$0xff] %vm775, %v1030
      %1073 = vst.msk [vmem:[%s1064 + $0x48] sm:$0xff] %vm775, %v1032
      %1074 = vst.msk [vmem:[%s1064 + $0x50] sm:$0xff] %vm775, %v1034
      %1075 = vst.msk [vmem:[%s1064 + $0x58] sm:$0xff] %vm775, %v1036
      %1076 = vst.msk [vmem:[%s1064 + $0x60] sm:$0xff] %vm775, %v1038
      %1077 = vst.msk [vmem:[%s1064 + $0x68] sm:$0xff] %vm775, %v1040
      %1078 = vst.msk [vmem:[%s1064 + $0x70] sm:$0xff] %vm775, %v1042
      %1079 = vst.msk [vmem:[%s1064 + $0x78] sm:$0xff] %vm775, %v1044
      %1080 = vst.msk [vmem:[%s1064 + $0x80] sm:$0xff] %vm775, %v1046
      %1081 = vst.msk [vmem:[%s1064 + $0x88] sm:$0xf] %vm777, %v1045
      %v1082 = vsel %vm743, 1, 0
      %v1083 = vsel %vm744, 1, 0
      %v1084 = vsel %vm745, 1, 0
      %v1085 = vsel %vm746, 1, 0
      %v1086 = vsel %vm747, 1, 0
      %v1087 = vsel %vm748, 1, 0
      %v1088 = vsel %vm749, 1, 0
      %v1089 = vsel %vm750, 1, 0
      %v1090 = vsel %vm751, 1, 0
      %v1091 = vsel %vm752, 1, 0
      %v1092 = vsel %vm753, 1, 0
      %v1093 = vsel %vm754, 1, 0
      %v1094 = vsel %vm755, 1, 0
      %v1095 = vsel %vm756, 1, 0
      %v1096 = vsel %vm757, 1, 0
      %v1097 = vsel %vm758, 1, 0
      %v1098 = vsel %vm759, 1, 0
      %v1099 = vsel %vm760, 1, 0
      %v1100 = vsel %vm761, 1, 0
      %v1101 = vsel %vm762, 1, 0
      %v1102 = vsel %vm763, 1, 0
      %v1103 = vsel %vm764, 1, 0
      %v1104 = vsel %vm765, 1, 0
      %v1105 = vsel %vm766, 1, 0
      %v1106 = vsel %vm767, 1, 0
      %v1107 = vsel %vm768, 1, 0
      %v1108 = vsel %vm769, 1, 0
      %v1109 = vsel %vm770, 1, 0
      %v1110 = vsel %vm771, 1, 0
      %v1111 = vsel %vm772, 1, 0
      %v1112 = vsel %vm773, 1, 0
      %v1113 = vsel %vm774, 1, 0
      %vm1114 = vcmp.eq.s32.totalorder %v1082, 1
      %vm1115 = vcmp.eq.s32.totalorder %v1083, 1
      %vm1116 = vcmp.eq.s32.totalorder %v1084, 1
      %vm1117 = vcmp.eq.s32.totalorder %v1085, 1
      %vm1118 = vcmp.eq.s32.totalorder %v1086, 1
      %vm1119 = vcmp.eq.s32.totalorder %v1087, 1
      %vm1120 = vcmp.eq.s32.totalorder %v1088, 1
      %vm1121 = vcmp.eq.s32.totalorder %v1089, 1
      %vm1122 = vcmp.eq.s32.totalorder %v1090, 1
      %vm1123 = vcmp.eq.s32.totalorder %v1091, 1
      %vm1124 = vcmp.eq.s32.totalorder %v1092, 1
      %vm1125 = vcmp.eq.s32.totalorder %v1093, 1
      %vm1126 = vcmp.eq.s32.totalorder %v1094, 1
      %vm1127 = vcmp.eq.s32.totalorder %v1095, 1
      %vm1128 = vcmp.eq.s32.totalorder %v1096, 1
      %vm1129 = vcmp.eq.s32.totalorder %v1097, 1
      %vm1130 = vcmp.eq.s32.totalorder %v1098, 1
      %vm1131 = vcmp.eq.s32.totalorder %v1099, 1
      %vm1132 = vcmp.eq.s32.totalorder %v1100, 1
      %vm1133 = vcmp.eq.s32.totalorder %v1101, 1
      %vm1134 = vcmp.eq.s32.totalorder %v1102, 1
      %vm1135 = vcmp.eq.s32.totalorder %v1103, 1
      %vm1136 = vcmp.eq.s32.totalorder %v1104, 1
      %vm1137 = vcmp.eq.s32.totalorder %v1105, 1
      %vm1138 = vcmp.eq.s32.totalorder %v1106, 1
      %vm1139 = vcmp.eq.s32.totalorder %v1107, 1
      %vm1140 = vcmp.eq.s32.totalorder %v1108, 1
      %vm1141 = vcmp.eq.s32.totalorder %v1109, 1
      %vm1142 = vcmp.eq.s32.totalorder %v1110, 1
      %vm1143 = vcmp.eq.s32.totalorder %v1111, 1
      %vm1144 = vcmp.eq.s32.totalorder %v1112, 1
      %vm1145 = vcmp.eq.s32.totalorder %v1113, 1
      %v1146 = vsel %vm1114, %v246, 0.0
      %v1147 = vsel %vm1115, %v247, 0.0
      %v1148 = vsel %vm1116, %v248, 0.0
      %v1149 = vsel %vm1117, %v249, 0.0
      %v1150 = vsel %vm1118, %v250, 0.0
      %v1151 = vsel %vm1119, %v251, 0.0
      %v1152 = vsel %vm1120, %v252, 0.0
      %v1153 = vsel %vm1121, %v253, 0.0
      %v1154 = vsel %vm1122, %v254, 0.0
      %v1155 = vsel %vm1123, %v255, 0.0
      %v1156 = vsel %vm1124, %v256, 0.0
      %v1157 = vsel %vm1125, %v257, 0.0
      %v1158 = vsel %vm1126, %v258, 0.0
      %v1159 = vsel %vm1127, %v259, 0.0
      %v1160 = vsel %vm1128, %v260, 0.0
      %v1161 = vsel %vm1129, %v261, 0.0
      %v1162 = vsel %vm1130, %v278, 0.0
      %v1163 = vsel %vm1131, %v279, 0.0
      %v1164 = vsel %vm1132, %v280, 0.0
      %v1165 = vsel %vm1133, %v281, 0.0
      %v1166 = vsel %vm1134, %v282, 0.0
      %v1167 = vsel %vm1135, %v283, 0.0
      %v1168 = vsel %vm1136, %v284, 0.0
      %v1169 = vsel %vm1137, %v285, 0.0
      %v1170 = vsel %vm1138, %v286, 0.0
      %v1171 = vsel %vm1139, %v287, 0.0
      %v1172 = vsel %vm1140, %v288, 0.0
      %v1173 = vsel %vm1141, %v289, 0.0
      %v1174 = vsel %vm1142, %v290, 0.0
      %v1175 = vsel %vm1143, %v291, 0.0
      %v1176 = vsel %vm1144, %v292, 0.0
      %v1177 = vsel %vm1145, %v293, 0.0
      %v1178 = vpack.c.bf16 %v1147, %v1146
      %v1179 = vpack.c.bf16 %v1149, %v1148
      %v1180 = vpack.c.bf16 %v1151, %v1150
      %v1181 = vpack.c.bf16 %v1153, %v1152
      %v1182 = vpack.c.bf16 %v1155, %v1154
      %v1183 = vpack.c.bf16 %v1157, %v1156
      %v1184 = vpack.c.bf16 %v1159, %v1158
      %v1185 = vpack.c.bf16 %v1161, %v1160
      %v1186 = vpack.c.bf16 %v1163, %v1162
      %v1187 = vpack.c.bf16 %v1165, %v1164
      %v1188 = vpack.c.bf16 %v1167, %v1166
      %v1189 = vpack.c.bf16 %v1169, %v1168
      %v1190 = vpack.c.bf16 %v1171, %v1170
      %v1191 = vpack.c.bf16 %v1173, %v1172
      %v1192 = vpack.c.bf16 %v1175, %v1174
      %v1193 = vpack.c.bf16 %v1177, %v1176
      %v1210 = vrot.slane %v1178, 4
      %v1211 = vrot.slane %v1179, 4
      %v1212 = vsel %vm822, %v1210, %v1211
      %v1213 = vrot.slane %v1180, 4
      %v1214 = vsel %vm822, %v1211, %v1213
      %v1215 = vrot.slane %v1181, 4
      %v1216 = vsel %vm822, %v1213, %v1215
      %v1217 = vrot.slane %v1182, 4
      %v1218 = vsel %vm822, %v1215, %v1217
      %v1219 = vrot.slane %v1183, 4
      %v1220 = vsel %vm822, %v1217, %v1219
      %v1221 = vrot.slane %v1184, 4
      %v1222 = vsel %vm822, %v1219, %v1221
      %v1223 = vrot.slane %v1185, 4
      %v1224 = vsel %vm822, %v1221, %v1223
      %v1225 = vrot.slane %v1186, 4
      %v1226 = vsel %vm822, %v1223, %v1225
      %v1227 = vrot.slane %v1187, 4
      %v1228 = vsel %vm822, %v1225, %v1227
      %v1229 = vrot.slane %v1188, 4
      %v1230 = vsel %vm822, %v1227, %v1229
      %v1231 = vrot.slane %v1189, 4
      %v1232 = vsel %vm822, %v1229, %v1231
      %v1233 = vrot.slane %v1190, 4
      %v1234 = vsel %vm822, %v1231, %v1233
      %v1235 = vrot.slane %v1191, 4
      %v1236 = vsel %vm822, %v1233, %v1235
      %v1237 = vrot.slane %v1192, 4
      %v1238 = vsel %vm822, %v1235, %v1237
      %v1239 = vrot.slane %v1193, 4
      %v1240 = vsel %vm822, %v1237, %v1239
      %s1258 = scalar_lea.vmem [#allocation2], 304
      %1259 = vst.msk [vmem:[%s1258 + $0x8] sm:$0xf0] %vm783, %v1210
      %1260 = vst.msk [vmem:[%s1258 + $0x10] sm:$0xff] %vm775, %v1212
      %1261 = vst.msk [vmem:[%s1258 + $0x18] sm:$0xff] %vm775, %v1214
      %1262 = vst.msk [vmem:[%s1258 + $0x20] sm:$0xff] %vm775, %v1216
      %1263 = vst.msk [vmem:[%s1258 + $0x28] sm:$0xff] %vm775, %v1218
      %1264 = vst.msk [vmem:[%s1258 + $0x30] sm:$0xff] %vm775, %v1220
      %1265 = vst.msk [vmem:[%s1258 + $0x38] sm:$0xff] %vm775, %v1222
      %1266 = vst.msk [vmem:[%s1258 + $0x40] sm:$0xff] %vm775, %v1224
      %1267 = vst.msk [vmem:[%s1258 + $0x48] sm:$0xff] %vm775, %v1226
      %1268 = vst.msk [vmem:[%s1258 + $0x50] sm:$0xff] %vm775, %v1228
      %1269 = vst.msk [vmem:[%s1258 + $0x58] sm:$0xff] %vm775, %v1230
      %1270 = vst.msk [vmem:[%s1258 + $0x60] sm:$0xff] %vm775, %v1232
      %1271 = vst.msk [vmem:[%s1258 + $0x68] sm:$0xff] %vm775, %v1234
      %1272 = vst.msk [vmem:[%s1258 + $0x70] sm:$0xff] %vm775, %v1236
      %1273 = vst.msk [vmem:[%s1258 + $0x78] sm:$0xff] %vm775, %v1238
      %1274 = vst.msk [vmem:[%s1258 + $0x80] sm:$0xff] %vm775, %v1240
      %1275 = vst.msk [vmem:[%s1258 + $0x88] sm:$0xf] %vm777, %v1239
      %v1276 = vld [vmem:[%s2] sm:$0x1]
      %v1277 = vld [vmem:[%s1258] sm:$0xf8]
      %v1278 = vld [vmem:[%s1258 + $0x8] sm:$0xff]
      %v1279 = vld [vmem:[%s1258 + $0x10] sm:$0xff]
      %v1280 = vld [vmem:[%s1258 + $0x18] sm:$0xff]
      %v1281 = vld [vmem:[%s1258 + $0x20] sm:$0xff]
      %v1282 = vld [vmem:[%s1258 + $0x28] sm:$0xff]
      %v1283 = vld [vmem:[%s1258 + $0x30] sm:$0xff]
      %v1284 = vld [vmem:[%s1258 + $0x38] sm:$0xff]
      %v1285 = vld [vmem:[%s1258 + $0x40] sm:$0xff]
      %v1286 = vld [vmem:[%s1258 + $0x48] sm:$0xff]
      %v1287 = vld [vmem:[%s1258 + $0x50] sm:$0xff]
      %v1288 = vld [vmem:[%s1258 + $0x58] sm:$0xff]
      %v1289 = vld [vmem:[%s1258 + $0x60] sm:$0xff]
      %v1290 = vld [vmem:[%s1258 + $0x68] sm:$0xff]
      %v1291 = vld [vmem:[%s1258 + $0x70] sm:$0xff]
      %v1292 = vld [vmem:[%s1258 + $0x78] sm:$0xff]
      %v1293 = vld [vmem:[%s1258 + $0x80] sm:$0xf]
      %v1294 = vld [vmem:[#allocation2] sm:$0xf0]
      %v1295 = vld [vmem:[#allocation2 + $0x8] sm:$0xff]
      %v1296 = vld [vmem:[#allocation2 + $0x10] sm:$0xff]
      %v1297 = vld [vmem:[#allocation2 + $0x18] sm:$0xff]
      %v1298 = vld [vmem:[#allocation2 + $0x20] sm:$0xff]
      %v1299 = vld [vmem:[#allocation2 + $0x28] sm:$0xff]
      %v1300 = vld [vmem:[#allocation2 + $0x30] sm:$0xff]
      %v1301 = vld [vmem:[#allocation2 + $0x38] sm:$0xff]
      %v1302 = vld [vmem:[#allocation2 + $0x40] sm:$0xff]
      %v1303 = vld [vmem:[#allocation2 + $0x48] sm:$0xff]
      %v1304 = vld [vmem:[#allocation2 + $0x50] sm:$0xff]
      %v1305 = vld [vmem:[#allocation2 + $0x58] sm:$0xff]
      %v1306 = vld [vmem:[#allocation2 + $0x60] sm:$0xff]
      %v1307 = vld [vmem:[#allocation2 + $0x68] sm:$0xff]
      %v1308 = vld [vmem:[#allocation2 + $0x70] sm:$0xff]
      %v1309 = vld [vmem:[#allocation2 + $0x78] sm:$0xff]
      %v1310 = vld [vmem:[#allocation2 + $0x80] sm:$0xf]
      %v1311 = vld [vmem:[%s1064] sm:$0xf0]
      %v1312 = vld [vmem:[%s1064 + $0x8] sm:$0xff]
      %v1313 = vld [vmem:[%s1064 + $0x10] sm:$0xff]
      %v1314 = vld [vmem:[%s1064 + $0x18] sm:$0xff]
      %v1315 = vld [vmem:[%s1064 + $0x20] sm:$0xff]
      %v1316 = vld [vmem:[%s1064 + $0x28] sm:$0xff]
      %v1317 = vld [vmem:[%s1064 + $0x30] sm:$0xff]
      %v1318 = vld [vmem:[%s1064 + $0x38] sm:$0xff]
      %v1319 = vld [vmem:[%s1064 + $0x40] sm:$0xff]
      %v1320 = vld [vmem:[%s1064 + $0x48] sm:$0xff]
      %v1321 = vld [vmem:[%s1064 + $0x50] sm:$0xff]
      %v1322 = vld [vmem:[%s1064 + $0x58] sm:$0xff]
      %v1323 = vld [vmem:[%s1064 + $0x60] sm:$0xff]
      %v1324 = vld [vmem:[%s1064 + $0x68] sm:$0xff]
      %v1325 = vld [vmem:[%s1064 + $0x70] sm:$0xff]
      %v1326 = vld [vmem:[%s1064 + $0x78] sm:$0xff]
      %v1327 = vld [vmem:[%s1064 + $0x80] sm:$0x1f]
      %v1328 = vld [vmem:[%s1258 + $0x8] sm:$0xf8]
      %v1329 = vld [vmem:[%s1258 + $0x80] sm:$0xff]
      %v1330 = vld [vmem:[%s1258 + $0x88] sm:$0xf]
      %v1331 = vld [vmem:[#allocation2 + $0x8] sm:$0xf0]
      %v1332 = vld [vmem:[#allocation2 + $0x80] sm:$0xff]
      %v1333 = vld [vmem:[#allocation2 + $0x88] sm:$0xf]
      %v1334 = vld [vmem:[%s1064 + $0x8] sm:$0xf0]
      %v1335 = vld [vmem:[%s1064 + $0x80] sm:$0xff]
      %v1336 = vld [vmem:[%s1064 + $0x88] sm:$0x1f]
      %v1337 = vld [vmem:[%s1258 + $0x10] sm:$0xf8]
      %v1338 = vld [vmem:[%s1258 + $0x88] sm:$0xff]
      %v1339 = vld [vmem:[%s1258 + $0x90] sm:$0xf]
      %v1340 = vld [vmem:[#allocation2 + $0x10] sm:$0xf0]
      %v1341 = vld [vmem:[#allocation2 + $0x88] sm:$0xff]
      %v1342 = vld [vmem:[#allocation2 + $0x90] sm:$0xf]
      %v1343 = vld [vmem:[%s1064 + $0x10] sm:$0xf0]
      %v1344 = vld [vmem:[%s1064 + $0x88] sm:$0xff]
      %v1345 = vld [vmem:[%s1064 + $0x90] sm:$0x1f]
      %vm1346 = vsmask.f32 7424
      %v1348 = vshrl.u32 %v1294, 16
      %v1350 = vshll.u32 %v1294, 16
      %v1352 = vrot.slane %v1350, 1
      %v1353 = vor.u32 %v1348, %v1352
      %v1355 = vshll.u32 %v1295, 16
      %v1357 = vrot.slane %v1355, 1
      %v1358 = vsel %vm1346, %v1353, %v1357
      %v1359 = vshrl.u32 %v1295, 16
      %v1361 = vor.u32 %v1359, %v1357
      %v1363 = vshll.u32 %v1296, 16
      %v1365 = vrot.slane %v1363, 1
      %v1366 = vsel %vm1346, %v1361, %v1365
      %v1367 = vshrl.u32 %v1296, 16
      %v1369 = vor.u32 %v1367, %v1365
      %v1371 = vshll.u32 %v1297, 16
      %v1373 = vrot.slane %v1371, 1
      %v1374 = vsel %vm1346, %v1369, %v1373
      %v1375 = vshrl.u32 %v1297, 16
      %v1377 = vor.u32 %v1375, %v1373
      %v1379 = vshll.u32 %v1298, 16
      %v1381 = vrot.slane %v1379, 1
      %v1382 = vsel %vm1346, %v1377, %v1381
      %v1383 = vshrl.u32 %v1298, 16
      %v1385 = vor.u32 %v1383, %v1381
      %v1387 = vshll.u32 %v1299, 16
      %v1389 = vrot.slane %v1387, 1
      %v1390 = vsel %vm1346, %v1385, %v1389
      %v1391 = vshrl.u32 %v1299, 16
      %v1393 = vor.u32 %v1391, %v1389
      %v1395 = vshll.u32 %v1300, 16
      %v1397 = vrot.slane %v1395, 1
      %v1398 = vsel %vm1346, %v1393, %v1397
      %v1399 = vshrl.u32 %v1300, 16
      %v1401 = vor.u32 %v1399, %v1397
      %v1403 = vshll.u32 %v1301, 16
      %v1405 = vrot.slane %v1403, 1
      %v1406 = vsel %vm1346, %v1401, %v1405
      %v1407 = vshrl.u32 %v1301, 16
      %v1409 = vor.u32 %v1407, %v1405
      %v1411 = vshll.u32 %v1302, 16
      %v1413 = vrot.slane %v1411, 1
      %v1414 = vsel %vm1346, %v1409, %v1413
      %v1415 = vshrl.u32 %v1302, 16
      %v1417 = vor.u32 %v1415, %v1413
      %v1419 = vshll.u32 %v1303, 16
      %v1421 = vrot.slane %v1419, 1
      %v1422 = vsel %vm1346, %v1417, %v1421
      %v1423 = vshrl.u32 %v1303, 16
      %v1425 = vor.u32 %v1423, %v1421
      %v1427 = vshll.u32 %v1304, 16
      %v1429 = vrot.slane %v1427, 1
      %v1430 = vsel %vm1346, %v1425, %v1429
      %v1431 = vshrl.u32 %v1304, 16
      %v1433 = vor.u32 %v1431, %v1429
      %v1435 = vshll.u32 %v1305, 16
      %v1437 = vrot.slane %v1435, 1
      %v1438 = vsel %vm1346, %v1433, %v1437
      %v1439 = vshrl.u32 %v1305, 16
      %v1441 = vor.u32 %v1439, %v1437
      %v1443 = vshll.u32 %v1306, 16
      %v1445 = vrot.slane %v1443, 1
      %v1446 = vsel %vm1346, %v1441, %v1445
      %v1447 = vshrl.u32 %v1306, 16
      %v1449 = vor.u32 %v1447, %v1445
      %v1451 = vshll.u32 %v1307, 16
      %v1453 = vrot.slane %v1451, 1
      %v1454 = vsel %vm1346, %v1449, %v1453
      %v1455 = vshrl.u32 %v1307, 16
      %v1457 = vor.u32 %v1455, %v1453
      %v1459 = vshll.u32 %v1308, 16
      %v1461 = vrot.slane %v1459, 1
      %v1462 = vsel %vm1346, %v1457, %v1461
      %v1463 = vshrl.u32 %v1308, 16
      %v1465 = vor.u32 %v1463, %v1461
      %v1467 = vshll.u32 %v1309, 16
      %v1469 = vrot.slane %v1467, 1
      %v1470 = vsel %vm1346, %v1465, %v1469
      %v1471 = vshrl.u32 %v1309, 16
      %v1473 = vor.u32 %v1471, %v1469
      %v1475 = vshll.u32 %v1310, 16
      %v1477 = vrot.slane %v1475, 1
      %v1478 = vsel %vm1346, %v1473, %v1477
      %v1479 = vshrl.u32 %v1310, 16
      %v1481 = vor.u32 %v1479, %v1477
      %1482 = vrot.lane.b32.xlu0 %v1358, 4
      %v1483 = vpop.permute.xlu0 %1482
      %1484 = vrot.lane.b32.xlu0 %v1366, 4
      %v1485 = vpop.permute.xlu0 %1484
      %1486 = vrot.lane.b32.xlu0 %v1374, 4
      %v1487 = vpop.permute.xlu0 %1486
      %1488 = vrot.lane.b32.xlu0 %v1382, 4
      %v1489 = vpop.permute.xlu0 %1488
      %1490 = vrot.lane.b32.xlu0 %v1390, 4
      %v1491 = vpop.permute.xlu0 %1490
      %1492 = vrot.lane.b32.xlu0 %v1398, 4
      %v1493 = vpop.permute.xlu0 %1492
      %1494 = vrot.lane.b32.xlu0 %v1406, 4
      %v1495 = vpop.permute.xlu0 %1494
      %1496 = vrot.lane.b32.xlu0 %v1414, 4
      %v1497 = vpop.permute.xlu0 %1496
      %1498 = vrot.lane.b32.xlu0 %v1422, 4
      %v1499 = vpop.permute.xlu0 %1498
      %1500 = vrot.lane.b32.xlu0 %v1430, 4
      %v1501 = vpop.permute.xlu0 %1500
      %1502 = vrot.lane.b32.xlu0 %v1438, 4
      %v1503 = vpop.permute.xlu0 %1502
      %1504 = vrot.lane.b32.xlu0 %v1446, 4
      %v1505 = vpop.permute.xlu0 %1504
      %1506 = vrot.lane.b32.xlu0 %v1454, 4
      %v1507 = vpop.permute.xlu0 %1506
      %1508 = vrot.lane.b32.xlu0 %v1462, 4
      %v1509 = vpop.permute.xlu0 %1508
      %1510 = vrot.lane.b32.xlu0 %v1470, 4
      %v1511 = vpop.permute.xlu0 %1510
      %1512 = vrot.lane.b32.xlu0 %v1478, 4
      %v1513 = vpop.permute.xlu0 %1512
      %1514 = vrot.lane.b32.xlu0 %v1481, 4
      %v1515 = vpop.permute.xlu0 %1514
      %vm1533 = vcmask 1046528
      %v1534 = vrot.slane %v1311, 1
      %v1535 = vrot.slane %v1312, 1
      %v1536 = vsel %vm1533, %v1534, %v1535
      %v1537 = vrot.slane %v1313, 1
      %v1538 = vsel %vm1533, %v1535, %v1537
      %v1539 = vrot.slane %v1314, 1
      %v1540 = vsel %vm1533, %v1537, %v1539
      %v1541 = vrot.slane %v1315, 1
      %v1542 = vsel %vm1533, %v1539, %v1541
      %v1543 = vrot.slane %v1316, 1
      %v1544 = vsel %vm1533, %v1541, %v1543
      %v1545 = vrot.slane %v1317, 1
      %v1546 = vsel %vm1533, %v1543, %v1545
      %v1547 = vrot.slane %v1318, 1
      %v1548 = vsel %vm1533, %v1545, %v1547
      %v1549 = vrot.slane %v1319, 1
      %v1550 = vsel %vm1533, %v1547, %v1549
      %v1551 = vrot.slane %v1320, 1
      %v1552 = vsel %vm1533, %v1549, %v1551
      %v1553 = vrot.slane %v1321, 1
      %v1554 = vsel %vm1533, %v1551, %v1553
      %v1555 = vrot.slane %v1322, 1
      %v1556 = vsel %vm1533, %v1553, %v1555
      %v1557 = vrot.slane %v1323, 1
      %v1558 = vsel %vm1533, %v1555, %v1557
      %v1559 = vrot.slane %v1324, 1
      %v1560 = vsel %vm1533, %v1557, %v1559
      %v1561 = vrot.slane %v1325, 1
      %v1562 = vsel %vm1533, %v1559, %v1561
      %v1563 = vrot.slane %v1326, 1
      %v1564 = vsel %vm1533, %v1561, %v1563
      %v1565 = vrot.slane %v1327, 1
      %v1566 = vsel %vm1533, %v1563, %v1565
      %1567 = vrot.lane.b32.xlu0 %v1536, 8
      %v1568 = vpop.permute.xlu0 %1567
      %1569 = vrot.lane.b32.xlu0 %v1538, 8
      %v1570 = vpop.permute.xlu0 %1569
      %1571 = vrot.lane.b32.xlu0 %v1540, 8
      %v1572 = vpop.permute.xlu0 %1571
      %1573 = vrot.lane.b32.xlu0 %v1542, 8
      %v1574 = vpop.permute.xlu0 %1573
      %1575 = vrot.lane.b32.xlu0 %v1544, 8
      %v1576 = vpop.permute.xlu0 %1575
      %1577 = vrot.lane.b32.xlu0 %v1546, 8
      %v1578 = vpop.permute.xlu0 %1577
      %1579 = vrot.lane.b32.xlu0 %v1548, 8
      %v1580 = vpop.permute.xlu0 %1579
      %1581 = vrot.lane.b32.xlu0 %v1550, 8
      %v1582 = vpop.permute.xlu0 %1581
      %1583 = vrot.lane.b32.xlu0 %v1552, 8
      %v1584 = vpop.permute.xlu0 %1583
      %1585 = vrot.lane.b32.xlu0 %v1554, 8
      %v1586 = vpop.permute.xlu0 %1585
      %1587 = vrot.lane.b32.xlu0 %v1556, 8
      %v1588 = vpop.permute.xlu0 %1587
      %1589 = vrot.lane.b32.xlu0 %v1558, 8
      %v1590 = vpop.permute.xlu0 %1589
      %1591 = vrot.lane.b32.xlu0 %v1560, 8
      %v1592 = vpop.permute.xlu0 %1591
      %1593 = vrot.lane.b32.xlu0 %v1562, 8
      %v1594 = vpop.permute.xlu0 %1593
      %1595 = vrot.lane.b32.xlu0 %v1564, 8
      %v1596 = vpop.permute.xlu0 %1595
      %1597 = vrot.lane.b32.xlu0 %v1566, 8
      %v1598 = vpop.permute.xlu0 %1597
      %1599 = vrot.lane.b32.xlu0 %v1565, 8
      %v1600 = vpop.permute.xlu0 %1599
      %1618 = vrot.lane.b32.xlu0 %v1328, 12
      %v1619 = vpop.permute.xlu0 %1618
      %1620 = vrot.lane.b32.xlu0 %v1279, 12
      %v1621 = vpop.permute.xlu0 %1620
      %1622 = vrot.lane.b32.xlu0 %v1280, 12
      %v1623 = vpop.permute.xlu0 %1622
      %1624 = vrot.lane.b32.xlu0 %v1281, 12
      %v1625 = vpop.permute.xlu0 %1624
      %1626 = vrot.lane.b32.xlu0 %v1282, 12
      %v1627 = vpop.permute.xlu0 %1626
      %1628 = vrot.lane.b32.xlu0 %v1283, 12
      %v1629 = vpop.permute.xlu0 %1628
      %1630 = vrot.lane.b32.xlu0 %v1284, 12
      %v1631 = vpop.permute.xlu0 %1630
      %1632 = vrot.lane.b32.xlu0 %v1285, 12
      %v1633 = vpop.permute.xlu0 %1632
      %1634 = vrot.lane.b32.xlu0 %v1286, 12
      %v1635 = vpop.permute.xlu0 %1634
      %1636 = vrot.lane.b32.xlu0 %v1287, 12
      %v1637 = vpop.permute.xlu0 %1636
      %1638 = vrot.lane.b32.xlu0 %v1288, 12
      %v1639 = vpop.permute.xlu0 %1638
      %1640 = vrot.lane.b32.xlu0 %v1289, 12
      %v1641 = vpop.permute.xlu0 %1640
      %1642 = vrot.lane.b32.xlu0 %v1290, 12
      %v1643 = vpop.permute.xlu0 %1642
      %1644 = vrot.lane.b32.xlu0 %v1291, 12
      %v1645 = vpop.permute.xlu0 %1644
      %1646 = vrot.lane.b32.xlu0 %v1292, 12
      %v1647 = vpop.permute.xlu0 %1646
      %1648 = vrot.lane.b32.xlu0 %v1329, 12
      %v1649 = vpop.permute.xlu0 %1648
      %1650 = vrot.lane.b32.xlu0 %v1330, 12
      %v1651 = vpop.permute.xlu0 %1650
      %v1653 = vshrl.u32 %v1331, 16
      %v1655 = vshll.u32 %v1331, 16
      %v1657 = vrot.slane %v1655, 1
      %v1658 = vor.u32 %v1653, %v1657
      %v1659 = vsel %vm1346, %v1658, %v1365
      %v1661 = vshll.u32 %v1332, 16
      %v1663 = vrot.slane %v1661, 1
      %v1664 = vsel %vm1346, %v1473, %v1663
      %v1665 = vshrl.u32 %v1332, 16
      %v1667 = vor.u32 %v1665, %v1663
      %v1669 = vshll.u32 %v1333, 16
      %v1671 = vrot.slane %v1669, 1
      %v1672 = vsel %vm1346, %v1667, %v1671
      %v1673 = vshrl.u32 %v1333, 16
      %v1675 = vor.u32 %v1673, %v1671
      %1676 = vrot.lane.b32.xlu0 %v1659, 16
      %v1677 = vpop.permute.xlu0 %1676
      %1678 = vrot.lane.b32.xlu0 %v1374, 16
      %v1679 = vpop.permute.xlu0 %1678
      %1680 = vrot.lane.b32.xlu0 %v1382, 16
      %v1681 = vpop.permute.xlu0 %1680
      %1682 = vrot.lane.b32.xlu0 %v1390, 16
      %v1683 = vpop.permute.xlu0 %1682
      %1684 = vrot.lane.b32.xlu0 %v1398, 16
      %v1685 = vpop.permute.xlu0 %1684
      %1686 = vrot.lane.b32.xlu0 %v1406, 16
      %v1687 = vpop.permute.xlu0 %1686
      %1688 = vrot.lane.b32.xlu0 %v1414, 16
      %v1689 = vpop.permute.xlu0 %1688
      %1690 = vrot.lane.b32.xlu0 %v1422, 16
      %v1691 = vpop.permute.xlu0 %1690
      %1692 = vrot.lane.b32.xlu0 %v1430, 16
      %v1693 = vpop.permute.xlu0 %1692
      %1694 = vrot.lane.b32.xlu0 %v1438, 16
      %v1695 = vpop.permute.xlu0 %1694
      %1696 = vrot.lane.b32.xlu0 %v1446, 16
      %v1697 = vpop.permute.xlu0 %1696
      %1698 = vrot.lane.b32.xlu0 %v1454, 16
      %v1699 = vpop.permute.xlu0 %1698
      %1700 = vrot.lane.b32.xlu0 %v1462, 16
      %v1701 = vpop.permute.xlu0 %1700
      %1702 = vrot.lane.b32.xlu0 %v1470, 16
      %v1703 = vpop.permute.xlu0 %1702
      %1704 = vrot.lane.b32.xlu0 %v1664, 16
      %v1705 = vpop.permute.xlu0 %1704
      %1706 = vrot.lane.b32.xlu0 %v1672, 16
      %v1707 = vpop.permute.xlu0 %1706
      %1708 = vrot.lane.b32.xlu0 %v1675, 16
      %v1709 = vpop.permute.xlu0 %1708
      %v1713 = vrot.slane %v1334, 1
      %v1714 = vsel %vm1533, %v1713, %v1537
      %v1715 = vrot.slane %v1335, 1
      %v1716 = vsel %vm1533, %v1563, %v1715
      %v1717 = vrot.slane %v1336, 1
      %v1718 = vsel %vm1533, %v1715, %v1717
      %1719 = vrot.lane.b32.xlu0 %v1714, 20
      %v1720 = vpop.permute.xlu0 %1719
      %1721 = vrot.lane.b32.xlu0 %v1540, 20
      %v1722 = vpop.permute.xlu0 %1721
      %1723 = vrot.lane.b32.xlu0 %v1542, 20
      %v1724 = vpop.permute.xlu0 %1723
      %1725 = vrot.lane.b32.xlu0 %v1544, 20
      %v1726 = vpop.permute.xlu0 %1725
      %1727 = vrot.lane.b32.xlu0 %v1546, 20
      %v1728 = vpop.permute.xlu0 %1727
      %1729 = vrot.lane.b32.xlu0 %v1548, 20
      %v1730 = vpop.permute.xlu0 %1729
      %1731 = vrot.lane.b32.xlu0 %v1550, 20
      %v1732 = vpop.permute.xlu0 %1731
      %1733 = vrot.lane.b32.xlu0 %v1552, 20
      %v1734 = vpop.permute.xlu0 %1733
      %1735 = vrot.lane.b32.xlu0 %v1554, 20
      %v1736 = vpop.permute.xlu0 %1735
      %1737 = vrot.lane.b32.xlu0 %v1556, 20
      %v1738 = vpop.permute.xlu0 %1737
      %1739 = vrot.lane.b32.xlu0 %v1558, 20
      %v1740 = vpop.permute.xlu0 %1739
      %1741 = vrot.lane.b32.xlu0 %v1560, 20
      %v1742 = vpop.permute.xlu0 %1741
      %1743 = vrot.lane.b32.xlu0 %v1562, 20
      %v1744 = vpop.permute.xlu0 %1743
      %1745 = vrot.lane.b32.xlu0 %v1564, 20
      %v1746 = vpop.permute.xlu0 %1745
      %1747 = vrot.lane.b32.xlu0 %v1716, 20
      %v1748 = vpop.permute.xlu0 %1747
      %1749 = vrot.lane.b32.xlu0 %v1718, 20
      %v1750 = vpop.permute.xlu0 %1749
      %1751 = vrot.lane.b32.xlu0 %v1717, 20
      %v1752 = vpop.permute.xlu0 %1751
      %1756 = vrot.lane.b32.xlu0 %v1337, 24
      %v1757 = vpop.permute.xlu0 %1756
      %1758 = vrot.lane.b32.xlu0 %v1280, 24
      %v1759 = vpop.permute.xlu0 %1758
      %1760 = vrot.lane.b32.xlu0 %v1281, 24
      %v1761 = vpop.permute.xlu0 %1760
      %1762 = vrot.lane.b32.xlu0 %v1282, 24
      %v1763 = vpop.permute.xlu0 %1762
      %1764 = vrot.lane.b32.xlu0 %v1283, 24
      %v1765 = vpop.permute.xlu0 %1764
      %1766 = vrot.lane.b32.xlu0 %v1284, 24
      %v1767 = vpop.permute.xlu0 %1766
      %1768 = vrot.lane.b32.xlu0 %v1285, 24
      %v1769 = vpop.permute.xlu0 %1768
      %1770 = vrot.lane.b32.xlu0 %v1286, 24
      %v1771 = vpop.permute.xlu0 %1770
      %1772 = vrot.lane.b32.xlu0 %v1287, 24
      %v1773 = vpop.permute.xlu0 %1772
      %1774 = vrot.lane.b32.xlu0 %v1288, 24
      %v1775 = vpop.permute.xlu0 %1774
      %1776 = vrot.lane.b32.xlu0 %v1289, 24
      %v1777 = vpop.permute.xlu0 %1776
      %1778 = vrot.lane.b32.xlu0 %v1290, 24
      %v1779 = vpop.permute.xlu0 %1778
      %1780 = vrot.lane.b32.xlu0 %v1291, 24
      %v1781 = vpop.permute.xlu0 %1780
      %1782 = vrot.lane.b32.xlu0 %v1292, 24
      %v1783 = vpop.permute.xlu0 %1782
      %1784 = vrot.lane.b32.xlu0 %v1329, 24
      %v1785 = vpop.permute.xlu0 %1784
      %1786 = vrot.lane.b32.xlu0 %v1338, 24
      %v1787 = vpop.permute.xlu0 %1786
      %1788 = vrot.lane.b32.xlu0 %v1339, 24
      %v1789 = vpop.permute.xlu0 %1788
      %v1791 = vshrl.u32 %v1340, 16
      %v1793 = vshll.u32 %v1340, 16
      %v1795 = vrot.slane %v1793, 1
      %v1796 = vor.u32 %v1791, %v1795
      %v1797 = vsel %vm1346, %v1796, %v1373
      %v1799 = vshll.u32 %v1341, 16
      %v1801 = vrot.slane %v1799, 1
      %v1802 = vsel %vm1346, %v1667, %v1801
      %v1803 = vshrl.u32 %v1341, 16
      %v1805 = vor.u32 %v1803, %v1801
      %v1807 = vshll.u32 %v1342, 16
      %v1809 = vrot.slane %v1807, 1
      %v1810 = vsel %vm1346, %v1805, %v1809
      %v1811 = vshrl.u32 %v1342, 16
      %v1813 = vor.u32 %v1811, %v1809
      %1814 = vrot.lane.b32.xlu0 %v1797, 28
      %v1815 = vpop.permute.xlu0 %1814
      %1816 = vrot.lane.b32.xlu0 %v1382, 28
      %v1817 = vpop.permute.xlu0 %1816
      %1818 = vrot.lane.b32.xlu0 %v1390, 28
      %v1819 = vpop.permute.xlu0 %1818
      %1820 = vrot.lane.b32.xlu0 %v1398, 28
      %v1821 = vpop.permute.xlu0 %1820
      %1822 = vrot.lane.b32.xlu0 %v1406, 28
      %v1823 = vpop.permute.xlu0 %1822
      %1824 = vrot.lane.b32.xlu0 %v1414, 28
      %v1825 = vpop.permute.xlu0 %1824
      %1826 = vrot.lane.b32.xlu0 %v1422, 28
      %v1827 = vpop.permute.xlu0 %1826
      %1828 = vrot.lane.b32.xlu0 %v1430, 28
      %v1829 = vpop.permute.xlu0 %1828
      %1830 = vrot.lane.b32.xlu0 %v1438, 28
      %v1831 = vpop.permute.xlu0 %1830
      %1832 = vrot.lane.b32.xlu0 %v1446, 28
      %v1833 = vpop.permute.xlu0 %1832
      %1834 = vrot.lane.b32.xlu0 %v1454, 28
      %v1835 = vpop.permute.xlu0 %1834
      %1836 = vrot.lane.b32.xlu0 %v1462, 28
      %v1837 = vpop.permute.xlu0 %1836
      %1838 = vrot.lane.b32.xlu0 %v1470, 28
      %v1839 = vpop.permute.xlu0 %1838
      %1840 = vrot.lane.b32.xlu0 %v1664, 28
      %v1841 = vpop.permute.xlu0 %1840
      %1842 = vrot.lane.b32.xlu0 %v1802, 28
      %v1843 = vpop.permute.xlu0 %1842
      %1844 = vrot.lane.b32.xlu0 %v1810, 28
      %v1845 = vpop.permute.xlu0 %1844
      %1846 = vrot.lane.b32.xlu0 %v1813, 28
      %v1847 = vpop.permute.xlu0 %1846
      %v1851 = vrot.slane %v1343, 1
      %v1852 = vsel %vm1533, %v1851, %v1539
      %v1853 = vrot.slane %v1344, 1
      %v1854 = vsel %vm1533, %v1715, %v1853
      %v1855 = vrot.slane %v1345, 1
      %v1856 = vsel %vm1533, %v1853, %v1855
      %1857 = vrot.lane.b32.xlu0 %v1852, 32
      %v1858 = vpop.permute.xlu0 %1857
      %1859 = vrot.lane.b32.xlu0 %v1542, 32
      %v1860 = vpop.permute.xlu0 %1859
      %1861 = vrot.lane.b32.xlu0 %v1544, 32
      %v1862 = vpop.permute.xlu0 %1861
      %1863 = vrot.lane.b32.xlu0 %v1546, 32
      %v1864 = vpop.permute.xlu0 %1863
      %1865 = vrot.lane.b32.xlu0 %v1548, 32
      %v1866 = vpop.permute.xlu0 %1865
      %1867 = vrot.lane.b32.xlu0 %v1550, 32
      %v1868 = vpop.permute.xlu0 %1867
      %1869 = vrot.lane.b32.xlu0 %v1552, 32
      %v1870 = vpop.permute.xlu0 %1869
      %1871 = vrot.lane.b32.xlu0 %v1554, 32
      %v1872 = vpop.permute.xlu0 %1871
      %1873 = vrot.lane.b32.xlu0 %v1556, 32
      %v1874 = vpop.permute.xlu0 %1873
      %1875 = vrot.lane.b32.xlu0 %v1558, 32
      %v1876 = vpop.permute.xlu0 %1875
      %1877 = vrot.lane.b32.xlu0 %v1560, 32
      %v1878 = vpop.permute.xlu0 %1877
      %1879 = vrot.lane.b32.xlu0 %v1562, 32
      %v1880 = vpop.permute.xlu0 %1879
      %1881 = vrot.lane.b32.xlu0 %v1564, 32
      %v1882 = vpop.permute.xlu0 %1881
      %1883 = vrot.lane.b32.xlu0 %v1716, 32
      %v1884 = vpop.permute.xlu0 %1883
      %1885 = vrot.lane.b32.xlu0 %v1854, 32
      %v1886 = vpop.permute.xlu0 %1885
      %1887 = vrot.lane.b32.xlu0 %v1856, 32
      %v1888 = vpop.permute.xlu0 %1887
      %1889 = vrot.lane.b32.xlu0 %v1855, 32
      %v1890 = vpop.permute.xlu0 %1889
      %v1893 = vsel %vm775, %v1277, %v1483
      %v1896 = vsel %vm775, %v1278, %v1485
      %v1899 = vsel %vm775, %v1279, %v1487
      %v1902 = vsel %vm775, %v1280, %v1489
      %v1905 = vsel %vm775, %v1281, %v1491
      %v1908 = vsel %vm775, %v1282, %v1493
      %v1911 = vsel %vm775, %v1283, %v1495
      %v1914 = vsel %vm775, %v1284, %v1497
      %v1917 = vsel %vm775, %v1285, %v1499
      %v1920 = vsel %vm775, %v1286, %v1501
      %v1923 = vsel %vm775, %v1287, %v1503
      %v1926 = vsel %vm775, %v1288, %v1505
      %v1929 = vsel %vm775, %v1289, %v1507
      %v1932 = vsel %vm775, %v1290, %v1509
      %v1935 = vsel %vm775, %v1291, %v1511
      %v1938 = vsel %vm775, %v1292, %v1513
      %v1941 = vsel %vm775, %v1293, %v1515
      %vm1942 = vcmask 64512
      %v1944 = vsel %vm1942, %v1893, %v1568
      %v1946 = vsel %vm1942, %v1896, %v1570
      %v1948 = vsel %vm1942, %v1899, %v1572
      %v1950 = vsel %vm1942, %v1902, %v1574
      %v1952 = vsel %vm1942, %v1905, %v1576
      %v1954 = vsel %vm1942, %v1908, %v1578
      %v1956 = vsel %vm1942, %v1911, %v1580
      %v1958 = vsel %vm1942, %v1914, %v1582
      %v1960 = vsel %vm1942, %v1917, %v1584
      %v1962 = vsel %vm1942, %v1920, %v1586
      %v1964 = vsel %vm1942, %v1923, %v1588
      %v1966 = vsel %vm1942, %v1926, %v1590
      %v1968 = vsel %vm1942, %v1929, %v1592
      %v1970 = vsel %vm1942, %v1932, %v1594
      %v1972 = vsel %vm1942, %v1935, %v1596
      %v1974 = vsel %vm1942, %v1938, %v1598
      %v1976 = vsel %vm1942, %v1941, %v1600
      %vm1977 = vcmask 97280
      %v1979 = vsel %vm1977, %v1944, %v1619
      %v1981 = vsel %vm1977, %v1946, %v1621
      %v1983 = vsel %vm1977, %v1948, %v1623
      %v1985 = vsel %vm1977, %v1950, %v1625
      %v1987 = vsel %vm1977, %v1952, %v1627
      %v1989 = vsel %vm1977, %v1954, %v1629
      %v1991 = vsel %vm1977, %v1956, %v1631
      %v1993 = vsel %vm1977, %v1958, %v1633
      %v1995 = vsel %vm1977, %v1960, %v1635
      %v1997 = vsel %vm1977, %v1962, %v1637
      %v1999 = vsel %vm1977, %v1964, %v1639
      %v2001 = vsel %vm1977, %v1966, %v1641
      %v2003 = vsel %vm1977, %v1968, %v1643
      %v2005 = vsel %vm1977, %v1970, %v1645
      %v2007 = vsel %vm1977, %v1972, %v1647
      %v2009 = vsel %vm1977, %v1974, %v1649
      %v2011 = vsel %vm1977, %v1976, %v1651
      %vm2012 = vcmask 130048
      %v2014 = vsel %vm2012, %v1979, %v1677
      %v2016 = vsel %vm2012, %v1981, %v1679
      %v2018 = vsel %vm2012, %v1983, %v1681
      %v2020 = vsel %vm2012, %v1985, %v1683
      %v2022 = vsel %vm2012, %v1987, %v1685
      %v2024 = vsel %vm2012, %v1989, %v1687
      %v2026 = vsel %vm2012, %v1991, %v1689
      %v2028 = vsel %vm2012, %v1993, %v1691
      %v2030 = vsel %vm2012, %v1995, %v1693
      %v2032 = vsel %vm2012, %v1997, %v1695
      %v2034 = vsel %vm2012, %v1999, %v1697
      %v2036 = vsel %vm2012, %v2001, %v1699
      %v2038 = vsel %vm2012, %v2003, %v1701
      %v2040 = vsel %vm2012, %v2005, %v1703
      %v2042 = vsel %vm2012, %v2007, %v1705
      %v2044 = vsel %vm2012, %v2009, %v1707
      %v2046 = vsel %vm2012, %v2011, %v1709
      %vm2047 = vcmask 162816
      %v2049 = vsel %vm2047, %v2014, %v1720
      %v2051 = vsel %vm2047, %v2016, %v1722
      %v2053 = vsel %vm2047, %v2018, %v1724
      %v2055 = vsel %vm2047, %v2020, %v1726
      %v2057 = vsel %vm2047, %v2022, %v1728
      %v2059 = vsel %vm2047, %v2024, %v1730
      %v2061 = vsel %vm2047, %v2026, %v1732
      %v2063 = vsel %vm2047, %v2028, %v1734
      %v2065 = vsel %vm2047, %v2030, %v1736
      %v2067 = vsel %vm2047, %v2032, %v1738
      %v2069 = vsel %vm2047, %v2034, %v1740
      %v2071 = vsel %vm2047, %v2036, %v1742
      %v2073 = vsel %vm2047, %v2038, %v1744
      %v2075 = vsel %vm2047, %v2040, %v1746
      %v2077 = vsel %vm2047, %v2042, %v1748
      %v2079 = vsel %vm2047, %v2044, %v1750
      %v2081 = vsel %vm2047, %v2046, %v1752
      %vm2082 = vcmask 195584
      %v2084 = vsel %vm2082, %v2049, %v1757
      %v2086 = vsel %vm2082, %v2051, %v1759
      %v2088 = vsel %vm2082, %v2053, %v1761
      %v2090 = vsel %vm2082, %v2055, %v1763
      %v2092 = vsel %vm2082, %v2057, %v1765
      %v2094 = vsel %vm2082, %v2059, %v1767
      %v2096 = vsel %vm2082, %v2061, %v1769
      %v2098 = vsel %vm2082, %v2063, %v1771
      %v2100 = vsel %vm2082, %v2065, %v1773
      %v2102 = vsel %vm2082, %v2067, %v1775
      %v2104 = vsel %vm2082, %v2069, %v1777
      %v2106 = vsel %vm2082, %v2071, %v1779
      %v2108 = vsel %vm2082, %v2073, %v1781
      %v2110 = vsel %vm2082, %v2075, %v1783
      %v2112 = vsel %vm2082, %v2077, %v1785
      %v2114 = vsel %vm2082, %v2079, %v1787
      %v2116 = vsel %vm2082, %v2081, %v1789
      %vm2117 = vcmask 228352
      %v2119 = vsel %vm2117, %v2084, %v1815
      %v2121 = vsel %vm2117, %v2086, %v1817
      %v2123 = vsel %vm2117, %v2088, %v1819
      %v2125 = vsel %vm2117, %v2090, %v1821
      %v2127 = vsel %vm2117, %v2092, %v1823
      %v2129 = vsel %vm2117, %v2094, %v1825
      %v2131 = vsel %vm2117, %v2096, %v1827
      %v2133 = vsel %vm2117, %v2098, %v1829
      %v2135 = vsel %vm2117, %v2100, %v1831
      %v2137 = vsel %vm2117, %v2102, %v1833
      %v2139 = vsel %vm2117, %v2104, %v1835
      %v2141 = vsel %vm2117, %v2106, %v1837
      %v2143 = vsel %vm2117, %v2108, %v1839
      %v2145 = vsel %vm2117, %v2110, %v1841
      %v2147 = vsel %vm2117, %v2112, %v1843
      %v2149 = vsel %vm2117, %v2114, %v1845
      %v2151 = vsel %vm2117, %v2116, %v1847
      %vm2152 = vcmask 261120
      %v2154 = vsel %vm2152, %v2119, %v1858
      %v2156 = vsel %vm2152, %v2121, %v1860
      %v2158 = vsel %vm2152, %v2123, %v1862
      %v2160 = vsel %vm2152, %v2125, %v1864
      %v2162 = vsel %vm2152, %v2127, %v1866
      %v2164 = vsel %vm2152, %v2129, %v1868
      %v2166 = vsel %vm2152, %v2131, %v1870
      %v2168 = vsel %vm2152, %v2133, %v1872
      %v2170 = vsel %vm2152, %v2135, %v1874
      %v2172 = vsel %vm2152, %v2137, %v1876
      %v2174 = vsel %vm2152, %v2139, %v1878
      %v2176 = vsel %vm2152, %v2141, %v1880
      %v2178 = vsel %vm2152, %v2143, %v1882
      %v2180 = vsel %vm2152, %v2145, %v1884
      %v2182 = vsel %vm2152, %v2147, %v1886
      %v2184 = vsel %vm2152, %v2149, %v1888
      %v2186 = vsel %vm2152, %v2151, %v1890
      %v2187 = vld [vmem:[%s1] sm:$0xf]
      %v2188 = vld [vmem:[%s1 + $0x4] sm:$0xf]
      %v2189 = vld [vmem:[%s1 + $0x8] sm:$0xf]
      %v2190 = vld [vmem:[%s1 + $0xc] sm:$0xf]
      %v2191 = vld [vmem:[%s1 + $0x10] sm:$0x3]
      %v2193 = vlaneseq
      %v2194 = vshrl.u32 %v2193, 7
      %v2195 = vsub.s32 0, %v2194
      %v2196 = vrot.slane %v1276, %v2195
      %vm2198 = vsmask.f32 4352
      %v2199 = vshrl.u32 %v2154, 16
      %v2201 = vrot.slane %v2199, 3
      %v2202 = vshll.u32 %v2154, 16
      %v2204 = vrot.slane %v2202, 4
      %v2205 = vor.u32 %v2201, %v2204
      %v2206 = vshrl.u32 %v2156, 16
      %v2208 = vrot.slane %v2206, 3
      %v2209 = vshll.u32 %v2156, 16
      %v2211 = vrot.slane %v2209, 4
      %v2212 = vor.u32 %v2208, %v2211
      %v2213 = vsel %vm2198, %v2205, %v2212
      %v2214 = vshrl.u32 %v2158, 16
      %v2216 = vrot.slane %v2214, 3
      %v2217 = vshll.u32 %v2158, 16
      %v2219 = vrot.slane %v2217, 4
      %v2220 = vor.u32 %v2216, %v2219
      %v2221 = vsel %vm2198, %v2212, %v2220
      %v2222 = vshrl.u32 %v2160, 16
      %v2224 = vrot.slane %v2222, 3
      %v2225 = vshll.u32 %v2160, 16
      %v2227 = vrot.slane %v2225, 4
      %v2228 = vor.u32 %v2224, %v2227
      %v2229 = vsel %vm2198, %v2220, %v2228
      %v2230 = vshrl.u32 %v2162, 16
      %v2232 = vrot.slane %v2230, 3
      %v2233 = vshll.u32 %v2162, 16
      %v2235 = vrot.slane %v2233, 4
      %v2236 = vor.u32 %v2232, %v2235
      %v2237 = vsel %vm2198, %v2228, %v2236
      %v2238 = vshrl.u32 %v2164, 16
      %v2240 = vrot.slane %v2238, 3
      %v2241 = vshll.u32 %v2164, 16
      %v2243 = vrot.slane %v2241, 4
      %v2244 = vor.u32 %v2240, %v2243
      %v2245 = vsel %vm2198, %v2236, %v2244
      %v2246 = vshrl.u32 %v2166, 16
      %v2248 = vrot.slane %v2246, 3
      %v2249 = vshll.u32 %v2166, 16
      %v2251 = vrot.slane %v2249, 4
      %v2252 = vor.u32 %v2248, %v2251
      %v2253 = vsel %vm2198, %v2244, %v2252
      %v2254 = vshrl.u32 %v2168, 16
      %v2256 = vrot.slane %v2254, 3
      %v2257 = vshll.u32 %v2168, 16
      %v2259 = vrot.slane %v2257, 4
      %v2260 = vor.u32 %v2256, %v2259
      %v2261 = vsel %vm2198, %v2252, %v2260
      %v2262 = vshrl.u32 %v2170, 16
      %v2264 = vrot.slane %v2262, 3
      %v2265 = vshll.u32 %v2170, 16
      %v2267 = vrot.slane %v2265, 4
      %v2268 = vor.u32 %v2264, %v2267
      %v2269 = vsel %vm2198, %v2260, %v2268
      %v2270 = vshrl.u32 %v2172, 16
      %v2272 = vrot.slane %v2270, 3
      %v2273 = vshll.u32 %v2172, 16
      %v2275 = vrot.slane %v2273, 4
      %v2276 = vor.u32 %v2272, %v2275
      %v2277 = vsel %vm2198, %v2268, %v2276
      %v2278 = vshrl.u32 %v2174, 16
      %v2280 = vrot.slane %v2278, 3
      %v2281 = vshll.u32 %v2174, 16
      %v2283 = vrot.slane %v2281, 4
      %v2284 = vor.u32 %v2280, %v2283
      %v2285 = vsel %vm2198, %v2276, %v2284
      %v2286 = vshrl.u32 %v2176, 16
      %v2288 = vrot.slane %v2286, 3
      %v2289 = vshll.u32 %v2176, 16
      %v2291 = vrot.slane %v2289, 4
      %v2292 = vor.u32 %v2288, %v2291
      %v2293 = vsel %vm2198, %v2284, %v2292
      %v2294 = vshrl.u32 %v2178, 16
      %v2296 = vrot.slane %v2294, 3
      %v2297 = vshll.u32 %v2178, 16
      %v2299 = vrot.slane %v2297, 4
      %v2300 = vor.u32 %v2296, %v2299
      %v2301 = vsel %vm2198, %v2292, %v2300
      %v2302 = vshrl.u32 %v2180, 16
      %v2304 = vrot.slane %v2302, 3
      %v2305 = vshll.u32 %v2180, 16
      %v2307 = vrot.slane %v2305, 4
      %v2308 = vor.u32 %v2304, %v2307
      %v2309 = vsel %vm2198, %v2300, %v2308
      %v2310 = vshrl.u32 %v2182, 16
      %v2312 = vrot.slane %v2310, 3
      %v2313 = vshll.u32 %v2182, 16
      %v2315 = vrot.slane %v2313, 4
      %v2316 = vor.u32 %v2312, %v2315
      %v2317 = vsel %vm2198, %v2308, %v2316
      %v2318 = vshrl.u32 %v2184, 16
      %v2320 = vrot.slane %v2318, 3
      %v2321 = vshll.u32 %v2184, 16
      %v2323 = vrot.slane %v2321, 4
      %v2324 = vor.u32 %v2320, %v2323
      %v2325 = vsel %vm2198, %v2316, %v2324
      %v2326 = vshrl.u32 %v2186, 16
      %v2328 = vrot.slane %v2326, 3
      %v2329 = vshll.u32 %v2186, 16
      %v2331 = vrot.slane %v2329, 4
      %v2332 = vor.u32 %v2328, %v2331
      %v2333 = vsel %vm2198, %v2324, %v2332
      %v2339 = vunpack.c.l.b16 %v2187
      %v2340 = vunpack.c.l.b16 %v2188
      %v2341 = vunpack.c.l.b16 %v2189
      %v2342 = vunpack.c.l.b16 %v2190
      %v2343 = vunpack.c.l.b16 %v2191
      %v2344 = vpack.c.b16 %v2340, %v2339
      %v2345 = vpack.c.b16 %v2342, %v2341
      %v2346 = vpack.c.b16 %v2343, %v2343
      %vm2349 = vcmask 293888
      %v2351 = vsel %vm2349, %v2213, 0
      %v2354 = vsel %vm2349, %v2221, 0
      %v2357 = vsel %vm2349, %v2229, 0
      %v2360 = vsel %vm2349, %v2237, 0
      %v2363 = vsel %vm2349, %v2245, 0
      %v2366 = vsel %vm2349, %v2253, 0
      %v2369 = vsel %vm2349, %v2261, 0
      %v2372 = vsel %vm2349, %v2269, 0
      %v2375 = vsel %vm2349, %v2277, 0
      %v2378 = vsel %vm2349, %v2285, 0
      %v2381 = vsel %vm2349, %v2293, 0
      %v2384 = vsel %vm2349, %v2301, 0
      %v2387 = vsel %vm2349, %v2309, 0
      %v2390 = vsel %vm2349, %v2317, 0
      %v2393 = vsel %vm2349, %v2325, 0
      %v2396 = vsel %vm2349, %v2333, 0
      %vm2398 = vcmask 1041408
      %v2400 = vsel %vm2398, %v2346, 0
      %2402 = vmatprep.subr.bf16.mxu0 0
      %2403 = vmatpush1.bf16.msra.mxu0 %v2344
      %2404 = vmatprep.subr.bf16.mxu0 0
      %2405 = vmatpush1.bf16.msra.mxu0 %v2345
      %2406 = vmatprep.subr.bf16.mxu0 0
      %2407 = vmatpush1.bf16.msra.mxu0 %v2400
      %2408 = vmatprep.subr.bf16.mxu0 0
      %2409 = vmatpush1.bf16.msra.mxu0 0
      %2410 = vmatprep.subr.bf16.mxu0 0
      %2411 = vmatpush1.bf16.msra.mxu0 0
      %2412 = vmatprep.subr.bf16.mxu0 0
      %2413 = vmatpush1.bf16.msra.mxu0 0
      %2414 = vmatprep.subr.bf16.mxu0 0
      %2415 = vmatpush1.bf16.msra.mxu0 0
      %2416 = vmatprep.subr.bf16.mxu0 0
      %2417 = vmatpush1.bf16.msra.mxu0 0
      %2418 = vmatprep.subr.bf16.mxu0 0
      %2419 = vmatpush1.bf16.msra.mxu0 0
      %2420 = vmatprep.subr.bf16.mxu0 0
      %2421 = vmatpush1.bf16.msra.mxu0 0
      %2422 = vmatprep.subr.bf16.mxu0 0
      %2423 = vmatpush1.bf16.msra.mxu0 0
      %2424 = vmatprep.subr.bf16.mxu0 0
      %2425 = vmatpush1.bf16.msra.mxu0 0
      %2426 = vmatprep.subr.bf16.mxu0 0
      %2427 = vmatpush1.bf16.msra.mxu0 0
      %2428 = vmatprep.subr.bf16.mxu0 0
      %2429 = vmatpush1.bf16.msra.mxu0 0
      %2430 = vmatprep.subr.bf16.mxu0 0
      %2431 = vmatpush1.bf16.msra.mxu0 0
      %2432 = vmatprep.subr.bf16.mxu0 0
      %2433 = vmatpush1.bf16.msra.mxu0 0
      %2434 = vmatprep.mubr.bf16.mxu0 0
      %2435 = vmatmul.mubr.bf16.gmra.mrb[0].mxu0 %v2351
      %v2436 = vpop.f32.mrb[0].mxu0
      %v2437 = vadd.f32 %v2196, %v2436
      %v2438 = vpop.f32.mrb[0].mxu0
      %v2439 = vpop.f32.mrb[0].mxu0
      %v2440 = vadd.f32 %v2196, %v2439
      %v2441 = vpop.f32.mrb[0].mxu0
      %2442 = vmatprep.mubr.bf16.mxu0 0
      %2443 = vmatmul.mubr.bf16.gmra.mrb[0].mxu0 %v2354
      %v2444 = vpop.f32.mrb[0].mxu0
      %v2445 = vadd.f32 %v2196, %v2444
      %v2446 = vpop.f32.mrb[0].mxu0
      %v2447 = vpop.f32.mrb[0].mxu0
      %v2448 = vadd.f32 %v2196, %v2447
      %v2449 = vpop.f32.mrb[0].mxu0
      %2450 = vmatprep.mubr.bf16.mxu0 0
      %2451 = vmatmul.mubr.bf16.gmra.mrb[0].mxu0 %v2357
      %v2452 = vpop.f32.mrb[0].mxu0
      %v2453 = vadd.f32 %v2196, %v2452
      %v2454 = vpop.f32.mrb[0].mxu0
      %v2455 = vpop.f32.mrb[0].mxu0
      %v2456 = vadd.f32 %v2196, %v2455
      %v2457 = vpop.f32.mrb[0].mxu0
      %2458 = vmatprep.mubr.bf16.mxu0 0
      %2459 = vmatmul.mubr.bf16.gmra.mrb[0].mxu0 %v2360
      %v2460 = vpop.f32.mrb[0].mxu0
      %v2461 = vadd.f32 %v2196, %v2460
      %v2462 = vpop.f32.mrb[0].mxu0
      %v2463 = vpop.f32.mrb[0].mxu0
      %v2464 = vadd.f32 %v2196, %v2463
      %v2465 = vpop.f32.mrb[0].mxu0
      %2466 = vmatprep.mubr.bf16.mxu0 0
      %2467 = vmatmul.mubr.bf16.gmra.mrb[0].mxu0 %v2363
      %v2468 = vpop.f32.mrb[0].mxu0
      %v2469 = vadd.f32 %v2196, %v2468
      %v2470 = vpop.f32.mrb[0].mxu0
      %v2471 = vpop.f32.mrb[0].mxu0
      %v2472 = vadd.f32 %v2196, %v2471
      %v2473 = vpop.f32.mrb[0].mxu0
      %2474 = vmatprep.mubr.bf16.mxu0 0
      %2475 = vmatmul.mubr.bf16.gmra.mrb[0].mxu0 %v2366
      %v2476 = vpop.f32.mrb[0].mxu0
      %v2477 = vadd.f32 %v2196, %v2476
      %v2478 = vpop.f32.mrb[0].mxu0
      %v2479 = vpop.f32.mrb[0].mxu0
      %v2480 = vadd.f32 %v2196, %v2479
      %v2481 = vpop.f32.mrb[0].mxu0
      %2482 = vmatprep.mubr.bf16.mxu0 0
      %2483 = vmatmul.mubr.bf16.gmra.mrb[0].mxu0 %v2369
      %v2484 = vpop.f32.mrb[0].mxu0
      %v2485 = vadd.f32 %v2196, %v2484
      %v2486 = vpop.f32.mrb[0].mxu0
      %v2487 = vpop.f32.mrb[0].mxu0
      %v2488 = vadd.f32 %v2196, %v2487
      %v2489 = vpop.f32.mrb[0].mxu0
      %2490 = vmatprep.mubr.bf16.mxu0 0
      %2491 = vmatmul.mubr.bf16.gmra.mrb[0].mxu0 %v2372
      %v2492 = vpop.f32.mrb[0].mxu0
      %v2493 = vadd.f32 %v2196, %v2492
      %v2494 = vpop.f32.mrb[0].mxu0
      %v2495 = vpop.f32.mrb[0].mxu0
      %v2496 = vadd.f32 %v2196, %v2495
      %v2497 = vpop.f32.mrb[0].mxu0
      %2498 = vmatprep.mubr.bf16.mxu0 0
      %2499 = vmatmul.mubr.bf16.gmra.mrb[0].mxu0 %v2375
      %v2500 = vpop.f32.mrb[0].mxu0
      %v2501 = vadd.f32 %v2196, %v2500
      %v2502 = vpop.f32.mrb[0].mxu0
      %v2503 = vpop.f32.mrb[0].mxu0
      %v2504 = vadd.f32 %v2196, %v2503
      %v2505 = vpop.f32.mrb[0].mxu0
      %2506 = vmatprep.mubr.bf16.mxu0 0
      %2507 = vmatmul.mubr.bf16.gmra.mrb[0].mxu0 %v2378
      %v2508 = vpop.f32.mrb[0].mxu0
      %v2509 = vadd.f32 %v2196, %v2508
      %v2510 = vpop.f32.mrb[0].mxu0
      %v2511 = vpop.f32.mrb[0].mxu0
      %v2512 = vadd.f32 %v2196, %v2511
      %v2513 = vpop.f32.mrb[0].mxu0
      %2514 = vmatprep.mubr.bf16.mxu0 0
      %2515 = vmatmul.mubr.bf16.gmra.mrb[0].mxu0 %v2381
      %v2516 = vpop.f32.mrb[0].mxu0
      %v2517 = vadd.f32 %v2196, %v2516
      %v2518 = vpop.f32.mrb[0].mxu0
      %v2519 = vpop.f32.mrb[0].mxu0
      %v2520 = vadd.f32 %v2196, %v2519
      %v2521 = vpop.f32.mrb[0].mxu0
      %2522 = vmatprep.mubr.bf16.mxu0 0
      %2523 = vmatmul.mubr.bf16.gmra.mrb[0].mxu0 %v2384
      %v2524 = vpop.f32.mrb[0].mxu0
      %v2525 = vadd.f32 %v2196, %v2524
      %v2526 = vpop.f32.mrb[0].mxu0
      %v2527 = vpop.f32.mrb[0].mxu0
      %v2528 = vadd.f32 %v2196, %v2527
      %v2529 = vpop.f32.mrb[0].mxu0
      %2530 = vmatprep.mubr.bf16.mxu0 0
      %2531 = vmatmul.mubr.bf16.gmra.mrb[0].mxu0 %v2387
      %v2532 = vpop.f32.mrb[0].mxu0
      %v2533 = vadd.f32 %v2196, %v2532
      %v2534 = vpop.f32.mrb[0].mxu0
      %v2535 = vpop.f32.mrb[0].mxu0
      %v2536 = vadd.f32 %v2196, %v2535
      %v2537 = vpop.f32.mrb[0].mxu0
      %2538 = vmatprep.mubr.bf16.mxu0 0
      %2539 = vmatmul.mubr.bf16.gmra.mrb[0].mxu0 %v2390
      %v2540 = vpop.f32.mrb[0].mxu0
      %v2541 = vadd.f32 %v2196, %v2540
      %v2542 = vpop.f32.mrb[0].mxu0
      %v2543 = vpop.f32.mrb[0].mxu0
      %v2544 = vadd.f32 %v2196, %v2543
      %v2545 = vpop.f32.mrb[0].mxu0
      %2546 = vmatprep.mubr.bf16.mxu0 0
      %2547 = vmatmul.mubr.bf16.gmra.mrb[0].mxu0 %v2393
      %v2548 = vpop.f32.mrb[0].mxu0
      %v2549 = vadd.f32 %v2196, %v2548
      %v2550 = vpop.f32.mrb[0].mxu0
      %v2551 = vpop.f32.mrb[0].mxu0
      %v2552 = vadd.f32 %v2196, %v2551
      %v2553 = vpop.f32.mrb[0].mxu0
      %2554 = vmatprep.mubr.bf16.mxu0 0
      %2555 = vmatmul.mubr.bf16.gmra.mrb[0].mxu0 %v2396
      %v2556 = vpop.f32.mrb[0].mxu0
      %v2557 = vadd.f32 %v2196, %v2556
      %v2558 = vpop.f32.mrb[0].mxu0
      %v2559 = vpop.f32.mrb[0].mxu0
      %v2560 = vadd.f32 %v2196, %v2559
      %v2561 = vpop.f32.mrb[0].mxu0
      %2562 = vdwg.mxu0
      %vm2563 = vcmask 523264
      %v2564 = vsel %vm2563, %v2437, 0.0
      %v2565 = vsel %vm2563, %v2440, 0.0
      %v2566 = vadd.f32 %v2564, %v2565
      %v2567 = vsel %vm2563, %v2445, 0.0
      %v2568 = vadd.f32 %v2566, %v2567
      %v2569 = vsel %vm2563, %v2448, 0.0
      %v2570 = vadd.f32 %v2568, %v2569
      %v2571 = vsel %vm2563, %v2453, 0.0
      %v2572 = vadd.f32 %v2570, %v2571
      %v2573 = vsel %vm2563, %v2456, 0.0
      %v2574 = vadd.f32 %v2572, %v2573
      %v2575 = vsel %vm2563, %v2461, 0.0
      %v2576 = vadd.f32 %v2574, %v2575
      %v2577 = vsel %vm2563, %v2464, 0.0
      %v2578 = vadd.f32 %v2576, %v2577
      %v2579 = vsel %vm2563, %v2469, 0.0
      %v2580 = vadd.f32 %v2578, %v2579
      %v2581 = vsel %vm2563, %v2472, 0.0
      %v2582 = vadd.f32 %v2580, %v2581
      %v2583 = vsel %vm2563, %v2477, 0.0
      %v2584 = vadd.f32 %v2582, %v2583
      %v2585 = vsel %vm2563, %v2480, 0.0
      %v2586 = vadd.f32 %v2584, %v2585
      %v2587 = vsel %vm2563, %v2485, 0.0
      %v2588 = vadd.f32 %v2586, %v2587
      %v2589 = vsel %vm2563, %v2488, 0.0
      %v2590 = vadd.f32 %v2588, %v2589
      %v2591 = vsel %vm2563, %v2493, 0.0
      %v2592 = vadd.f32 %v2590, %v2591
      %v2593 = vsel %vm2563, %v2496, 0.0
      %v2594 = vadd.f32 %v2592, %v2593
      %v2595 = vsel %vm2563, %v2501, 0.0
      %v2596 = vadd.f32 %v2594, %v2595
      %v2597 = vsel %vm2563, %v2504, 0.0
      %v2598 = vadd.f32 %v2596, %v2597
      %v2599 = vsel %vm2563, %v2509, 0.0
      %v2600 = vadd.f32 %v2598, %v2599
      %v2601 = vsel %vm2563, %v2512, 0.0
      %v2602 = vadd.f32 %v2600, %v2601
      %v2603 = vsel %vm2563, %v2517, 0.0
      %v2604 = vadd.f32 %v2602, %v2603
      %v2605 = vsel %vm2563, %v2520, 0.0
      %v2606 = vadd.f32 %v2604, %v2605
      %v2607 = vsel %vm2563, %v2525, 0.0
      %v2608 = vadd.f32 %v2606, %v2607
      %v2609 = vsel %vm2563, %v2528, 0.0
      %v2610 = vadd.f32 %v2608, %v2609
      %v2611 = vsel %vm2563, %v2533, 0.0
      %v2612 = vadd.f32 %v2610, %v2611
      %v2613 = vsel %vm2563, %v2536, 0.0
      %v2614 = vadd.f32 %v2612, %v2613
      %v2615 = vsel %vm2563, %v2541, 0.0
      %v2616 = vadd.f32 %v2614, %v2615
      %v2617 = vsel %vm2563, %v2544, 0.0
      %v2618 = vadd.f32 %v2616, %v2617
      %v2619 = vsel %vm2563, %v2549, 0.0
      %v2620 = vadd.f32 %v2618, %v2619
      %v2621 = vsel %vm2563, %v2552, 0.0
      %v2622 = vadd.f32 %v2620, %v2621
      %v2623 = vsel %vm2563, %v2557, 0.0
      %v2624 = vadd.f32 %v2622, %v2623
      %v2625 = vsel %vm2563, %v2560, 0.0
      %v2626 = vadd.f32 %v2624, %v2625
      %v2627 = vrot.slane %v2626, 4
      %v2628 = vadd.f32 %v2626, %v2627
      %v2629 = vrot.slane %v2628, 2
      %v2630 = vadd.f32 %v2628, %v2629
      %v2631 = vrot.slane %v2630, 1
      %v2632 = vadd.f32 %v2630, %v2631
      %v2633 = vmul.f32 %v2437, %v2437
      %v2634 = vmul.f32 %v2440, %v2440
      %v2635 = vmul.f32 %v2445, %v2445
      %v2636 = vmul.f32 %v2448, %v2448
      %v2637 = vmul.f32 %v2453, %v2453
      %v2638 = vmul.f32 %v2456, %v2456
      %v2639 = vmul.f32 %v2461, %v2461
      %v2640 = vmul.f32 %v2464, %v2464
      %v2641 = vmul.f32 %v2469, %v2469
      %v2642 = vmul.f32 %v2472, %v2472
      %v2643 = vmul.f32 %v2477, %v2477
      %v2644 = vmul.f32 %v2480, %v2480
      %v2645 = vmul.f32 %v2485, %v2485
      %v2646 = vmul.f32 %v2488, %v2488
      %v2647 = vmul.f32 %v2493, %v2493
      %v2648 = vmul.f32 %v2496, %v2496
      %v2649 = vmul.f32 %v2501, %v2501
      %v2650 = vmul.f32 %v2504, %v2504
      %v2651 = vmul.f32 %v2509, %v2509
      %v2652 = vmul.f32 %v2512, %v2512
      %v2653 = vmul.f32 %v2517, %v2517
      %v2654 = vmul.f32 %v2520, %v2520
      %v2655 = vmul.f32 %v2525, %v2525
      %v2656 = vmul.f32 %v2528, %v2528
      %v2657 = vmul.f32 %v2533, %v2533
      %v2658 = vmul.f32 %v2536, %v2536
      %v2659 = vmul.f32 %v2541, %v2541
      %v2660 = vmul.f32 %v2544, %v2544
      %v2661 = vmul.f32 %v2549, %v2549
      %v2662 = vmul.f32 %v2552, %v2552
      %v2663 = vmul.f32 %v2557, %v2557
      %v2664 = vmul.f32 %v2560, %v2560
      %v2665 = vsel %vm2563, %v2633, 0.0
      %v2666 = vsel %vm2563, %v2634, 0.0
      %v2667 = vadd.f32 %v2665, %v2666
      %v2668 = vsel %vm2563, %v2635, 0.0
      %v2669 = vadd.f32 %v2667, %v2668
      %v2670 = vsel %vm2563, %v2636, 0.0
      %v2671 = vadd.f32 %v2669, %v2670
      %v2672 = vsel %vm2563, %v2637, 0.0
      %v2673 = vadd.f32 %v2671, %v2672
      %v2674 = vsel %vm2563, %v2638, 0.0
      %v2675 = vadd.f32 %v2673, %v2674
      %v2676 = vsel %vm2563, %v2639, 0.0
      %v2677 = vadd.f32 %v2675, %v2676
      %v2678 = vsel %vm2563, %v2640, 0.0
      %v2679 = vadd.f32 %v2677, %v2678
      %v2680 = vsel %vm2563, %v2641, 0.0
      %v2681 = vadd.f32 %v2679, %v2680
      %v2682 = vsel %vm2563, %v2642, 0.0
      %v2683 = vadd.f32 %v2681, %v2682
      %v2684 = vsel %vm2563, %v2643, 0.0
      %v2685 = vadd.f32 %v2683, %v2684
      %v2686 = vsel %vm2563, %v2644, 0.0
      %v2687 = vadd.f32 %v2685, %v2686
      %v2688 = vsel %vm2563, %v2645, 0.0
      %v2689 = vadd.f32 %v2687, %v2688
      %v2690 = vsel %vm2563, %v2646, 0.0
      %v2691 = vadd.f32 %v2689, %v2690
      %v2692 = vsel %vm2563, %v2647, 0.0
      %v2693 = vadd.f32 %v2691, %v2692
      %v2694 = vsel %vm2563, %v2648, 0.0
      %v2695 = vadd.f32 %v2693, %v2694
      %v2696 = vsel %vm2563, %v2649, 0.0
      %v2697 = vadd.f32 %v2695, %v2696
      %v2698 = vsel %vm2563, %v2650, 0.0
      %v2699 = vadd.f32 %v2697, %v2698
      %v2700 = vsel %vm2563, %v2651, 0.0
      %v2701 = vadd.f32 %v2699, %v2700
      %v2702 = vsel %vm2563, %v2652, 0.0
      %v2703 = vadd.f32 %v2701, %v2702
      %v2704 = vsel %vm2563, %v2653, 0.0
      %v2705 = vadd.f32 %v2703, %v2704
      %v2706 = vsel %vm2563, %v2654, 0.0
      %v2707 = vadd.f32 %v2705, %v2706
      %v2708 = vsel %vm2563, %v2655, 0.0
      %v2709 = vadd.f32 %v2707, %v2708
      %v2710 = vsel %vm2563, %v2656, 0.0
      %v2711 = vadd.f32 %v2709, %v2710
      %v2712 = vsel %vm2563, %v2657, 0.0
      %v2713 = vadd.f32 %v2711, %v2712
      %v2714 = vsel %vm2563, %v2658, 0.0
      %v2715 = vadd.f32 %v2713, %v2714
      %v2716 = vsel %vm2563, %v2659, 0.0
      %v2717 = vadd.f32 %v2715, %v2716
      %v2718 = vsel %vm2563, %v2660, 0.0
      %v2719 = vadd.f32 %v2717, %v2718
      %v2720 = vsel %vm2563, %v2661, 0.0
      %v2721 = vadd.f32 %v2719, %v2720
      %v2722 = vsel %vm2563, %v2662, 0.0
      %v2723 = vadd.f32 %v2721, %v2722
      %v2724 = vsel %vm2563, %v2663, 0.0
      %v2725 = vadd.f32 %v2723, %v2724
      %v2726 = vsel %vm2563, %v2664, 0.0
      %v2727 = vadd.f32 %v2725, %v2726
      %v2728 = vrot.slane %v2727, 4
      %v2729 = vadd.f32 %v2727, %v2728
      %v2730 = vrot.slane %v2729, 2
      %v2731 = vadd.f32 %v2729, %v2730
      %v2732 = vrot.slane %v2731, 1
      %v2733 = vadd.f32 %v2731, %v2732
      %v2734 = vmul.f32 %v2632, 0.00390625
      %v2735 = vmul.f32 %v2733, 0.00390625
      %v2736 = vmul.f32 %v2734, %v2734
      %v2737 = vsub.f32 %v2735, %v2736
      %v2738 = vmax.f32 %v2737, 0.0
      %v2739 = vsub.f32 %v2437, %v2734
      %v2740 = vsub.f32 %v2440, %v2734
      %v2741 = vsub.f32 %v2445, %v2734
      %v2742 = vsub.f32 %v2448, %v2734
      %v2743 = vsub.f32 %v2453, %v2734
      %v2744 = vsub.f32 %v2456, %v2734
      %v2745 = vsub.f32 %v2461, %v2734
      %v2746 = vsub.f32 %v2464, %v2734
      %v2747 = vsub.f32 %v2469, %v2734
      %v2748 = vsub.f32 %v2472, %v2734
      %v2749 = vsub.f32 %v2477, %v2734
      %v2750 = vsub.f32 %v2480, %v2734
      %v2751 = vsub.f32 %v2485, %v2734
      %v2752 = vsub.f32 %v2488, %v2734
      %v2753 = vsub.f32 %v2493, %v2734
      %v2754 = vsub.f32 %v2496, %v2734
      %v2755 = vsub.f32 %v2501, %v2734
      %v2756 = vsub.f32 %v2504, %v2734
      %v2757 = vsub.f32 %v2509, %v2734
      %v2758 = vsub.f32 %v2512, %v2734
      %v2759 = vsub.f32 %v2517, %v2734
      %v2760 = vsub.f32 %v2520, %v2734
      %v2761 = vsub.f32 %v2525, %v2734
      %v2762 = vsub.f32 %v2528, %v2734
      %v2763 = vsub.f32 %v2533, %v2734
      %v2764 = vsub.f32 %v2536, %v2734
      %v2765 = vsub.f32 %v2541, %v2734
      %v2766 = vsub.f32 %v2544, %v2734
      %v2767 = vsub.f32 %v2549, %v2734
      %v2768 = vsub.f32 %v2552, %v2734
      %v2769 = vsub.f32 %v2557, %v2734
      %v2770 = vsub.f32 %v2560, %v2734
      %v2771 = vadd.f32 %v2738, 1e-05
      %v2772 = vrsqrt.pop %v2771
      %v2773 = vmul.f32 %v2739, %v2772
      %v2774 = vmul.f32 %v2740, %v2772
      %v2775 = vmul.f32 %v2741, %v2772
      %v2776 = vmul.f32 %v2742, %v2772
      %v2777 = vmul.f32 %v2743, %v2772
      %v2778 = vmul.f32 %v2744, %v2772
      %v2779 = vmul.f32 %v2745, %v2772
      %v2780 = vmul.f32 %v2746, %v2772
      %v2781 = vmul.f32 %v2747, %v2772
      %v2782 = vmul.f32 %v2748, %v2772
      %v2783 = vmul.f32 %v2749, %v2772
      %v2784 = vmul.f32 %v2750, %v2772
      %v2785 = vmul.f32 %v2751, %v2772
      %v2786 = vmul.f32 %v2752, %v2772
      %v2787 = vmul.f32 %v2753, %v2772
      %v2788 = vmul.f32 %v2754, %v2772
      %v2789 = vmul.f32 %v2755, %v2772
      %v2790 = vmul.f32 %v2756, %v2772
      %v2791 = vmul.f32 %v2757, %v2772
      %v2792 = vmul.f32 %v2758, %v2772
      %v2793 = vmul.f32 %v2759, %v2772
      %v2794 = vmul.f32 %v2760, %v2772
      %v2795 = vmul.f32 %v2761, %v2772
      %v2796 = vmul.f32 %v2762, %v2772
      %v2797 = vmul.f32 %v2763, %v2772
      %v2798 = vmul.f32 %v2764, %v2772
      %v2799 = vmul.f32 %v2765, %v2772
      %v2800 = vmul.f32 %v2766, %v2772
      %v2801 = vmul.f32 %v2767, %v2772
      %v2802 = vmul.f32 %v2768, %v2772
      %v2803 = vmul.f32 %v2769, %v2772
      %v2804 = vmul.f32 %v2770, %v2772
      %vm2805 = vcmp.ge.f32.partialorder %v2773, 0.0
      %vm2806 = vcmp.ge.f32.partialorder %v2774, 0.0
      %vm2807 = vcmp.ge.f32.partialorder %v2775, 0.0
      %vm2808 = vcmp.ge.f32.partialorder %v2776, 0.0
      %vm2809 = vcmp.ge.f32.partialorder %v2777, 0.0
      %vm2810 = vcmp.ge.f32.partialorder %v2778, 0.0
      %vm2811 = vcmp.ge.f32.partialorder %v2779, 0.0
      %vm2812 = vcmp.ge.f32.partialorder %v2780, 0.0
      %vm2813 = vcmp.ge.f32.partialorder %v2781, 0.0
      %vm2814 = vcmp.ge.f32.partialorder %v2782, 0.0
      %vm2815 = vcmp.ge.f32.partialorder %v2783, 0.0
      %vm2816 = vcmp.ge.f32.partialorder %v2784, 0.0
      %vm2817 = vcmp.ge.f32.partialorder %v2785, 0.0
      %vm2818 = vcmp.ge.f32.partialorder %v2786, 0.0
      %vm2819 = vcmp.ge.f32.partialorder %v2787, 0.0
      %vm2820 = vcmp.ge.f32.partialorder %v2788, 0.0
      %vm2821 = vcmp.ge.f32.partialorder %v2789, 0.0
      %vm2822 = vcmp.ge.f32.partialorder %v2790, 0.0
      %vm2823 = vcmp.ge.f32.partialorder %v2791, 0.0
      %vm2824 = vcmp.ge.f32.partialorder %v2792, 0.0
      %vm2825 = vcmp.ge.f32.partialorder %v2793, 0.0
      %vm2826 = vcmp.ge.f32.partialorder %v2794, 0.0
      %vm2827 = vcmp.ge.f32.partialorder %v2795, 0.0
      %vm2828 = vcmp.ge.f32.partialorder %v2796, 0.0
      %vm2829 = vcmp.ge.f32.partialorder %v2797, 0.0
      %vm2830 = vcmp.ge.f32.partialorder %v2798, 0.0
      %vm2831 = vcmp.ge.f32.partialorder %v2799, 0.0
      %vm2832 = vcmp.ge.f32.partialorder %v2800, 0.0
      %vm2833 = vcmp.ge.f32.partialorder %v2801, 0.0
      %vm2834 = vcmp.ge.f32.partialorder %v2802, 0.0
      %vm2835 = vcmp.ge.f32.partialorder %v2803, 0.0
      %vm2836 = vcmp.ge.f32.partialorder %v2804, 0.0
      %v2837 = vmul.f32 %v2773, 0.01
      %v2838 = vmul.f32 %v2774, 0.01
      %v2839 = vmul.f32 %v2775, 0.01
      %v2840 = vmul.f32 %v2776, 0.01
      %v2841 = vmul.f32 %v2777, 0.01
      %v2842 = vmul.f32 %v2778, 0.01
      %v2843 = vmul.f32 %v2779, 0.01
      %v2844 = vmul.f32 %v2780, 0.01
      %v2845 = vmul.f32 %v2781, 0.01
      %v2846 = vmul.f32 %v2782, 0.01
      %v2847 = vmul.f32 %v2783, 0.01
      %v2848 = vmul.f32 %v2784, 0.01
      %v2849 = vmul.f32 %v2785, 0.01
      %v2850 = vmul.f32 %v2786, 0.01
      %v2851 = vmul.f32 %v2787, 0.01
      %v2852 = vmul.f32 %v2788, 0.01
      %v2853 = vmul.f32 %v2789, 0.01
      %v2854 = vmul.f32 %v2790, 0.01
      %v2855 = vmul.f32 %v2791, 0.01
      %v2856 = vmul.f32 %v2792, 0.01
      %v2857 = vmul.f32 %v2793, 0.01
      %v2858 = vmul.f32 %v2794, 0.01
      %v2859 = vmul.f32 %v2795, 0.01
      %v2860 = vmul.f32 %v2796, 0.01
      %v2861 = vmul.f32 %v2797, 0.01
      %v2862 = vmul.f32 %v2798, 0.01
      %v2863 = vmul.f32 %v2799, 0.01
      %v2864 = vmul.f32 %v2800, 0.01
      %v2865 = vmul.f32 %v2801, 0.01
      %v2866 = vmul.f32 %v2802, 0.01
      %v2867 = vmul.f32 %v2803, 0.01
      %v2868 = vmul.f32 %v2804, 0.01
      %v2869 = vsel %vm2805, %v2773, %v2837
      %v2870 = vsel %vm2806, %v2774, %v2838
      %v2871 = vsel %vm2807, %v2775, %v2839
      %v2872 = vsel %vm2808, %v2776, %v2840
      %v2873 = vsel %vm2809, %v2777, %v2841
      %v2874 = vsel %vm2810, %v2778, %v2842
      %v2875 = vsel %vm2811, %v2779, %v2843
      %v2876 = vsel %vm2812, %v2780, %v2844
      %v2877 = vsel %vm2813, %v2781, %v2845
      %v2878 = vsel %vm2814, %v2782, %v2846
      %v2879 = vsel %vm2815, %v2783, %v2847
      %v2880 = vsel %vm2816, %v2784, %v2848
      %v2881 = vsel %vm2817, %v2785, %v2849
      %v2882 = vsel %vm2818, %v2786, %v2850
      %v2883 = vsel %vm2819, %v2787, %v2851
      %v2884 = vsel %vm2820, %v2788, %v2852
      %v2885 = vsel %vm2821, %v2789, %v2853
      %v2886 = vsel %vm2822, %v2790, %v2854
      %v2887 = vsel %vm2823, %v2791, %v2855
      %v2888 = vsel %vm2824, %v2792, %v2856
      %v2889 = vsel %vm2825, %v2793, %v2857
      %v2890 = vsel %vm2826, %v2794, %v2858
      %v2891 = vsel %vm2827, %v2795, %v2859
      %v2892 = vsel %vm2828, %v2796, %v2860
      %v2893 = vsel %vm2829, %v2797, %v2861
      %v2894 = vsel %vm2830, %v2798, %v2862
      %v2895 = vsel %vm2831, %v2799, %v2863
      %v2896 = vsel %vm2832, %v2800, %v2864
      %v2897 = vsel %vm2833, %v2801, %v2865
      %v2898 = vsel %vm2834, %v2802, %v2866
      %v2899 = vsel %vm2835, %v2803, %v2867
      %v2900 = vsel %vm2836, %v2804, %v2868
      %2901 = vst.msk [vmem:[#allocation3] sm:$0xff] %vm2152, 0
      %vm2902 = vcmask 257024
      %2903 = vst.msk [vmem:[#allocation3 + $0x8] sm:$0xf] %vm2902, 0
      %2904 = vst.msk [vmem:[#allocation3 + $0x98] sm:$0xff] %vm2152, 0
      %2905 = vst.msk [vmem:[#allocation3 + $0xa0] sm:$0xf] %vm2902, 0
      %2906 = vst.msk [vmem:[#allocation3 + $0x130] sm:$0xff] %vm2152, 0
      %2907 = vst.msk [vmem:[#allocation3 + $0x138] sm:$0xf] %vm2902, 0
      %vm2908 = vcmask 261124
      %2909 = vst.msk [vmem:[#allocation3 + $0x88] sm:$0xf0] %vm2908, 0
      %2910 = vst.msk [vmem:[#allocation3 + $0x90] sm:$0xff] %vm2152, 0
      %2911 = vst.msk [vmem:[#allocation3 + $0x120] sm:$0xf0] %vm2908, 0
      %2912 = vst.msk [vmem:[#allocation3 + $0x128] sm:$0xff] %vm2152, 0
      %2913 = vst.msk [vmem:[#allocation3 + $0x1b8] sm:$0xf0] %vm2908, 0
      %2914 = vst.msk [vmem:[#allocation3 + $0x1c0] sm:$0xff] %vm2152, 0
      %v2915 = vpack.c.bf16 %v2870, %v2869
      %v2916 = vpack.c.bf16 %v2872, %v2871
      %v2917 = vpack.c.bf16 %v2874, %v2873
      %v2918 = vpack.c.bf16 %v2876, %v2875
      %v2919 = vpack.c.bf16 %v2878, %v2877
      %v2920 = vpack.c.bf16 %v2880, %v2879
      %v2921 = vpack.c.bf16 %v2882, %v2881
      %v2922 = vpack.c.bf16 %v2884, %v2883
      %v2923 = vpack.c.bf16 %v2886, %v2885
      %v2924 = vpack.c.bf16 %v2888, %v2887
      %v2925 = vpack.c.bf16 %v2890, %v2889
      %v2926 = vpack.c.bf16 %v2892, %v2891
      %v2927 = vpack.c.bf16 %v2894, %v2893
      %v2928 = vpack.c.bf16 %v2896, %v2895
      %v2929 = vpack.c.bf16 %v2898, %v2897
      %v2930 = vpack.c.bf16 %v2900, %v2899
      %v2947 = vrot.slane %v2915, 4
      %v2948 = vrot.slane %v2916, 4
      %v2949 = vsel %vm822, %v2947, %v2948
      %v2950 = vrot.slane %v2917, 4
      %v2951 = vsel %vm822, %v2948, %v2950
      %v2952 = vrot.slane %v2918, 4
      %v2953 = vsel %vm822, %v2950, %v2952
      %v2954 = vrot.slane %v2919, 4
      %v2955 = vsel %vm822, %v2952, %v2954
      %v2956 = vrot.slane %v2920, 4
      %v2957 = vsel %vm822, %v2954, %v2956
      %v2958 = vrot.slane %v2921, 4
      %v2959 = vsel %vm822, %v2956, %v2958
      %v2960 = vrot.slane %v2922, 4
      %v2961 = vsel %vm822, %v2958, %v2960
      %v2962 = vrot.slane %v2923, 4
      %v2963 = vsel %vm822, %v2960, %v2962
      %v2964 = vrot.slane %v2924, 4
      %v2965 = vsel %vm822, %v2962, %v2964
      %v2966 = vrot.slane %v2925, 4
      %v2967 = vsel %vm822, %v2964, %v2966
      %v2968 = vrot.slane %v2926, 4
      %v2969 = vsel %vm822, %v2966, %v2968
      %v2970 = vrot.slane %v2927, 4
      %v2971 = vsel %vm822, %v2968, %v2970
      %v2972 = vrot.slane %v2928, 4
      %v2973 = vsel %vm822, %v2970, %v2972
      %v2974 = vrot.slane %v2929, 4
      %v2975 = vsel %vm822, %v2972, %v2974
      %v2976 = vrot.slane %v2930, 4
      %v2977 = vsel %vm822, %v2974, %v2976
      %2995 = vst.msk [vmem:[#allocation3 + $0x8] sm:$0xf0] %vm2908, %v2947
      %2996 = vst.msk [vmem:[#allocation3 + $0x10] sm:$0xff] %vm2152, %v2949
      %2997 = vst.msk [vmem:[#allocation3 + $0x18] sm:$0xff] %vm2152, %v2951
      %2998 = vst.msk [vmem:[#allocation3 + $0x20] sm:$0xff] %vm2152, %v2953
      %2999 = vst.msk [vmem:[#allocation3 + $0x28] sm:$0xff] %vm2152, %v2955
      %3000 = vst.msk [vmem:[#allocation3 + $0x30] sm:$0xff] %vm2152, %v2957
      %3001 = vst.msk [vmem:[#allocation3 + $0x38] sm:$0xff] %vm2152, %v2959
      %3002 = vst.msk [vmem:[#allocation3 + $0x40] sm:$0xff] %vm2152, %v2961
      %3003 = vst.msk [vmem:[#allocation3 + $0x48] sm:$0xff] %vm2152, %v2963
      %3004 = vst.msk [vmem:[#allocation3 + $0x50] sm:$0xff] %vm2152, %v2965
      %3005 = vst.msk [vmem:[#allocation3 + $0x58] sm:$0xff] %vm2152, %v2967
      %3006 = vst.msk [vmem:[#allocation3 + $0x60] sm:$0xff] %vm2152, %v2969
      %3007 = vst.msk [vmem:[#allocation3 + $0x68] sm:$0xff] %vm2152, %v2971
      %3008 = vst.msk [vmem:[#allocation3 + $0x70] sm:$0xff] %vm2152, %v2973
      %3009 = vst.msk [vmem:[#allocation3 + $0x78] sm:$0xff] %vm2152, %v2975
      %3010 = vst.msk [vmem:[#allocation3 + $0x80] sm:$0xff] %vm2152, %v2977
      %3011 = vst.msk [vmem:[#allocation3 + $0x88] sm:$0xf] %vm2902, %v2976
      %v3012 = vsel %vm920, %v2869, 0.0
      %v3013 = vsel %vm921, %v2870, 0.0
      %v3014 = vsel %vm922, %v2871, 0.0
      %v3015 = vsel %vm923, %v2872, 0.0
      %v3016 = vsel %vm924, %v2873, 0.0
      %v3017 = vsel %vm925, %v2874, 0.0
      %v3018 = vsel %vm926, %v2875, 0.0
      %v3019 = vsel %vm927, %v2876, 0.0
      %v3020 = vsel %vm928, %v2877, 0.0
      %v3021 = vsel %vm929, %v2878, 0.0
      %v3022 = vsel %vm930, %v2879, 0.0
      %v3023 = vsel %vm931, %v2880, 0.0
      %v3024 = vsel %vm932, %v2881, 0.0
      %v3025 = vsel %vm933, %v2882, 0.0
      %v3026 = vsel %vm934, %v2883, 0.0
      %v3027 = vsel %vm935, %v2884, 0.0
      %v3028 = vsel %vm936, %v2885, 0.0
      %v3029 = vsel %vm937, %v2886, 0.0
      %v3030 = vsel %vm938, %v2887, 0.0
      %v3031 = vsel %vm939, %v2888, 0.0
      %v3032 = vsel %vm940, %v2889, 0.0
      %v3033 = vsel %vm941, %v2890, 0.0
      %v3034 = vsel %vm942, %v2891, 0.0
      %v3035 = vsel %vm943, %v2892, 0.0
      %v3036 = vsel %vm944, %v2893, 0.0
      %v3037 = vsel %vm945, %v2894, 0.0
      %v3038 = vsel %vm946, %v2895, 0.0
      %v3039 = vsel %vm947, %v2896, 0.0
      %v3040 = vsel %vm948, %v2897, 0.0
      %v3041 = vsel %vm949, %v2898, 0.0
      %v3042 = vsel %vm950, %v2899, 0.0
      %v3043 = vsel %vm951, %v2900, 0.0
      %v3044 = vpack.c.bf16 %v3013, %v3012
      %v3045 = vpack.c.bf16 %v3015, %v3014
      %v3046 = vpack.c.bf16 %v3017, %v3016
      %v3047 = vpack.c.bf16 %v3019, %v3018
      %v3048 = vpack.c.bf16 %v3021, %v3020
      %v3049 = vpack.c.bf16 %v3023, %v3022
      %v3050 = vpack.c.bf16 %v3025, %v3024
      %v3051 = vpack.c.bf16 %v3027, %v3026
      %v3052 = vpack.c.bf16 %v3029, %v3028
      %v3053 = vpack.c.bf16 %v3031, %v3030
      %v3054 = vpack.c.bf16 %v3033, %v3032
      %v3055 = vpack.c.bf16 %v3035, %v3034
      %v3056 = vpack.c.bf16 %v3037, %v3036
      %v3057 = vpack.c.bf16 %v3039, %v3038
      %v3058 = vpack.c.bf16 %v3041, %v3040
      %v3059 = vpack.c.bf16 %v3043, %v3042
      %v3076 = vrot.slane %v3044, 4
      %v3077 = vrot.slane %v3045, 4
      %v3078 = vsel %vm822, %v3076, %v3077
      %v3079 = vrot.slane %v3046, 4
      %v3080 = vsel %vm822, %v3077, %v3079
      %v3081 = vrot.slane %v3047, 4
      %v3082 = vsel %vm822, %v3079, %v3081
      %v3083 = vrot.slane %v3048, 4
      %v3084 = vsel %vm822, %v3081, %v3083
      %v3085 = vrot.slane %v3049, 4
      %v3086 = vsel %vm822, %v3083, %v3085
      %v3087 = vrot.slane %v3050, 4
      %v3088 = vsel %vm822, %v3085, %v3087
      %v3089 = vrot.slane %v3051, 4
      %v3090 = vsel %vm822, %v3087, %v3089
      %v3091 = vrot.slane %v3052, 4
      %v3092 = vsel %vm822, %v3089, %v3091
      %v3093 = vrot.slane %v3053, 4
      %v3094 = vsel %vm822, %v3091, %v3093
      %v3095 = vrot.slane %v3054, 4
      %v3096 = vsel %vm822, %v3093, %v3095
      %v3097 = vrot.slane %v3055, 4
      %v3098 = vsel %vm822, %v3095, %v3097
      %v3099 = vrot.slane %v3056, 4
      %v3100 = vsel %vm822, %v3097, %v3099
      %v3101 = vrot.slane %v3057, 4
      %v3102 = vsel %vm822, %v3099, %v3101
      %v3103 = vrot.slane %v3058, 4
      %v3104 = vsel %vm822, %v3101, %v3103
      %v3105 = vrot.slane %v3059, 4
      %v3106 = vsel %vm822, %v3103, %v3105
      %s3124 = scalar_lea.vmem [#allocation3], 152
      %3125 = vst.msk [vmem:[%s3124 + $0x8] sm:$0xf0] %vm2908, %v3076
      %3126 = vst.msk [vmem:[%s3124 + $0x10] sm:$0xff] %vm2152, %v3078
      %3127 = vst.msk [vmem:[%s3124 + $0x18] sm:$0xff] %vm2152, %v3080
      %3128 = vst.msk [vmem:[%s3124 + $0x20] sm:$0xff] %vm2152, %v3082
      %3129 = vst.msk [vmem:[%s3124 + $0x28] sm:$0xff] %vm2152, %v3084
      %3130 = vst.msk [vmem:[%s3124 + $0x30] sm:$0xff] %vm2152, %v3086
      %3131 = vst.msk [vmem:[%s3124 + $0x38] sm:$0xff] %vm2152, %v3088
      %3132 = vst.msk [vmem:[%s3124 + $0x40] sm:$0xff] %vm2152, %v3090
      %3133 = vst.msk [vmem:[%s3124 + $0x48] sm:$0xff] %vm2152, %v3092
      %3134 = vst.msk [vmem:[%s3124 + $0x50] sm:$0xff] %vm2152, %v3094
      %3135 = vst.msk [vmem:[%s3124 + $0x58] sm:$0xff] %vm2152, %v3096
      %3136 = vst.msk [vmem:[%s3124 + $0x60] sm:$0xff] %vm2152, %v3098
      %3137 = vst.msk [vmem:[%s3124 + $0x68] sm:$0xff] %vm2152, %v3100
      %3138 = vst.msk [vmem:[%s3124 + $0x70] sm:$0xff] %vm2152, %v3102
      %3139 = vst.msk [vmem:[%s3124 + $0x78] sm:$0xff] %vm2152, %v3104
      %3140 = vst.msk [vmem:[%s3124 + $0x80] sm:$0xff] %vm2152, %v3106
      %3141 = vst.msk [vmem:[%s3124 + $0x88] sm:$0xf] %vm2902, %v3105
      %v3142 = vsel %vm1114, %v2869, 0.0
      %v3143 = vsel %vm1115, %v2870, 0.0
      %v3144 = vsel %vm1116, %v2871, 0.0
      %v3145 = vsel %vm1117, %v2872, 0.0
      %v3146 = vsel %vm1118, %v2873, 0.0
      %v3147 = vsel %vm1119, %v2874, 0.0
      %v3148 = vsel %vm1120, %v2875, 0.0
      %v3149 = vsel %vm1121, %v2876, 0.0
      %v3150 = vsel %vm1122, %v2877, 0.0
      %v3151 = vsel %vm1123, %v2878, 0.0
      %v3152 = vsel %vm1124, %v2879, 0.0
      %v3153 = vsel %vm1125, %v2880, 0.0
      %v3154 = vsel %vm1126, %v2881, 0.0
      %v3155 = vsel %vm1127, %v2882, 0.0
      %v3156 = vsel %vm1128, %v2883, 0.0
      %v3157 = vsel %vm1129, %v2884, 0.0
      %v3158 = vsel %vm1130, %v2885, 0.0
      %v3159 = vsel %vm1131, %v2886, 0.0
      %v3160 = vsel %vm1132, %v2887, 0.0
      %v3161 = vsel %vm1133, %v2888, 0.0
      %v3162 = vsel %vm1134, %v2889, 0.0
      %v3163 = vsel %vm1135, %v2890, 0.0
      %v3164 = vsel %vm1136, %v2891, 0.0
      %v3165 = vsel %vm1137, %v2892, 0.0
      %v3166 = vsel %vm1138, %v2893, 0.0
      %v3167 = vsel %vm1139, %v2894, 0.0
      %v3168 = vsel %vm1140, %v2895, 0.0
      %v3169 = vsel %vm1141, %v2896, 0.0
      %v3170 = vsel %vm1142, %v2897, 0.0
      %v3171 = vsel %vm1143, %v2898, 0.0
      %v3172 = vsel %vm1144, %v2899, 0.0
      %v3173 = vsel %vm1145, %v2900, 0.0
      %v3174 = vpack.c.bf16 %v3143, %v3142
      %v3175 = vpack.c.bf16 %v3145, %v3144
      %v3176 = vpack.c.bf16 %v3147, %v3146
      %v3177 = vpack.c.bf16 %v3149, %v3148
      %v3178 = vpack.c.bf16 %v3151, %v3150
      %v3179 = vpack.c.bf16 %v3153, %v3152
      %v3180 = vpack.c.bf16 %v3155, %v3154
      %v3181 = vpack.c.bf16 %v3157, %v3156
      %v3182 = vpack.c.bf16 %v3159, %v3158
      %v3183 = vpack.c.bf16 %v3161, %v3160
      %v3184 = vpack.c.bf16 %v3163, %v3162
      %v3185 = vpack.c.bf16 %v3165, %v3164
      %v3186 = vpack.c.bf16 %v3167, %v3166
      %v3187 = vpack.c.bf16 %v3169, %v3168
      %v3188 = vpack.c.bf16 %v3171, %v3170
      %v3189 = vpack.c.bf16 %v3173, %v3172
      %v3206 = vrot.slane %v3174, 4
      %v3207 = vrot.slane %v3175, 4
      %v3208 = vsel %vm822, %v3206, %v3207
      %v3209 = vrot.slane %v3176, 4
      %v3210 = vsel %vm822, %v3207, %v3209
      %v3211 = vrot.slane %v3177, 4
      %v3212 = vsel %vm822, %v3209, %v3211
      %v3213 = vrot.slane %v3178, 4
      %v3214 = vsel %vm822, %v3211, %v3213
      %v3215 = vrot.slane %v3179, 4
      %v3216 = vsel %vm822, %v3213, %v3215
      %v3217 = vrot.slane %v3180, 4
      %v3218 = vsel %vm822, %v3215, %v3217
      %v3219 = vrot.slane %v3181, 4
      %v3220 = vsel %vm822, %v3217, %v3219
      %v3221 = vrot.slane %v3182, 4
      %v3222 = vsel %vm822, %v3219, %v3221
      %v3223 = vrot.slane %v3183, 4
      %v3224 = vsel %vm822, %v3221, %v3223
      %v3225 = vrot.slane %v3184, 4
      %v3226 = vsel %vm822, %v3223, %v3225
      %v3227 = vrot.slane %v3185, 4
      %v3228 = vsel %vm822, %v3225, %v3227
      %v3229 = vrot.slane %v3186, 4
      %v3230 = vsel %vm822, %v3227, %v3229
      %v3231 = vrot.slane %v3187, 4
      %v3232 = vsel %vm822, %v3229, %v3231
      %v3233 = vrot.slane %v3188, 4
      %v3234 = vsel %vm822, %v3231, %v3233
      %v3235 = vrot.slane %v3189, 4
      %v3236 = vsel %vm822, %v3233, %v3235
      %s3254 = scalar_lea.vmem [#allocation3], 304
      %3255 = vst.msk [vmem:[%s3254 + $0x8] sm:$0xf0] %vm2908, %v3206
      %3256 = vst.msk [vmem:[%s3254 + $0x10] sm:$0xff] %vm2152, %v3208
      %3257 = vst.msk [vmem:[%s3254 + $0x18] sm:$0xff] %vm2152, %v3210
      %3258 = vst.msk [vmem:[%s3254 + $0x20] sm:$0xff] %vm2152, %v3212
      %3259 = vst.msk [vmem:[%s3254 + $0x28] sm:$0xff] %vm2152, %v3214
      %3260 = vst.msk [vmem:[%s3254 + $0x30] sm:$0xff] %vm2152, %v3216
      %3261 = vst.msk [vmem:[%s3254 + $0x38] sm:$0xff] %vm2152, %v3218
      %3262 = vst.msk [vmem:[%s3254 + $0x40] sm:$0xff] %vm2152, %v3220
      %3263 = vst.msk [vmem:[%s3254 + $0x48] sm:$0xff] %vm2152, %v3222
      %3264 = vst.msk [vmem:[%s3254 + $0x50] sm:$0xff] %vm2152, %v3224
      %3265 = vst.msk [vmem:[%s3254 + $0x58] sm:$0xff] %vm2152, %v3226
      %3266 = vst.msk [vmem:[%s3254 + $0x60] sm:$0xff] %vm2152, %v3228
      %3267 = vst.msk [vmem:[%s3254 + $0x68] sm:$0xff] %vm2152, %v3230
      %3268 = vst.msk [vmem:[%s3254 + $0x70] sm:$0xff] %vm2152, %v3232
      %3269 = vst.msk [vmem:[%s3254 + $0x78] sm:$0xff] %vm2152, %v3234
      %3270 = vst.msk [vmem:[%s3254 + $0x80] sm:$0xff] %vm2152, %v3236
      %3271 = vst.msk [vmem:[%s3254 + $0x88] sm:$0xf] %vm2902, %v3235
      %v3272 = vld [vmem:[%s4] sm:$0x1]
      %v3273 = vld [vmem:[%s3254] sm:$0xf8]
      %v3274 = vld [vmem:[%s3254 + $0x8] sm:$0xff]
      %v3275 = vld [vmem:[%s3254 + $0x10] sm:$0xff]
      %v3276 = vld [vmem:[%s3254 + $0x18] sm:$0xff]
      %v3277 = vld [vmem:[%s3254 + $0x20] sm:$0xff]
      %v3278 = vld [vmem:[%s3254 + $0x28] sm:$0xff]
      %v3279 = vld [vmem:[%s3254 + $0x30] sm:$0xff]
      %v3280 = vld [vmem:[%s3254 + $0x38] sm:$0xff]
      %v3281 = vld [vmem:[%s3254 + $0x40] sm:$0xff]
      %v3282 = vld [vmem:[%s3254 + $0x48] sm:$0xff]
      %v3283 = vld [vmem:[%s3254 + $0x50] sm:$0xff]
      %v3284 = vld [vmem:[%s3254 + $0x58] sm:$0xff]
      %v3285 = vld [vmem:[%s3254 + $0x60] sm:$0xff]
      %v3286 = vld [vmem:[%s3254 + $0x68] sm:$0xff]
      %v3287 = vld [vmem:[%s3254 + $0x70] sm:$0xff]
      %v3288 = vld [vmem:[%s3254 + $0x78] sm:$0xff]
      %v3289 = vld [vmem:[%s3254 + $0x80] sm:$0xf]
      %v3290 = vld [vmem:[#allocation3] sm:$0xf0]
      %v3291 = vld [vmem:[#allocation3 + $0x8] sm:$0xff]
      %v3292 = vld [vmem:[#allocation3 + $0x10] sm:$0xff]
      %v3293 = vld [vmem:[#allocation3 + $0x18] sm:$0xff]
      %v3294 = vld [vmem:[#allocation3 + $0x20] sm:$0xff]
      %v3295 = vld [vmem:[#allocation3 + $0x28] sm:$0xff]
      %v3296 = vld [vmem:[#allocation3 + $0x30] sm:$0xff]
      %v3297 = vld [vmem:[#allocation3 + $0x38] sm:$0xff]
      %v3298 = vld [vmem:[#allocation3 + $0x40] sm:$0xff]
      %v3299 = vld [vmem:[#allocation3 + $0x48] sm:$0xff]
      %v3300 = vld [vmem:[#allocation3 + $0x50] sm:$0xff]
      %v3301 = vld [vmem:[#allocation3 + $0x58] sm:$0xff]
      %v3302 = vld [vmem:[#allocation3 + $0x60] sm:$0xff]
      %v3303 = vld [vmem:[#allocation3 + $0x68] sm:$0xff]
      %v3304 = vld [vmem:[#allocation3 + $0x70] sm:$0xff]
      %v3305 = vld [vmem:[#allocation3 + $0x78] sm:$0xff]
      %v3306 = vld [vmem:[#allocation3 + $0x80] sm:$0xf]
      %v3307 = vld [vmem:[%s3124] sm:$0xf0]
      %v3308 = vld [vmem:[%s3124 + $0x8] sm:$0xff]
      %v3309 = vld [vmem:[%s3124 + $0x10] sm:$0xff]
      %v3310 = vld [vmem:[%s3124 + $0x18] sm:$0xff]
      %v3311 = vld [vmem:[%s3124 + $0x20] sm:$0xff]
      %v3312 = vld [vmem:[%s3124 + $0x28] sm:$0xff]
      %v3313 = vld [vmem:[%s3124 + $0x30] sm:$0xff]
      %v3314 = vld [vmem:[%s3124 + $0x38] sm:$0xff]
      %v3315 = vld [vmem:[%s3124 + $0x40] sm:$0xff]
      %v3316 = vld [vmem:[%s3124 + $0x48] sm:$0xff]
      %v3317 = vld [vmem:[%s3124 + $0x50] sm:$0xff]
      %v3318 = vld [vmem:[%s3124 + $0x58] sm:$0xff]
      %v3319 = vld [vmem:[%s3124 + $0x60] sm:$0xff]
      %v3320 = vld [vmem:[%s3124 + $0x68] sm:$0xff]
      %v3321 = vld [vmem:[%s3124 + $0x70] sm:$0xff]
      %v3322 = vld [vmem:[%s3124 + $0x78] sm:$0xff]
      %v3323 = vld [vmem:[%s3124 + $0x80] sm:$0x1f]
      %v3324 = vld [vmem:[%s3254 + $0x8] sm:$0xf8]
      %v3325 = vld [vmem:[%s3254 + $0x80] sm:$0xff]
      %v3326 = vld [vmem:[%s3254 + $0x88] sm:$0xf]
      %v3327 = vld [vmem:[#allocation3 + $0x8] sm:$0xf0]
      %v3328 = vld [vmem:[#allocation3 + $0x80] sm:$0xff]
      %v3329 = vld [vmem:[#allocation3 + $0x88] sm:$0xf]
      %v3330 = vld [vmem:[%s3124 + $0x8] sm:$0xf0]
      %v3331 = vld [vmem:[%s3124 + $0x80] sm:$0xff]
      %v3332 = vld [vmem:[%s3124 + $0x88] sm:$0x1f]
      %v3333 = vld [vmem:[%s3254 + $0x10] sm:$0xf8]
      %v3334 = vld [vmem:[%s3254 + $0x88] sm:$0xff]
      %v3335 = vld [vmem:[%s3254 + $0x90] sm:$0xf]
      %v3336 = vld [vmem:[#allocation3 + $0x10] sm:$0xf0]
      %v3337 = vld [vmem:[#allocation3 + $0x88] sm:$0xff]
      %v3338 = vld [vmem:[#allocation3 + $0x90] sm:$0xf]
      %v3339 = vld [vmem:[%s3124 + $0x10] sm:$0xf0]
      %v3340 = vld [vmem:[%s3124 + $0x88] sm:$0xff]
      %v3341 = vld [vmem:[%s3124 + $0x90] sm:$0x1f]
      %v3343 = vshrl.u32 %v3290, 16
      %v3345 = vshll.u32 %v3290, 16
      %v3347 = vrot.slane %v3345, 1
      %v3348 = vor.u32 %v3343, %v3347
      %v3350 = vshll.u32 %v3291, 16
      %v3352 = vrot.slane %v3350, 1
      %v3353 = vsel %vm1346, %v3348, %v3352
      %v3354 = vshrl.u32 %v3291, 16
      %v3356 = vor.u32 %v3354, %v3352
      %v3358 = vshll.u32 %v3292, 16
      %v3360 = vrot.slane %v3358, 1
      %v3361 = vsel %vm1346, %v3356, %v3360
      %v3362 = vshrl.u32 %v3292, 16
      %v3364 = vor.u32 %v3362, %v3360
      %v3366 = vshll.u32 %v3293, 16
      %v3368 = vrot.slane %v3366, 1
      %v3369 = vsel %vm1346, %v3364, %v3368
      %v3370 = vshrl.u32 %v3293, 16
      %v3372 = vor.u32 %v3370, %v3368
      %v3374 = vshll.u32 %v3294, 16
      %v3376 = vrot.slane %v3374, 1
      %v3377 = vsel %vm1346, %v3372, %v3376
      %v3378 = vshrl.u32 %v3294, 16
      %v3380 = vor.u32 %v3378, %v3376
      %v3382 = vshll.u32 %v3295, 16
      %v3384 = vrot.slane %v3382, 1
      %v3385 = vsel %vm1346, %v3380, %v3384
      %v3386 = vshrl.u32 %v3295, 16
      %v3388 = vor.u32 %v3386, %v3384
      %v3390 = vshll.u32 %v3296, 16
      %v3392 = vrot.slane %v3390, 1
      %v3393 = vsel %vm1346, %v3388, %v3392
      %v3394 = vshrl.u32 %v3296, 16
      %v3396 = vor.u32 %v3394, %v3392
      %v3398 = vshll.u32 %v3297, 16
      %v3400 = vrot.slane %v3398, 1
      %v3401 = vsel %vm1346, %v3396, %v3400
      %v3402 = vshrl.u32 %v3297, 16
      %v3404 = vor.u32 %v3402, %v3400
      %v3406 = vshll.u32 %v3298, 16
      %v3408 = vrot.slane %v3406, 1
      %v3409 = vsel %vm1346, %v3404, %v3408
      %v3410 = vshrl.u32 %v3298, 16
      %v3412 = vor.u32 %v3410, %v3408
      %v3414 = vshll.u32 %v3299, 16
      %v3416 = vrot.slane %v3414, 1
      %v3417 = vsel %vm1346, %v3412, %v3416
      %v3418 = vshrl.u32 %v3299, 16
      %v3420 = vor.u32 %v3418, %v3416
      %v3422 = vshll.u32 %v3300, 16
      %v3424 = vrot.slane %v3422, 1
      %v3425 = vsel %vm1346, %v3420, %v3424
      %v3426 = vshrl.u32 %v3300, 16
      %v3428 = vor.u32 %v3426, %v3424
      %v3430 = vshll.u32 %v3301, 16
      %v3432 = vrot.slane %v3430, 1
      %v3433 = vsel %vm1346, %v3428, %v3432
      %v3434 = vshrl.u32 %v3301, 16
      %v3436 = vor.u32 %v3434, %v3432
      %v3438 = vshll.u32 %v3302, 16
      %v3440 = vrot.slane %v3438, 1
      %v3441 = vsel %vm1346, %v3436, %v3440
      %v3442 = vshrl.u32 %v3302, 16
      %v3444 = vor.u32 %v3442, %v3440
      %v3446 = vshll.u32 %v3303, 16
      %v3448 = vrot.slane %v3446, 1
      %v3449 = vsel %vm1346, %v3444, %v3448
      %v3450 = vshrl.u32 %v3303, 16
      %v3452 = vor.u32 %v3450, %v3448
      %v3454 = vshll.u32 %v3304, 16
      %v3456 = vrot.slane %v3454, 1
      %v3457 = vsel %vm1346, %v3452, %v3456
      %v3458 = vshrl.u32 %v3304, 16
      %v3460 = vor.u32 %v3458, %v3456
      %v3462 = vshll.u32 %v3305, 16
      %v3464 = vrot.slane %v3462, 1
      %v3465 = vsel %vm1346, %v3460, %v3464
      %v3466 = vshrl.u32 %v3305, 16
      %v3468 = vor.u32 %v3466, %v3464
      %v3470 = vshll.u32 %v3306, 16
      %v3472 = vrot.slane %v3470, 1
      %v3473 = vsel %vm1346, %v3468, %v3472
      %v3474 = vshrl.u32 %v3306, 16
      %v3476 = vor.u32 %v3474, %v3472
      %3477 = vrot.lane.b32.xlu0 %v3353, 32
      %v3478 = vpop.permute.xlu0 %3477
      %3479 = vrot.lane.b32.xlu0 %v3361, 32
      %v3480 = vpop.permute.xlu0 %3479
      %3481 = vrot.lane.b32.xlu0 %v3369, 32
      %v3482 = vpop.permute.xlu0 %3481
      %3483 = vrot.lane.b32.xlu0 %v3377, 32
      %v3484 = vpop.permute.xlu0 %3483
      %3485 = vrot.lane.b32.xlu0 %v3385, 32
      %v3486 = vpop.permute.xlu0 %3485
      %3487 = vrot.lane.b32.xlu0 %v3393, 32
      %v3488 = vpop.permute.xlu0 %3487
      %3489 = vrot.lane.b32.xlu0 %v3401, 32
      %v3490 = vpop.permute.xlu0 %3489
      %3491 = vrot.lane.b32.xlu0 %v3409, 32
      %v3492 = vpop.permute.xlu0 %3491
      %3493 = vrot.lane.b32.xlu0 %v3417, 32
      %v3494 = vpop.permute.xlu0 %3493
      %3495 = vrot.lane.b32.xlu0 %v3425, 32
      %v3496 = vpop.permute.xlu0 %3495
      %3497 = vrot.lane.b32.xlu0 %v3433, 32
      %v3498 = vpop.permute.xlu0 %3497
      %3499 = vrot.lane.b32.xlu0 %v3441, 32
      %v3500 = vpop.permute.xlu0 %3499
      %3501 = vrot.lane.b32.xlu0 %v3449, 32
      %v3502 = vpop.permute.xlu0 %3501
      %3503 = vrot.lane.b32.xlu0 %v3457, 32
      %v3504 = vpop.permute.xlu0 %3503
      %3505 = vrot.lane.b32.xlu0 %v3465, 32
      %v3506 = vpop.permute.xlu0 %3505
      %3507 = vrot.lane.b32.xlu0 %v3473, 32
      %v3508 = vpop.permute.xlu0 %3507
      %3509 = vrot.lane.b32.xlu0 %v3476, 32
      %v3510 = vpop.permute.xlu0 %3509
      %v3528 = vrot.slane %v3307, 1
      %v3529 = vrot.slane %v3308, 1
      %v3530 = vsel %vm1533, %v3528, %v3529
      %v3531 = vrot.slane %v3309, 1
      %v3532 = vsel %vm1533, %v3529, %v3531
      %v3533 = vrot.slane %v3310, 1
      %v3534 = vsel %vm1533, %v3531, %v3533
      %v3535 = vrot.slane %v3311, 1
      %v3536 = vsel %vm1533, %v3533, %v3535
      %v3537 = vrot.slane %v3312, 1
      %v3538 = vsel %vm1533, %v3535, %v3537
      %v3539 = vrot.slane %v3313, 1
      %v3540 = vsel %vm1533, %v3537, %v3539
      %v3541 = vrot.slane %v3314, 1
      %v3542 = vsel %vm1533, %v3539, %v3541
      %v3543 = vrot.slane %v3315, 1
      %v3544 = vsel %vm1533, %v3541, %v3543
      %v3545 = vrot.slane %v3316, 1
      %v3546 = vsel %vm1533, %v3543, %v3545
      %v3547 = vrot.slane %v3317, 1
      %v3548 = vsel %vm1533, %v3545, %v3547
      %v3549 = vrot.slane %v3318, 1
      %v3550 = vsel %vm1533, %v3547, %v3549
      %v3551 = vrot.slane %v3319, 1
      %v3552 = vsel %vm1533, %v3549, %v3551
      %v3553 = vrot.slane %v3320, 1
      %v3554 = vsel %vm1533, %v3551, %v3553
      %v3555 = vrot.slane %v3321, 1
      %v3556 = vsel %vm1533, %v3553, %v3555
      %v3557 = vrot.slane %v3322, 1
      %v3558 = vsel %vm1533, %v3555, %v3557
      %v3559 = vrot.slane %v3323, 1
      %v3560 = vsel %vm1533, %v3557, %v3559
      %3561 = vrot.lane.b32.xlu0 %v3530, 64
      %v3562 = vpop.permute.xlu0 %3561
      %3563 = vrot.lane.b32.xlu0 %v3532, 64
      %v3564 = vpop.permute.xlu0 %3563
      %3565 = vrot.lane.b32.xlu0 %v3534, 64
      %v3566 = vpop.permute.xlu0 %3565
      %3567 = vrot.lane.b32.xlu0 %v3536, 64
      %v3568 = vpop.permute.xlu0 %3567
      %3569 = vrot.lane.b32.xlu0 %v3538, 64
      %v3570 = vpop.permute.xlu0 %3569
      %3571 = vrot.lane.b32.xlu0 %v3540, 64
      %v3572 = vpop.permute.xlu0 %3571
      %3573 = vrot.lane.b32.xlu0 %v3542, 64
      %v3574 = vpop.permute.xlu0 %3573
      %3575 = vrot.lane.b32.xlu0 %v3544, 64
      %v3576 = vpop.permute.xlu0 %3575
      %3577 = vrot.lane.b32.xlu0 %v3546, 64
      %v3578 = vpop.permute.xlu0 %3577
      %3579 = vrot.lane.b32.xlu0 %v3548, 64
      %v3580 = vpop.permute.xlu0 %3579
      %3581 = vrot.lane.b32.xlu0 %v3550, 64
      %v3582 = vpop.permute.xlu0 %3581
      %3583 = vrot.lane.b32.xlu0 %v3552, 64
      %v3584 = vpop.permute.xlu0 %3583
      %3585 = vrot.lane.b32.xlu0 %v3554, 64
      %v3586 = vpop.permute.xlu0 %3585
      %3587 = vrot.lane.b32.xlu0 %v3556, 64
      %v3588 = vpop.permute.xlu0 %3587
      %3589 = vrot.lane.b32.xlu0 %v3558, 64
      %v3590 = vpop.permute.xlu0 %3589
      %3591 = vrot.lane.b32.xlu0 %v3560, 64
      %v3592 = vpop.permute.xlu0 %3591
      %3593 = vrot.lane.b32.xlu0 %v3559, 64
      %v3594 = vpop.permute.xlu0 %3593
      %3612 = vrot.lane.b32.xlu0 %v3324, 96
      %v3613 = vpop.permute.xlu0 %3612
      %3614 = vrot.lane.b32.xlu0 %v3275, 96
      %v3615 = vpop.permute.xlu0 %3614
      %3616 = vrot.lane.b32.xlu0 %v3276, 96
      %v3617 = vpop.permute.xlu0 %3616
      %3618 = vrot.lane.b32.xlu0 %v3277, 96
      %v3619 = vpop.permute.xlu0 %3618
      %3620 = vrot.lane.b32.xlu0 %v3278, 96
      %v3621 = vpop.permute.xlu0 %3620
      %3622 = vrot.lane.b32.xlu0 %v3279, 96
      %v3623 = vpop.permute.xlu0 %3622
      %3624 = vrot.lane.b32.xlu0 %v3280, 96
      %v3625 = vpop.permute.xlu0 %3624
      %3626 = vrot.lane.b32.xlu0 %v3281, 96
      %v3627 = vpop.permute.xlu0 %3626
      %3628 = vrot.lane.b32.xlu0 %v3282, 96
      %v3629 = vpop.permute.xlu0 %3628
      %3630 = vrot.lane.b32.xlu0 %v3283, 96
      %v3631 = vpop.permute.xlu0 %3630
      %3632 = vrot.lane.b32.xlu0 %v3284, 96
      %v3633 = vpop.permute.xlu0 %3632
      %3634 = vrot.lane.b32.xlu0 %v3285, 96
      %v3635 = vpop.permute.xlu0 %3634
      %3636 = vrot.lane.b32.xlu0 %v3286, 96
      %v3637 = vpop.permute.xlu0 %3636
      %3638 = vrot.lane.b32.xlu0 %v3287, 96
      %v3639 = vpop.permute.xlu0 %3638
      %3640 = vrot.lane.b32.xlu0 %v3288, 96
      %v3641 = vpop.permute.xlu0 %3640
      %3642 = vrot.lane.b32.xlu0 %v3325, 96
      %v3643 = vpop.permute.xlu0 %3642
      %3644 = vrot.lane.b32.xlu0 %v3326, 96
      %v3645 = vpop.permute.xlu0 %3644
      %v3647 = vshrl.u32 %v3327, 16
      %v3649 = vshll.u32 %v3327, 16
      %v3651 = vrot.slane %v3649, 1
      %v3652 = vor.u32 %v3647, %v3651
      %v3653 = vsel %vm1346, %v3652, %v3360
      %v3655 = vshll.u32 %v3328, 16
      %v3657 = vrot.slane %v3655, 1
      %v3658 = vsel %vm1346, %v3468, %v3657
      %v3659 = vshrl.u32 %v3328, 16
      %v3661 = vor.u32 %v3659, %v3657
      %v3663 = vshll.u32 %v3329, 16
      %v3665 = vrot.slane %v3663, 1
      %v3666 = vsel %vm1346, %v3661, %v3665
      %v3667 = vshrl.u32 %v3329, 16
      %v3669 = vor.u32 %v3667, %v3665
      %v3673 = vrot.slane %v3330, 1
      %v3674 = vsel %vm1533, %v3673, %v3531
      %v3675 = vrot.slane %v3331, 1
      %v3676 = vsel %vm1533, %v3557, %v3675
      %v3677 = vrot.slane %v3332, 1
      %v3678 = vsel %vm1533, %v3675, %v3677
      %3679 = vrot.lane.b32.xlu0 %v3674, 32
      %v3680 = vpop.permute.xlu0 %3679
      %3681 = vrot.lane.b32.xlu0 %v3534, 32
      %v3682 = vpop.permute.xlu0 %3681
      %3683 = vrot.lane.b32.xlu0 %v3536, 32
      %v3684 = vpop.permute.xlu0 %3683
      %3685 = vrot.lane.b32.xlu0 %v3538, 32
      %v3686 = vpop.permute.xlu0 %3685
      %3687 = vrot.lane.b32.xlu0 %v3540, 32
      %v3688 = vpop.permute.xlu0 %3687
      %3689 = vrot.lane.b32.xlu0 %v3542, 32
      %v3690 = vpop.permute.xlu0 %3689
      %3691 = vrot.lane.b32.xlu0 %v3544, 32
      %v3692 = vpop.permute.xlu0 %3691
      %3693 = vrot.lane.b32.xlu0 %v3546, 32
      %v3694 = vpop.permute.xlu0 %3693
      %3695 = vrot.lane.b32.xlu0 %v3548, 32
      %v3696 = vpop.permute.xlu0 %3695
      %3697 = vrot.lane.b32.xlu0 %v3550, 32
      %v3698 = vpop.permute.xlu0 %3697
      %3699 = vrot.lane.b32.xlu0 %v3552, 32
      %v3700 = vpop.permute.xlu0 %3699
      %3701 = vrot.lane.b32.xlu0 %v3554, 32
      %v3702 = vpop.permute.xlu0 %3701
      %3703 = vrot.lane.b32.xlu0 %v3556, 32
      %v3704 = vpop.permute.xlu0 %3703
      %3705 = vrot.lane.b32.xlu0 %v3558, 32
      %v3706 = vpop.permute.xlu0 %3705
      %3707 = vrot.lane.b32.xlu0 %v3676, 32
      %v3708 = vpop.permute.xlu0 %3707
      %3709 = vrot.lane.b32.xlu0 %v3678, 32
      %v3710 = vpop.permute.xlu0 %3709
      %3711 = vrot.lane.b32.xlu0 %v3677, 32
      %v3712 = vpop.permute.xlu0 %3711
      %3716 = vrot.lane.b32.xlu0 %v3333, 64
      %v3717 = vpop.permute.xlu0 %3716
      %3718 = vrot.lane.b32.xlu0 %v3276, 64
      %v3719 = vpop.permute.xlu0 %3718
      %3720 = vrot.lane.b32.xlu0 %v3277, 64
      %v3721 = vpop.permute.xlu0 %3720
      %3722 = vrot.lane.b32.xlu0 %v3278, 64
      %v3723 = vpop.permute.xlu0 %3722
      %3724 = vrot.lane.b32.xlu0 %v3279, 64
      %v3725 = vpop.permute.xlu0 %3724
      %3726 = vrot.lane.b32.xlu0 %v3280, 64
      %v3727 = vpop.permute.xlu0 %3726
      %3728 = vrot.lane.b32.xlu0 %v3281, 64
      %v3729 = vpop.permute.xlu0 %3728
      %3730 = vrot.lane.b32.xlu0 %v3282, 64
      %v3731 = vpop.permute.xlu0 %3730
      %3732 = vrot.lane.b32.xlu0 %v3283, 64
      %v3733 = vpop.permute.xlu0 %3732
      %3734 = vrot.lane.b32.xlu0 %v3284, 64
      %v3735 = vpop.permute.xlu0 %3734
      %3736 = vrot.lane.b32.xlu0 %v3285, 64
      %v3737 = vpop.permute.xlu0 %3736
      %3738 = vrot.lane.b32.xlu0 %v3286, 64
      %v3739 = vpop.permute.xlu0 %3738
      %3740 = vrot.lane.b32.xlu0 %v3287, 64
      %v3741 = vpop.permute.xlu0 %3740
      %3742 = vrot.lane.b32.xlu0 %v3288, 64
      %v3743 = vpop.permute.xlu0 %3742
      %3744 = vrot.lane.b32.xlu0 %v3325, 64
      %v3745 = vpop.permute.xlu0 %3744
      %3746 = vrot.lane.b32.xlu0 %v3334, 64
      %v3747 = vpop.permute.xlu0 %3746
      %3748 = vrot.lane.b32.xlu0 %v3335, 64
      %v3749 = vpop.permute.xlu0 %3748
      %v3751 = vshrl.u32 %v3336, 16
      %v3753 = vshll.u32 %v3336, 16
      %v3755 = vrot.slane %v3753, 1
      %v3756 = vor.u32 %v3751, %v3755
      %v3757 = vsel %vm1346, %v3756, %v3368
      %v3759 = vshll.u32 %v3337, 16
      %v3761 = vrot.slane %v3759, 1
      %v3762 = vsel %vm1346, %v3661, %v3761
      %v3763 = vshrl.u32 %v3337, 16
      %v3765 = vor.u32 %v3763, %v3761
      %v3767 = vshll.u32 %v3338, 16
      %v3769 = vrot.slane %v3767, 1
      %v3770 = vsel %vm1346, %v3765, %v3769
      %v3771 = vshrl.u32 %v3338, 16
      %v3773 = vor.u32 %v3771, %v3769
      %3774 = vrot.lane.b32.xlu0 %v3757, 96
      %v3775 = vpop.permute.xlu0 %3774
      %3776 = vrot.lane.b32.xlu0 %v3377, 96
      %v3777 = vpop.permute.xlu0 %3776
      %3778 = vrot.lane.b32.xlu0 %v3385, 96
      %v3779 = vpop.permute.xlu0 %3778
      %3780 = vrot.lane.b32.xlu0 %v3393, 96
      %v3781 = vpop.permute.xlu0 %3780
      %3782 = vrot.lane.b32.xlu0 %v3401, 96
      %v3783 = vpop.permute.xlu0 %3782
      %3784 = vrot.lane.b32.xlu0 %v3409, 96
      %v3785 = vpop.permute.xlu0 %3784
      %3786 = vrot.lane.b32.xlu0 %v3417, 96
      %v3787 = vpop.permute.xlu0 %3786
      %3788 = vrot.lane.b32.xlu0 %v3425, 96
      %v3789 = vpop.permute.xlu0 %3788
      %3790 = vrot.lane.b32.xlu0 %v3433, 96
      %v3791 = vpop.permute.xlu0 %3790
      %3792 = vrot.lane.b32.xlu0 %v3441, 96
      %v3793 = vpop.permute.xlu0 %3792
      %3794 = vrot.lane.b32.xlu0 %v3449, 96
      %v3795 = vpop.permute.xlu0 %3794
      %3796 = vrot.lane.b32.xlu0 %v3457, 96
      %v3797 = vpop.permute.xlu0 %3796
      %3798 = vrot.lane.b32.xlu0 %v3465, 96
      %v3799 = vpop.permute.xlu0 %3798
      %3800 = vrot.lane.b32.xlu0 %v3658, 96
      %v3801 = vpop.permute.xlu0 %3800
      %3802 = vrot.lane.b32.xlu0 %v3762, 96
      %v3803 = vpop.permute.xlu0 %3802
      %3804 = vrot.lane.b32.xlu0 %v3770, 96
      %v3805 = vpop.permute.xlu0 %3804
      %3806 = vrot.lane.b32.xlu0 %v3773, 96
      %v3807 = vpop.permute.xlu0 %3806
      %v3811 = vrot.slane %v3339, 1
      %v3812 = vsel %vm1533, %v3811, %v3533
      %v3813 = vrot.slane %v3340, 1
      %v3814 = vsel %vm1533, %v3675, %v3813
      %v3815 = vrot.slane %v3341, 1
      %v3816 = vsel %vm1533, %v3813, %v3815
      %v3819 = vsel %vm2152, %v3273, %v3478
      %v3822 = vsel %vm2152, %v3274, %v3480
      %v3825 = vsel %vm2152, %v3275, %v3482
      %v3828 = vsel %vm2152, %v3276, %v3484
      %v3831 = vsel %vm2152, %v3277, %v3486
      %v3834 = vsel %vm2152, %v3278, %v3488
      %v3837 = vsel %vm2152, %v3279, %v3490
      %v3840 = vsel %vm2152, %v3280, %v3492
      %v3843 = vsel %vm2152, %v3281, %v3494
      %v3846 = vsel %vm2152, %v3282, %v3496
      %v3849 = vsel %vm2152, %v3283, %v3498
      %v3852 = vsel %vm2152, %v3284, %v3500
      %v3855 = vsel %vm2152, %v3285, %v3502
      %v3858 = vsel %vm2152, %v3286, %v3504
      %v3861 = vsel %vm2152, %v3287, %v3506
      %v3864 = vsel %vm2152, %v3288, %v3508
      %v3867 = vsel %vm2152, %v3289, %v3510
      %v3869 = vsel %vm2563, %v3819, %v3562
      %v3871 = vsel %vm2563, %v3822, %v3564
      %v3873 = vsel %vm2563, %v3825, %v3566
      %v3875 = vsel %vm2563, %v3828, %v3568
      %v3877 = vsel %vm2563, %v3831, %v3570
      %v3879 = vsel %vm2563, %v3834, %v3572
      %v3881 = vsel %vm2563, %v3837, %v3574
      %v3883 = vsel %vm2563, %v3840, %v3576
      %v3885 = vsel %vm2563, %v3843, %v3578
      %v3887 = vsel %vm2563, %v3846, %v3580
      %v3889 = vsel %vm2563, %v3849, %v3582
      %v3891 = vsel %vm2563, %v3852, %v3584
      %v3893 = vsel %vm2563, %v3855, %v3586
      %v3895 = vsel %vm2563, %v3858, %v3588
      %v3897 = vsel %vm2563, %v3861, %v3590
      %v3899 = vsel %vm2563, %v3864, %v3592
      %v3901 = vsel %vm2563, %v3867, %v3594
      %vm3902 = vcmask 785408
      %v3904 = vsel %vm3902, %v3869, %v3613
      %v3906 = vsel %vm3902, %v3871, %v3615
      %v3908 = vsel %vm3902, %v3873, %v3617
      %v3910 = vsel %vm3902, %v3875, %v3619
      %v3912 = vsel %vm3902, %v3877, %v3621
      %v3914 = vsel %vm3902, %v3879, %v3623
      %v3916 = vsel %vm3902, %v3881, %v3625
      %v3918 = vsel %vm3902, %v3883, %v3627
      %v3920 = vsel %vm3902, %v3885, %v3629
      %v3922 = vsel %vm3902, %v3887, %v3631
      %v3924 = vsel %vm3902, %v3889, %v3633
      %v3926 = vsel %vm3902, %v3891, %v3635
      %v3928 = vsel %vm3902, %v3893, %v3637
      %v3930 = vsel %vm3902, %v3895, %v3639
      %v3932 = vsel %vm3902, %v3897, %v3641
      %v3934 = vsel %vm3902, %v3899, %v3643
      %v3936 = vsel %vm3902, %v3901, %v3645
      %v3939 = vsel %vm2152, %v3653, %v3680
      %v3942 = vsel %vm2152, %v3369, %v3682
      %v3945 = vsel %vm2152, %v3377, %v3684
      %v3948 = vsel %vm2152, %v3385, %v3686
      %v3951 = vsel %vm2152, %v3393, %v3688
      %v3954 = vsel %vm2152, %v3401, %v3690
      %v3957 = vsel %vm2152, %v3409, %v3692
      %v3960 = vsel %vm2152, %v3417, %v3694
      %v3963 = vsel %vm2152, %v3425, %v3696
      %v3966 = vsel %vm2152, %v3433, %v3698
      %v3969 = vsel %vm2152, %v3441, %v3700
      %v3972 = vsel %vm2152, %v3449, %v3702
      %v3975 = vsel %vm2152, %v3457, %v3704
      %v3978 = vsel %vm2152, %v3465, %v3706
      %v3981 = vsel %vm2152, %v3658, %v3708
      %v3984 = vsel %vm2152, %v3666, %v3710
      %v3987 = vsel %vm2152, %v3669, %v3712
      %v3989 = vsel %vm2563, %v3939, %v3717
      %v3991 = vsel %vm2563, %v3942, %v3719
      %v3993 = vsel %vm2563, %v3945, %v3721
      %v3995 = vsel %vm2563, %v3948, %v3723
      %v3997 = vsel %vm2563, %v3951, %v3725
      %v3999 = vsel %vm2563, %v3954, %v3727
      %v4001 = vsel %vm2563, %v3957, %v3729
      %v4003 = vsel %vm2563, %v3960, %v3731
      %v4005 = vsel %vm2563, %v3963, %v3733
      %v4007 = vsel %vm2563, %v3966, %v3735
      %v4009 = vsel %vm2563, %v3969, %v3737
      %v4011 = vsel %vm2563, %v3972, %v3739
      %v4013 = vsel %vm2563, %v3975, %v3741
      %v4015 = vsel %vm2563, %v3978, %v3743
      %v4017 = vsel %vm2563, %v3981, %v3745
      %v4019 = vsel %vm2563, %v3984, %v3747
      %v4021 = vsel %vm2563, %v3987, %v3749
      %v4023 = vsel %vm3902, %v3989, %v3775
      %v4025 = vsel %vm3902, %v3991, %v3777
      %v4027 = vsel %vm3902, %v3993, %v3779
      %v4029 = vsel %vm3902, %v3995, %v3781
      %v4031 = vsel %vm3902, %v3997, %v3783
      %v4033 = vsel %vm3902, %v3999, %v3785
      %v4035 = vsel %vm3902, %v4001, %v3787
      %v4037 = vsel %vm3902, %v4003, %v3789
      %v4039 = vsel %vm3902, %v4005, %v3791
      %v4041 = vsel %vm3902, %v4007, %v3793
      %v4043 = vsel %vm3902, %v4009, %v3795
      %v4045 = vsel %vm3902, %v4011, %v3797
      %v4047 = vsel %vm3902, %v4013, %v3799
      %v4049 = vsel %vm3902, %v4015, %v3801
      %v4051 = vsel %vm3902, %v4017, %v3803
      %v4053 = vsel %vm3902, %v4019, %v3805
      %v4055 = vsel %vm3902, %v4021, %v3807
      %v4056 = vld [vmem:[%s3] sm:$0xf]
      %v4057 = vld [vmem:[%s3 + $0x4] sm:$0xf]
      %v4058 = vld [vmem:[%s3 + $0x8] sm:$0xf]
      %v4059 = vld [vmem:[%s3 + $0xc] sm:$0xf]
      %v4060 = vld [vmem:[%s3 + $0x10] sm:$0xf]
      %v4061 = vld [vmem:[%s3 + $0x14] sm:$0xf]
      %v4062 = vld [vmem:[%s3 + $0x18] sm:$0xf]
      %v4063 = vld [vmem:[%s3 + $0x1c] sm:$0xf]
      %v4064 = vld [vmem:[%s3 + $0x20] sm:$0xf]
      %v4065 = vld [vmem:[%s3 + $0x24] sm:$0xf]
      %v4066 = vld [vmem:[%s3 + $0x28] sm:$0xf]
      %v4067 = vld [vmem:[%s3 + $0x2c] sm:$0xf]
      %v4068 = vld [vmem:[%s3 + $0x30] sm:$0xf]
      %v4069 = vld [vmem:[%s3 + $0x34] sm:$0xf]
      %v4070 = vld [vmem:[%s3 + $0x38] sm:$0xf]
      %v4071 = vld [vmem:[%s3 + $0x3c] sm:$0xf]
      %v4072 = vld [vmem:[%s3 + $0x40] sm:$0xf]
      %v4073 = vld [vmem:[%s3 + $0x44] sm:$0xf]
      %v4074 = vld [vmem:[%s3 + $0x48] sm:$0xf]
      %v4075 = vld [vmem:[%s3 + $0x4c] sm:$0xf]
      %v4076 = vld [vmem:[%s3 + $0x50] sm:$0xf]
      %v4077 = vld [vmem:[%s3 + $0x54] sm:$0xf]
      %v4078 = vld [vmem:[%s3 + $0x58] sm:$0xf]
      %v4079 = vld [vmem:[%s3 + $0x5c] sm:$0xf]
      %v4080 = vld [vmem:[%s3 + $0x60] sm:$0xf]
      %v4081 = vld [vmem:[%s3 + $0x64] sm:$0xf]
      %v4082 = vld [vmem:[%s3 + $0x68] sm:$0xf]
      %v4083 = vld [vmem:[%s3 + $0x6c] sm:$0xf]
      %v4084 = vld [vmem:[%s3 + $0x70] sm:$0xf]
      %v4085 = vld [vmem:[%s3 + $0x74] sm:$0xf]
      %v4086 = vld [vmem:[%s3 + $0x78] sm:$0xf]
      %v4087 = vld [vmem:[%s3 + $0x7c] sm:$0xf]
      %v4088 = vld [vmem:[%s3 + $0x80] sm:$0xf]
      %v4089 = vld [vmem:[%s3 + $0x84] sm:$0xf]
      %v4090 = vld [vmem:[%s3 + $0x88] sm:$0xf]
      %v4091 = vld [vmem:[%s3 + $0x8c] sm:$0xf]
      %v4093 = vlaneseq
      %v4094 = vshrl.u32 %v4093, 7
      %v4095 = vsub.s32 0, %v4094
      %v4096 = vrot.slane %v3272, %v4095
      %v4098 = vshrl.u32 %v3904, 16
      %v4100 = vrot.slane %v4098, 3
      %v4101 = vshll.u32 %v3904, 16
      %v4103 = vrot.slane %v4101, 4
      %v4104 = vor.u32 %v4100, %v4103
      %v4105 = vshrl.u32 %v3906, 16
      %v4107 = vrot.slane %v4105, 3
      %v4108 = vshll.u32 %v3906, 16
      %v4110 = vrot.slane %v4108, 4
      %v4111 = vor.u32 %v4107, %v4110
      %v4112 = vsel %vm2198, %v4104, %v4111
      %v4113 = vshrl.u32 %v4023, 16
      %v4115 = vrot.slane %v4113, 3
      %v4116 = vshll.u32 %v4023, 16
      %v4118 = vrot.slane %v4116, 4
      %v4119 = vor.u32 %v4115, %v4118
      %v4120 = vshrl.u32 %v4025, 16
      %v4122 = vrot.slane %v4120, 3
      %v4123 = vshll.u32 %v4025, 16
      %v4125 = vrot.slane %v4123, 4
      %v4126 = vor.u32 %v4122, %v4125
      %v4127 = vsel %vm2198, %v4119, %v4126
      %v4129 = vshrl.u32 %v3812, 16
      %v4131 = vrot.slane %v4129, 3
      %v4132 = vshll.u32 %v3812, 16
      %v4134 = vrot.slane %v4132, 4
      %v4135 = vor.u32 %v4131, %v4134
      %v4137 = vshrl.u32 %v3536, 16
      %v4139 = vrot.slane %v4137, 3
      %v4140 = vshll.u32 %v3536, 16
      %v4142 = vrot.slane %v4140, 4
      %v4143 = vor.u32 %v4139, %v4142
      %v4144 = vsel %vm2198, %v4135, %v4143
      %v4145 = vshrl.u32 %v3908, 16
      %v4147 = vrot.slane %v4145, 3
      %v4148 = vshll.u32 %v3908, 16
      %v4150 = vrot.slane %v4148, 4
      %v4151 = vor.u32 %v4147, %v4150
      %v4152 = vsel %vm2198, %v4111, %v4151
      %v4153 = vshrl.u32 %v4027, 16
      %v4155 = vrot.slane %v4153, 3
      %v4156 = vshll.u32 %v4027, 16
      %v4158 = vrot.slane %v4156, 4
      %v4159 = vor.u32 %v4155, %v4158
      %v4160 = vsel %vm2198, %v4126, %v4159
      %v4162 = vshrl.u32 %v3538, 16
      %v4164 = vrot.slane %v4162, 3
      %v4165 = vshll.u32 %v3538, 16
      %v4167 = vrot.slane %v4165, 4
      %v4168 = vor.u32 %v4164, %v4167
      %v4169 = vsel %vm2198, %v4143, %v4168
      %v4170 = vshrl.u32 %v3910, 16
      %v4172 = vrot.slane %v4170, 3
      %v4173 = vshll.u32 %v3910, 16
      %v4175 = vrot.slane %v4173, 4
      %v4176 = vor.u32 %v4172, %v4175
      %v4177 = vsel %vm2198, %v4151, %v4176
      %v4178 = vshrl.u32 %v4029, 16
      %v4180 = vrot.slane %v4178, 3
      %v4181 = vshll.u32 %v4029, 16
      %v4183 = vrot.slane %v4181, 4
      %v4184 = vor.u32 %v4180, %v4183
      %v4185 = vsel %vm2198, %v4159, %v4184
      %v4187 = vshrl.u32 %v3540, 16
      %v4189 = vrot.slane %v4187, 3
      %v4190 = vshll.u32 %v3540, 16
      %v4192 = vrot.slane %v4190, 4
      %v4193 = vor.u32 %v4189, %v4192
      %v4194 = vsel %vm2198, %v4168, %v4193
      %v4195 = vshrl.u32 %v3912, 16
      %v4197 = vrot.slane %v4195, 3
      %v4198 = vshll.u32 %v3912, 16
      %v4200 = vrot.slane %v4198, 4
      %v4201 = vor.u32 %v4197, %v4200
      %v4202 = vsel %vm2198, %v4176, %v4201
      %v4203 = vshrl.u32 %v4031, 16
      %v4205 = vrot.slane %v4203, 3
      %v4206 = vshll.u32 %v4031, 16
      %v4208 = vrot.slane %v4206, 4
      %v4209 = vor.u32 %v4205, %v4208
      %v4210 = vsel %vm2198, %v4184, %v4209
      %v4212 = vshrl.u32 %v3542, 16
      %v4214 = vrot.slane %v4212, 3
      %v4215 = vshll.u32 %v3542, 16
      %v4217 = vrot.slane %v4215, 4
      %v4218 = vor.u32 %v4214, %v4217
      %v4219 = vsel %vm2198, %v4193, %v4218
      %v4220 = vshrl.u32 %v3914, 16
      %v4222 = vrot.slane %v4220, 3
      %v4223 = vshll.u32 %v3914, 16
      %v4225 = vrot.slane %v4223, 4
      %v4226 = vor.u32 %v4222, %v4225
      %v4227 = vsel %vm2198, %v4201, %v4226
      %v4228 = vshrl.u32 %v4033, 16
      %v4230 = vrot.slane %v4228, 3
      %v4231 = vshll.u32 %v4033, 16
      %v4233 = vrot.slane %v4231, 4
      %v4234 = vor.u32 %v4230, %v4233
      %v4235 = vsel %vm2198, %v4209, %v4234
      %v4237 = vshrl.u32 %v3544, 16
      %v4239 = vrot.slane %v4237, 3
      %v4240 = vshll.u32 %v3544, 16
      %v4242 = vrot.slane %v4240, 4
      %v4243 = vor.u32 %v4239, %v4242
      %v4244 = vsel %vm2198, %v4218, %v4243
      %v4245 = vshrl.u32 %v3916, 16
      %v4247 = vrot.slane %v4245, 3
      %v4248 = vshll.u32 %v3916, 16
      %v4250 = vrot.slane %v4248, 4
      %v4251 = vor.u32 %v4247, %v4250
      %v4252 = vsel %vm2198, %v4226, %v4251
      %v4253 = vshrl.u32 %v4035, 16
      %v4255 = vrot.slane %v4253, 3
      %v4256 = vshll.u32 %v4035, 16
      %v4258 = vrot.slane %v4256, 4
      %v4259 = vor.u32 %v4255, %v4258
      %v4260 = vsel %vm2198, %v4234, %v4259
      %v4262 = vshrl.u32 %v3546, 16
      %v4264 = vrot.slane %v4262, 3
      %v4265 = vshll.u32 %v3546, 16
      %v4267 = vrot.slane %v4265, 4
      %v4268 = vor.u32 %v4264, %v4267
      %v4269 = vsel %vm2198, %v4243, %v4268
      %v4270 = vshrl.u32 %v3918, 16
      %v4272 = vrot.slane %v4270, 3
      %v4273 = vshll.u32 %v3918, 16
      %v4275 = vrot.slane %v4273, 4
      %v4276 = vor.u32 %v4272, %v4275
      %v4277 = vsel %vm2198, %v4251, %v4276
      %v4278 = vshrl.u32 %v4037, 16
      %v4280 = vrot.slane %v4278, 3
      %v4281 = vshll.u32 %v4037, 16
      %v4283 = vrot.slane %v4281, 4
      %v4284 = vor.u32 %v4280, %v4283
      %v4285 = vsel %vm2198, %v4259, %v4284
      %v4287 = vshrl.u32 %v3548, 16
      %v4289 = vrot.slane %v4287, 3
      %v4290 = vshll.u32 %v3548, 16
      %v4292 = vrot.slane %v4290, 4
      %v4293 = vor.u32 %v4289, %v4292
      %v4294 = vsel %vm2198, %v4268, %v4293
      %v4295 = vshrl.u32 %v3920, 16
      %v4297 = vrot.slane %v4295, 3
      %v4298 = vshll.u32 %v3920, 16
      %v4300 = vrot.slane %v4298, 4
      %v4301 = vor.u32 %v4297, %v4300
      %v4302 = vsel %vm2198, %v4276, %v4301
      %v4303 = vshrl.u32 %v4039, 16
      %v4305 = vrot.slane %v4303, 3
      %v4306 = vshll.u32 %v4039, 16
      %v4308 = vrot.slane %v4306, 4
      %v4309 = vor.u32 %v4305, %v4308
      %v4310 = vsel %vm2198, %v4284, %v4309
      %v4312 = vshrl.u32 %v3550, 16
      %v4314 = vrot.slane %v4312, 3
      %v4315 = vshll.u32 %v3550, 16
      %v4317 = vrot.slane %v4315, 4
      %v4318 = vor.u32 %v4314, %v4317
      %v4319 = vsel %vm2198, %v4293, %v4318
      %v4320 = vshrl.u32 %v3922, 16
      %v4322 = vrot.slane %v4320, 3
      %v4323 = vshll.u32 %v3922, 16
      %v4325 = vrot.slane %v4323, 4
      %v4326 = vor.u32 %v4322, %v4325
      %v4327 = vsel %vm2198, %v4301, %v4326
      %v4328 = vshrl.u32 %v4041, 16
      %v4330 = vrot.slane %v4328, 3
      %v4331 = vshll.u32 %v4041, 16
      %v4333 = vrot.slane %v4331, 4
      %v4334 = vor.u32 %v4330, %v4333
      %v4335 = vsel %vm2198, %v4309, %v4334
      %v4337 = vshrl.u32 %v3552, 16
      %v4339 = vrot.slane %v4337, 3
      %v4340 = vshll.u32 %v3552, 16
      %v4342 = vrot.slane %v4340, 4
      %v4343 = vor.u32 %v4339, %v4342
      %v4344 = vsel %vm2198, %v4318, %v4343
      %v4345 = vshrl.u32 %v3924, 16
      %v4347 = vrot.slane %v4345, 3
      %v4348 = vshll.u32 %v3924, 16
      %v4350 = vrot.slane %v4348, 4
      %v4351 = vor.u32 %v4347, %v4350
      %v4352 = vsel %vm2198, %v4326, %v4351
      %v4353 = vshrl.u32 %v4043, 16
      %v4355 = vrot.slane %v4353, 3
      %v4356 = vshll.u32 %v4043, 16
      %v4358 = vrot.slane %v4356, 4
      %v4359 = vor.u32 %v4355, %v4358
      %v4360 = vsel %vm2198, %v4334, %v4359
      %v4362 = vshrl.u32 %v3554, 16
      %v4364 = vrot.slane %v4362, 3
      %v4365 = vshll.u32 %v3554, 16
      %v4367 = vrot.slane %v4365, 4
      %v4368 = vor.u32 %v4364, %v4367
      %v4369 = vsel %vm2198, %v4343, %v4368
      %v4370 = vshrl.u32 %v3926, 16
      %v4372 = vrot.slane %v4370, 3
      %v4373 = vshll.u32 %v3926, 16
      %v4375 = vrot.slane %v4373, 4
      %v4376 = vor.u32 %v4372, %v4375
      %v4377 = vsel %vm2198, %v4351, %v4376
      %v4378 = vshrl.u32 %v4045, 16
      %v4380 = vrot.slane %v4378, 3
      %v4381 = vshll.u32 %v4045, 16
      %v4383 = vrot.slane %v4381, 4
      %v4384 = vor.u32 %v4380, %v4383
      %v4385 = vsel %vm2198, %v4359, %v4384
      %v4387 = vshrl.u32 %v3556, 16
      %v4389 = vrot.slane %v4387, 3
      %v4390 = vshll.u32 %v3556, 16
      %v4392 = vrot.slane %v4390, 4
      %v4393 = vor.u32 %v4389, %v4392
      %v4394 = vsel %vm2198, %v4368, %v4393
      %v4395 = vshrl.u32 %v3928, 16
      %v4397 = vrot.slane %v4395, 3
      %v4398 = vshll.u32 %v3928, 16
      %v4400 = vrot.slane %v4398, 4
      %v4401 = vor.u32 %v4397, %v4400
      %v4402 = vsel %vm2198, %v4376, %v4401
      %v4403 = vshrl.u32 %v4047, 16
      %v4405 = vrot.slane %v4403, 3
      %v4406 = vshll.u32 %v4047, 16
      %v4408 = vrot.slane %v4406, 4
      %v4409 = vor.u32 %v4405, %v4408
      %v4410 = vsel %vm2198, %v4384, %v4409
      %v4412 = vshrl.u32 %v3558, 16
      %v4414 = vrot.slane %v4412, 3
      %v4415 = vshll.u32 %v3558, 16
      %v4417 = vrot.slane %v4415, 4
      %v4418 = vor.u32 %v4414, %v4417
      %v4419 = vsel %vm2198, %v4393, %v4418
      %v4420 = vshrl.u32 %v3930, 16
      %v4422 = vrot.slane %v4420, 3
      %v4423 = vshll.u32 %v3930, 16
      %v4425 = vrot.slane %v4423, 4
      %v4426 = vor.u32 %v4422, %v4425
      %v4427 = vsel %vm2198, %v4401, %v4426
      %v4428 = vshrl.u32 %v4049, 16
      %v4430 = vrot.slane %v4428, 3
      %v4431 = vshll.u32 %v4049, 16
      %v4433 = vrot.slane %v4431, 4
      %v4434 = vor.u32 %v4430, %v4433
      %v4435 = vsel %vm2198, %v4409, %v4434
      %v4437 = vshrl.u32 %v3676, 16
      %v4439 = vrot.slane %v4437, 3
      %v4440 = vshll.u32 %v3676, 16
      %v4442 = vrot.slane %v4440, 4
      %v4443 = vor.u32 %v4439, %v4442
      %v4444 = vsel %vm2198, %v4418, %v4443
      %v4445 = vshrl.u32 %v3932, 16
      %v4447 = vrot.slane %v4445, 3
      %v4448 = vshll.u32 %v3932, 16
      %v4450 = vrot.slane %v4448, 4
      %v4451 = vor.u32 %v4447, %v4450
      %v4452 = vsel %vm2198, %v4426, %v4451
      %v4453 = vshrl.u32 %v4051, 16
      %v4455 = vrot.slane %v4453, 3
      %v4456 = vshll.u32 %v4051, 16
      %v4458 = vrot.slane %v4456, 4
      %v4459 = vor.u32 %v4455, %v4458
      %v4460 = vsel %vm2198, %v4434, %v4459
      %v4462 = vshrl.u32 %v3814, 16
      %v4464 = vrot.slane %v4462, 3
      %v4465 = vshll.u32 %v3814, 16
      %v4467 = vrot.slane %v4465, 4
      %v4468 = vor.u32 %v4464, %v4467
      %v4469 = vsel %vm2198, %v4443, %v4468
      %v4470 = vshrl.u32 %v3934, 16
      %v4472 = vrot.slane %v4470, 3
      %v4473 = vshll.u32 %v3934, 16
      %v4475 = vrot.slane %v4473, 4
      %v4476 = vor.u32 %v4472, %v4475
      %v4477 = vsel %vm2198, %v4451, %v4476
      %v4478 = vshrl.u32 %v4053, 16
      %v4480 = vrot.slane %v4478, 3
      %v4481 = vshll.u32 %v4053, 16
      %v4483 = vrot.slane %v4481, 4
      %v4484 = vor.u32 %v4480, %v4483
      %v4485 = vsel %vm2198, %v4459, %v4484
      %v4487 = vshrl.u32 %v3816, 16
      %v4489 = vrot.slane %v4487, 3
      %v4490 = vshll.u32 %v3816, 16
      %v4492 = vrot.slane %v4490, 4
      %v4493 = vor.u32 %v4489, %v4492
      %v4494 = vsel %vm2198, %v4468, %v4493
      %v4495 = vshrl.u32 %v3936, 16
      %v4497 = vrot.slane %v4495, 3
      %v4498 = vshll.u32 %v3936, 16
      %v4500 = vrot.slane %v4498, 4
      %v4501 = vor.u32 %v4497, %v4500
      %v4502 = vsel %vm2198, %v4476, %v4501
      %v4503 = vshrl.u32 %v4055, 16
      %v4505 = vrot.slane %v4503, 3
      %v4506 = vshll.u32 %v4055, 16
      %v4508 = vrot.slane %v4506, 4
      %v4509 = vor.u32 %v4505, %v4508
      %v4510 = vsel %vm2198, %v4484, %v4509
      %v4512 = vshrl.u32 %v3815, 16
      %v4514 = vrot.slane %v4512, 3
      %v4515 = vshll.u32 %v3815, 16
      %v4517 = vrot.slane %v4515, 4
      %v4518 = vor.u32 %v4514, %v4517
      %v4519 = vsel %vm2198, %v4493, %v4518
      %v4588 = vunpack.c.l.b16 %v4056
      %v4589 = vunpack.c.l.b16 %v4057
      %v4590 = vunpack.c.l.b16 %v4058
      %v4591 = vunpack.c.l.b16 %v4059
      %v4592 = vunpack.c.l.b16 %v4060
      %v4593 = vunpack.c.l.b16 %v4061
      %v4594 = vunpack.c.l.b16 %v4062
      %v4595 = vunpack.c.l.b16 %v4063
      %v4596 = vunpack.c.l.b16 %v4064
      %v4597 = vunpack.c.l.b16 %v4065
      %v4598 = vunpack.c.l.b16 %v4066
      %v4599 = vunpack.c.l.b16 %v4067
      %v4600 = vunpack.c.l.b16 %v4068
      %v4601 = vunpack.c.l.b16 %v4069
      %v4602 = vunpack.c.l.b16 %v4070
      %v4603 = vunpack.c.l.b16 %v4071
      %v4604 = vunpack.c.l.b16 %v4072
      %v4605 = vunpack.c.l.b16 %v4073
      %v4606 = vunpack.c.l.b16 %v4074
      %v4607 = vunpack.c.l.b16 %v4075
      %v4608 = vunpack.c.l.b16 %v4076
      %v4609 = vunpack.c.l.b16 %v4077
      %v4610 = vunpack.c.l.b16 %v4078
      %v4611 = vunpack.c.l.b16 %v4079
      %v4612 = vunpack.c.l.b16 %v4080
      %v4613 = vunpack.c.l.b16 %v4081
      %v4614 = vunpack.c.l.b16 %v4082
      %v4615 = vunpack.c.l.b16 %v4083
      %v4616 = vunpack.c.l.b16 %v4084
      %v4617 = vunpack.c.l.b16 %v4085
      %v4618 = vunpack.c.l.b16 %v4086
      %v4619 = vunpack.c.l.b16 %v4087
      %v4620 = vunpack.c.l.b16 %v4088
      %v4621 = vunpack.c.l.b16 %v4089
      %v4622 = vunpack.c.l.b16 %v4090
      %v4623 = vunpack.c.l.b16 %v4091
      %v4624 = vpack.c.b16 %v4589, %v4588
      %v4625 = vpack.c.b16 %v4591, %v4590
      %v4626 = vpack.c.b16 %v4593, %v4592
      %v4627 = vpack.c.b16 %v4595, %v4594
      %v4628 = vpack.c.b16 %v4597, %v4596
      %v4629 = vpack.c.b16 %v4599, %v4598
      %v4630 = vpack.c.b16 %v4601, %v4600
      %v4631 = vpack.c.b16 %v4603, %v4602
      %v4632 = vpack.c.b16 %v4605, %v4604
      %v4633 = vpack.c.b16 %v4607, %v4606
      %v4634 = vpack.c.b16 %v4609, %v4608
      %v4635 = vpack.c.b16 %v4611, %v4610
      %v4636 = vpack.c.b16 %v4613, %v4612
      %v4637 = vpack.c.b16 %v4615, %v4614
      %v4638 = vpack.c.b16 %v4617, %v4616
      %v4639 = vpack.c.b16 %v4619, %v4618
      %v4640 = vpack.c.b16 %v4621, %v4620
      %v4641 = vpack.c.b16 %v4623, %v4622
      %v4661 = vsel %vm2152, %v4144, 0
      %v4664 = vsel %vm2152, %v4169, 0
      %v4667 = vsel %vm2152, %v4194, 0
      %v4670 = vsel %vm2152, %v4219, 0
      %v4673 = vsel %vm2152, %v4244, 0
      %v4676 = vsel %vm2152, %v4269, 0
      %v4679 = vsel %vm2152, %v4294, 0
      %v4682 = vsel %vm2152, %v4319, 0
      %v4685 = vsel %vm2152, %v4344, 0
      %v4688 = vsel %vm2152, %v4369, 0
      %v4691 = vsel %vm2152, %v4394, 0
      %v4694 = vsel %vm2152, %v4419, 0
      %v4697 = vsel %vm2152, %v4444, 0
      %v4700 = vsel %vm2152, %v4469, 0
      %v4703 = vsel %vm2152, %v4494, 0
      %v4706 = vsel %vm2152, %v4519, 0
      %4708 = vmatprep.subr.bf16.mxu0 0
      %4709 = vmatpush1.bf16.msra.mxu0 %v4624
      %4710 = vmatprep.subr.bf16.mxu0 0
      %4711 = vmatpush1.bf16.msra.mxu0 %v4625
      %4712 = vmatprep.subr.bf16.mxu0 0
      %4713 = vmatpush1.bf16.msra.mxu0 %v4626
      %4714 = vmatprep.subr.bf16.mxu0 0
      %4715 = vmatpush1.bf16.msra.mxu0 %v4627
      %4716 = vmatprep.subr.bf16.mxu0 0
      %4717 = vmatpush1.bf16.msra.mxu0 %v4628
      %4718 = vmatprep.subr.bf16.mxu0 0
      %4719 = vmatpush1.bf16.msra.mxu0 %v4629
      %4720 = vmatprep.subr.bf16.mxu0 0
      %4721 = vmatpush1.bf16.msra.mxu0 %v4630
      %4722 = vmatprep.subr.bf16.mxu0 0
      %4723 = vmatpush1.bf16.msra.mxu0 %v4631
      %4724 = vmatprep.subr.bf16.mxu0 0
      %4725 = vmatpush1.bf16.msra.mxu0 %v4632
      %4726 = vmatprep.subr.bf16.mxu0 0
      %4727 = vmatpush1.bf16.msra.mxu0 %v4633
      %4728 = vmatprep.subr.bf16.mxu0 0
      %4729 = vmatpush1.bf16.msra.mxu0 %v4634
      %4730 = vmatprep.subr.bf16.mxu0 0
      %4731 = vmatpush1.bf16.msra.mxu0 %v4635
      %4732 = vmatprep.subr.bf16.mxu0 0
      %4733 = vmatpush1.bf16.msra.mxu0 %v4636
      %4734 = vmatprep.subr.bf16.mxu0 0
      %4735 = vmatpush1.bf16.msra.mxu0 %v4637
      %4736 = vmatprep.subr.bf16.mxu0 0
      %4737 = vmatpush1.bf16.msra.mxu0 %v4638
      %4738 = vmatprep.subr.bf16.mxu0 0
      %4739 = vmatpush1.bf16.msra.mxu0 %v4639
      %4740 = vmatprep.mubr.bf16.mxu0 %v4127
      %4741 = vmatmul.mubr.bf16.gmra.mrb[0].mxu0 %v4112
      %v4742 = vpop.f32.mrb[0].mxu0
      %v4743 = vadd.f32 %v4096, %v4742
      %v4744 = vpop.f32.mrb[0].mxu0
      %v4745 = vpop.f32.mrb[0].mxu0
      %v4746 = vadd.f32 %v4096, %v4745
      %v4747 = vpop.f32.mrb[0].mxu0
      %4748 = vmatprep.mubr.bf16.mxu0 %v4160
      %4749 = vmatmul.mubr.bf16.gmra.mrb[0].mxu0 %v4152
      %v4750 = vpop.f32.mrb[0].mxu0
      %v4751 = vadd.f32 %v4096, %v4750
      %v4752 = vpop.f32.mrb[0].mxu0
      %v4753 = vpop.f32.mrb[0].mxu0
      %v4754 = vadd.f32 %v4096, %v4753
      %v4755 = vpop.f32.mrb[0].mxu0
      %4756 = vmatprep.mubr.bf16.mxu0 %v4185
      %4757 = vmatmul.mubr.bf16.gmra.mrb[0].mxu0 %v4177
      %v4758 = vpop.f32.mrb[0].mxu0
      %v4759 = vadd.f32 %v4096, %v4758
      %v4760 = vpop.f32.mrb[0].mxu0
      %v4761 = vpop.f32.mrb[0].mxu0
      %v4762 = vadd.f32 %v4096, %v4761
      %v4763 = vpop.f32.mrb[0].mxu0
      %4764 = vmatprep.mubr.bf16.mxu0 %v4210
      %4765 = vmatmul.mubr.bf16.gmra.mrb[0].mxu0 %v4202
      %v4766 = vpop.f32.mrb[0].mxu0
      %v4767 = vadd.f32 %v4096, %v4766
      %v4768 = vpop.f32.mrb[0].mxu0
      %v4769 = vpop.f32.mrb[0].mxu0
      %v4770 = vadd.f32 %v4096, %v4769
      %v4771 = vpop.f32.mrb[0].mxu0
      %4772 = vmatprep.mubr.bf16.mxu0 %v4235
      %4773 = vmatmul.mubr.bf16.gmra.mrb[0].mxu0 %v4227
      %v4774 = vpop.f32.mrb[0].mxu0
      %v4775 = vadd.f32 %v4096, %v4774
      %v4776 = vpop.f32.mrb[0].mxu0
      %v4777 = vpop.f32.mrb[0].mxu0
      %v4778 = vadd.f32 %v4096, %v4777
      %v4779 = vpop.f32.mrb[0].mxu0
      %4780 = vmatprep.mubr.bf16.mxu0 %v4260
      %4781 = vmatmul.mubr.bf16.gmra.mrb[0].mxu0 %v4252
      %v4782 = vpop.f32.mrb[0].mxu0
      %v4783 = vadd.f32 %v4096, %v4782
      %v4784 = vpop.f32.mrb[0].mxu0
      %v4785 = vpop.f32.mrb[0].mxu0
      %v4786 = vadd.f32 %v4096, %v4785
      %v4787 = vpop.f32.mrb[0].mxu0
      %4788 = vmatprep.mubr.bf16.mxu0 %v4285
      %4789 = vmatmul.mubr.bf16.gmra.mrb[0].mxu0 %v4277
      %v4790 = vpop.f32.mrb[0].mxu0
      %v4791 = vadd.f32 %v4096, %v4790
      %v4792 = vpop.f32.mrb[0].mxu0
      %v4793 = vpop.f32.mrb[0].mxu0
      %v4794 = vadd.f32 %v4096, %v4793
      %v4795 = vpop.f32.mrb[0].mxu0
      %4796 = vmatprep.mubr.bf16.mxu0 %v4310
      %4797 = vmatmul.mubr.bf16.gmra.mrb[0].mxu0 %v4302
      %v4798 = vpop.f32.mrb[0].mxu0
      %v4799 = vadd.f32 %v4096, %v4798
      %v4800 = vpop.f32.mrb[0].mxu0
      %v4801 = vpop.f32.mrb[0].mxu0
      %v4802 = vadd.f32 %v4096, %v4801
      %v4803 = vpop.f32.mrb[0].mxu0
      %4804 = vmatprep.mubr.bf16.mxu0 %v4335
      %4805 = vmatmul.mubr.bf16.gmra.mrb[0].mxu0 %v4327
      %v4806 = vpop.f32.mrb[0].mxu0
      %v4807 = vadd.f32 %v4096, %v4806
      %v4808 = vpop.f32.mrb[0].mxu0
      %v4809 = vpop.f32.mrb[0].mxu0
      %v4810 = vadd.f32 %v4096, %v4809
      %v4811 = vpop.f32.mrb[0].mxu0
      %4812 = vmatprep.mubr.bf16.mxu0 %v4360
      %4813 = vmatmul.mubr.bf16.gmra.mrb[0].mxu0 %v4352
      %v4814 = vpop.f32.mrb[0].mxu0
      %v4815 = vadd.f32 %v4096, %v4814
      %v4816 = vpop.f32.mrb[0].mxu0
      %v4817 = vpop.f32.mrb[0].mxu0
      %v4818 = vadd.f32 %v4096, %v4817
      %v4819 = vpop.f32.mrb[0].mxu0
      %4820 = vmatprep.mubr.bf16.mxu0 %v4385
      %4821 = vmatmul.mubr.bf16.gmra.mrb[0].mxu0 %v4377
      %v4822 = vpop.f32.mrb[0].mxu0
      %v4823 = vadd.f32 %v4096, %v4822
      %v4824 = vpop.f32.mrb[0].mxu0
      %v4825 = vpop.f32.mrb[0].mxu0
      %v4826 = vadd.f32 %v4096, %v4825
      %v4827 = vpop.f32.mrb[0].mxu0
      %4828 = vmatprep.mubr.bf16.mxu0 %v4410
      %4829 = vmatmul.mubr.bf16.gmra.mrb[0].mxu0 %v4402
      %v4830 = vpop.f32.mrb[0].mxu0
      %v4831 = vadd.f32 %v4096, %v4830
      %v4832 = vpop.f32.mrb[0].mxu0
      %v4833 = vpop.f32.mrb[0].mxu0
      %v4834 = vadd.f32 %v4096, %v4833
      %v4835 = vpop.f32.mrb[0].mxu0
      %4836 = vmatprep.mubr.bf16.mxu0 %v4435
      %4837 = vmatmul.mubr.bf16.gmra.mrb[0].mxu0 %v4427
      %v4838 = vpop.f32.mrb[0].mxu0
      %v4839 = vadd.f32 %v4096, %v4838
      %v4840 = vpop.f32.mrb[0].mxu0
      %v4841 = vpop.f32.mrb[0].mxu0
      %v4842 = vadd.f32 %v4096, %v4841
      %v4843 = vpop.f32.mrb[0].mxu0
      %4844 = vmatprep.mubr.bf16.mxu0 %v4460
      %4845 = vmatmul.mubr.bf16.gmra.mrb[0].mxu0 %v4452
      %v4846 = vpop.f32.mrb[0].mxu0
      %v4847 = vadd.f32 %v4096, %v4846
      %v4848 = vpop.f32.mrb[0].mxu0
      %v4849 = vpop.f32.mrb[0].mxu0
      %v4850 = vadd.f32 %v4096, %v4849
      %v4851 = vpop.f32.mrb[0].mxu0
      %4852 = vmatprep.mubr.bf16.mxu0 %v4485
      %4853 = vmatmul.mubr.bf16.gmra.mrb[0].mxu0 %v4477
      %v4854 = vpop.f32.mrb[0].mxu0
      %v4855 = vadd.f32 %v4096, %v4854
      %v4856 = vpop.f32.mrb[0].mxu0
      %v4857 = vpop.f32.mrb[0].mxu0
      %v4858 = vadd.f32 %v4096, %v4857
      %v4859 = vpop.f32.mrb[0].mxu0
      %4860 = vmatprep.mubr.bf16.mxu0 %v4510
      %4861 = vmatmul.mubr.bf16.gmra.mrb[0].mxu0 %v4502
      %v4862 = vpop.f32.mrb[0].mxu0
      %v4863 = vadd.f32 %v4096, %v4862
      %v4864 = vpop.f32.mrb[0].mxu0
      %v4865 = vpop.f32.mrb[0].mxu0
      %v4866 = vadd.f32 %v4096, %v4865
      %v4867 = vpop.f32.mrb[0].mxu0
      %4868 = vdwg.mxu0
      %4869 = vmatprep.subr.bf16.mxu0 0
      %4870 = vmatpush1.bf16.msra.mxu0 %v4640
      %4871 = vmatprep.subr.bf16.mxu0 0
      %4872 = vmatpush1.bf16.msra.mxu0 %v4641
      %4873 = vmatprep.subr.bf16.mxu0 0
      %4874 = vmatpush1.bf16.msra.mxu0 0
      %4875 = vmatprep.subr.bf16.mxu0 0
      %4876 = vmatpush1.bf16.msra.mxu0 0
      %4877 = vmatprep.subr.bf16.mxu0 0
      %4878 = vmatpush1.bf16.msra.mxu0 0
      %4879 = vmatprep.subr.bf16.mxu0 0
      %4880 = vmatpush1.bf16.msra.mxu0 0
      %4881 = vmatprep.subr.bf16.mxu0 0
      %4882 = vmatpush1.bf16.msra.mxu0 0
      %4883 = vmatprep.subr.bf16.mxu0 0
      %4884 = vmatpush1.bf16.msra.mxu0 0
      %4885 = vmatprep.subr.bf16.mxu0 0
      %4886 = vmatpush1.bf16.msra.mxu0 0
      %4887 = vmatprep.subr.bf16.mxu0 0
      %4888 = vmatpush1.bf16.msra.mxu0 0
      %4889 = vmatprep.subr.bf16.mxu0 0
      %4890 = vmatpush1.bf16.msra.mxu0 0
      %4891 = vmatprep.subr.bf16.mxu0 0
      %4892 = vmatpush1.bf16.msra.mxu0 0
      %4893 = vmatprep.subr.bf16.mxu0 0
      %4894 = vmatpush1.bf16.msra.mxu0 0
      %4895 = vmatprep.subr.bf16.mxu0 0
      %4896 = vmatpush1.bf16.msra.mxu0 0
      %4897 = vmatprep.subr.bf16.mxu0 0
      %4898 = vmatpush1.bf16.msra.mxu0 0
      %4899 = vmatprep.subr.bf16.mxu0 0
      %4900 = vmatpush1.bf16.msra.mxu0 0
      %4901 = vmatprep.mubr.bf16.mxu0 0
      %4902 = vmatmul.mubr.bf16.gmra.mrb[0].mxu0 %v4661
      %v4903 = vpop.f32.mrb[0].mxu0
      %v4904 = vadd.f32 %v4743, %v4903
      %v4905 = vpop.f32.mrb[0].mxu0
      %v4906 = vpop.f32.mrb[0].mxu0
      %v4907 = vadd.f32 %v4746, %v4906
      %v4908 = vpop.f32.mrb[0].mxu0
      %4909 = vmatprep.mubr.bf16.mxu0 0
      %4910 = vmatmul.mubr.bf16.gmra.mrb[0].mxu0 %v4664
      %v4911 = vpop.f32.mrb[0].mxu0
      %v4912 = vadd.f32 %v4751, %v4911
      %v4913 = vpop.f32.mrb[0].mxu0
      %v4914 = vpop.f32.mrb[0].mxu0
      %v4915 = vadd.f32 %v4754, %v4914
      %v4916 = vpop.f32.mrb[0].mxu0
      %4917 = vmatprep.mubr.bf16.mxu0 0
      %4918 = vmatmul.mubr.bf16.gmra.mrb[0].mxu0 %v4667
      %v4919 = vpop.f32.mrb[0].mxu0
      %v4920 = vadd.f32 %v4759, %v4919
      %v4921 = vpop.f32.mrb[0].mxu0
      %v4922 = vpop.f32.mrb[0].mxu0
      %v4923 = vadd.f32 %v4762, %v4922
      %v4924 = vpop.f32.mrb[0].mxu0
      %4925 = vmatprep.mubr.bf16.mxu0 0
      %4926 = vmatmul.mubr.bf16.gmra.mrb[0].mxu0 %v4670
      %v4927 = vpop.f32.mrb[0].mxu0
      %v4928 = vadd.f32 %v4767, %v4927
      %v4929 = vpop.f32.mrb[0].mxu0
      %v4930 = vpop.f32.mrb[0].mxu0
      %v4931 = vadd.f32 %v4770, %v4930
      %v4932 = vpop.f32.mrb[0].mxu0
      %4933 = vmatprep.mubr.bf16.mxu0 0
      %4934 = vmatmul.mubr.bf16.gmra.mrb[0].mxu0 %v4673
      %v4935 = vpop.f32.mrb[0].mxu0
      %v4936 = vadd.f32 %v4775, %v4935
      %v4937 = vpop.f32.mrb[0].mxu0
      %v4938 = vpop.f32.mrb[0].mxu0
      %v4939 = vadd.f32 %v4778, %v4938
      %v4940 = vpop.f32.mrb[0].mxu0
      %4941 = vmatprep.mubr.bf16.mxu0 0
      %4942 = vmatmul.mubr.bf16.gmra.mrb[0].mxu0 %v4676
      %v4943 = vpop.f32.mrb[0].mxu0
      %v4944 = vadd.f32 %v4783, %v4943
      %v4945 = vpop.f32.mrb[0].mxu0
      %v4946 = vpop.f32.mrb[0].mxu0
      %v4947 = vadd.f32 %v4786, %v4946
      %v4948 = vpop.f32.mrb[0].mxu0
      %4949 = vmatprep.mubr.bf16.mxu0 0
      %4950 = vmatmul.mubr.bf16.gmra.mrb[0].mxu0 %v4679
      %v4951 = vpop.f32.mrb[0].mxu0
      %v4952 = vadd.f32 %v4791, %v4951
      %v4953 = vpop.f32.mrb[0].mxu0
      %v4954 = vpop.f32.mrb[0].mxu0
      %v4955 = vadd.f32 %v4794, %v4954
      %v4956 = vpop.f32.mrb[0].mxu0
      %4957 = vmatprep.mubr.bf16.mxu0 0
      %4958 = vmatmul.mubr.bf16.gmra.mrb[0].mxu0 %v4682
      %v4959 = vpop.f32.mrb[0].mxu0
      %v4960 = vadd.f32 %v4799, %v4959
      %v4961 = vpop.f32.mrb[0].mxu0
      %v4962 = vpop.f32.mrb[0].mxu0
      %v4963 = vadd.f32 %v4802, %v4962
      %v4964 = vpop.f32.mrb[0].mxu0
      %4965 = vmatprep.mubr.bf16.mxu0 0
      %4966 = vmatmul.mubr.bf16.gmra.mrb[0].mxu0 %v4685
      %v4967 = vpop.f32.mrb[0].mxu0
      %v4968 = vadd.f32 %v4807, %v4967
      %v4969 = vpop.f32.mrb[0].mxu0
      %v4970 = vpop.f32.mrb[0].mxu0
      %v4971 = vadd.f32 %v4810, %v4970
      %v4972 = vpop.f32.mrb[0].mxu0
      %4973 = vmatprep.mubr.bf16.mxu0 0
      %4974 = vmatmul.mubr.bf16.gmra.mrb[0].mxu0 %v4688
      %v4975 = vpop.f32.mrb[0].mxu0
      %v4976 = vadd.f32 %v4815, %v4975
      %v4977 = vpop.f32.mrb[0].mxu0
      %v4978 = vpop.f32.mrb[0].mxu0
      %v4979 = vadd.f32 %v4818, %v4978
      %v4980 = vpop.f32.mrb[0].mxu0
      %4981 = vmatprep.mubr.bf16.mxu0 0
      %4982 = vmatmul.mubr.bf16.gmra.mrb[0].mxu0 %v4691
      %v4983 = vpop.f32.mrb[0].mxu0
      %v4984 = vadd.f32 %v4823, %v4983
      %v4985 = vpop.f32.mrb[0].mxu0
      %v4986 = vpop.f32.mrb[0].mxu0
      %v4987 = vadd.f32 %v4826, %v4986
      %v4988 = vpop.f32.mrb[0].mxu0
      %4989 = vmatprep.mubr.bf16.mxu0 0
      %4990 = vmatmul.mubr.bf16.gmra.mrb[0].mxu0 %v4694
      %v4991 = vpop.f32.mrb[0].mxu0
      %v4992 = vadd.f32 %v4831, %v4991
      %v4993 = vpop.f32.mrb[0].mxu0
      %v4994 = vpop.f32.mrb[0].mxu0
      %v4995 = vadd.f32 %v4834, %v4994
      %v4996 = vpop.f32.mrb[0].mxu0
      %4997 = vmatprep.mubr.bf16.mxu0 0
      %4998 = vmatmul.mubr.bf16.gmra.mrb[0].mxu0 %v4697
      %v4999 = vpop.f32.mrb[0].mxu0
      %v5000 = vadd.f32 %v4839, %v4999
      %v5001 = vpop.f32.mrb[0].mxu0
      %v5002 = vpop.f32.mrb[0].mxu0
      %v5003 = vadd.f32 %v4842, %v5002
      %v5004 = vpop.f32.mrb[0].mxu0
      %5005 = vmatprep.mubr.bf16.mxu0 0
      %5006 = vmatmul.mubr.bf16.gmra.mrb[0].mxu0 %v4700
      %v5007 = vpop.f32.mrb[0].mxu0
      %v5008 = vadd.f32 %v4847, %v5007
      %v5009 = vpop.f32.mrb[0].mxu0
      %v5010 = vpop.f32.mrb[0].mxu0
      %v5011 = vadd.f32 %v4850, %v5010
      %v5012 = vpop.f32.mrb[0].mxu0
      %5013 = vmatprep.mubr.bf16.mxu0 0
      %5014 = vmatmul.mubr.bf16.gmra.mrb[0].mxu0 %v4703
      %v5015 = vpop.f32.mrb[0].mxu0
      %v5016 = vadd.f32 %v4855, %v5015
      %v5017 = vpop.f32.mrb[0].mxu0
      %v5018 = vpop.f32.mrb[0].mxu0
      %v5019 = vadd.f32 %v4858, %v5018
      %v5020 = vpop.f32.mrb[0].mxu0
      %5021 = vmatprep.mubr.bf16.mxu0 0
      %5022 = vmatmul.mubr.bf16.gmra.mrb[0].mxu0 %v4706
      %v5023 = vpop.f32.mrb[0].mxu0
      %v5024 = vadd.f32 %v4863, %v5023
      %v5025 = vpop.f32.mrb[0].mxu0
      %v5026 = vpop.f32.mrb[0].mxu0
      %v5027 = vadd.f32 %v4866, %v5026
      %v5028 = vpop.f32.mrb[0].mxu0
      %5029 = vdwg.mxu0
      %v5030 = vsel %vm2152, %v4904, 0.0
      %v5031 = vsel %vm2152, %v4907, 0.0
      %v5032 = vadd.f32 %v5030, %v5031
      %v5033 = vsel %vm2152, %v4912, 0.0
      %v5034 = vadd.f32 %v5032, %v5033
      %v5035 = vsel %vm2152, %v4915, 0.0
      %v5036 = vadd.f32 %v5034, %v5035
      %v5037 = vsel %vm2152, %v4920, 0.0
      %v5038 = vadd.f32 %v5036, %v5037
      %v5039 = vsel %vm2152, %v4923, 0.0
      %v5040 = vadd.f32 %v5038, %v5039
      %v5041 = vsel %vm2152, %v4928, 0.0
      %v5042 = vadd.f32 %v5040, %v5041
      %v5043 = vsel %vm2152, %v4931, 0.0
      %v5044 = vadd.f32 %v5042, %v5043
      %v5045 = vsel %vm2152, %v4936, 0.0
      %v5046 = vadd.f32 %v5044, %v5045
      %v5047 = vsel %vm2152, %v4939, 0.0
      %v5048 = vadd.f32 %v5046, %v5047
      %v5049 = vsel %vm2152, %v4944, 0.0
      %v5050 = vadd.f32 %v5048, %v5049
      %v5051 = vsel %vm2152, %v4947, 0.0
      %v5052 = vadd.f32 %v5050, %v5051
      %v5053 = vsel %vm2152, %v4952, 0.0
      %v5054 = vadd.f32 %v5052, %v5053
      %v5055 = vsel %vm2152, %v4955, 0.0
      %v5056 = vadd.f32 %v5054, %v5055
      %v5057 = vsel %vm2152, %v4960, 0.0
      %v5058 = vadd.f32 %v5056, %v5057
      %v5059 = vsel %vm2152, %v4963, 0.0
      %v5060 = vadd.f32 %v5058, %v5059
      %v5061 = vsel %vm2152, %v4968, 0.0
      %v5062 = vadd.f32 %v5060, %v5061
      %v5063 = vsel %vm2152, %v4971, 0.0
      %v5064 = vadd.f32 %v5062, %v5063
      %v5065 = vsel %vm2152, %v4976, 0.0
      %v5066 = vadd.f32 %v5064, %v5065
      %v5067 = vsel %vm2152, %v4979, 0.0
      %v5068 = vadd.f32 %v5066, %v5067
      %v5069 = vsel %vm2152, %v4984, 0.0
      %v5070 = vadd.f32 %v5068, %v5069
      %v5071 = vsel %vm2152, %v4987, 0.0
      %v5072 = vadd.f32 %v5070, %v5071
      %v5073 = vsel %vm2152, %v4992, 0.0
      %v5074 = vadd.f32 %v5072, %v5073
      %v5075 = vsel %vm2152, %v4995, 0.0
      %v5076 = vadd.f32 %v5074, %v5075
      %v5077 = vsel %vm2152, %v5000, 0.0
      %v5078 = vadd.f32 %v5076, %v5077
      %v5079 = vsel %vm2152, %v5003, 0.0
      %v5080 = vadd.f32 %v5078, %v5079
      %v5081 = vsel %vm2152, %v5008, 0.0
      %v5082 = vadd.f32 %v5080, %v5081
      %v5083 = vsel %vm2152, %v5011, 0.0
      %v5084 = vadd.f32 %v5082, %v5083
      %v5085 = vsel %vm2152, %v5016, 0.0
      %v5086 = vadd.f32 %v5084, %v5085
      %v5087 = vsel %vm2152, %v5019, 0.0
      %v5088 = vadd.f32 %v5086, %v5087
      %v5089 = vsel %vm2152, %v5024, 0.0
      %v5090 = vadd.f32 %v5088, %v5089
      %v5091 = vsel %vm2152, %v5027, 0.0
      %v5092 = vadd.f32 %v5090, %v5091
      %v5093 = vrot.slane %v5092, 4
      %v5094 = vadd.f32 %v5092, %v5093
      %v5095 = vrot.slane %v5094, 2
      %v5096 = vadd.f32 %v5094, %v5095
      %v5097 = vrot.slane %v5096, 1
      %v5098 = vadd.f32 %v5096, %v5097
      %v5099 = vmul.f32 %v4904, %v4904
      %v5100 = vmul.f32 %v4907, %v4907
      %v5101 = vmul.f32 %v4912, %v4912
      %v5102 = vmul.f32 %v4915, %v4915
      %v5103 = vmul.f32 %v4920, %v4920
      %v5104 = vmul.f32 %v4923, %v4923
      %v5105 = vmul.f32 %v4928, %v4928
      %v5106 = vmul.f32 %v4931, %v4931
      %v5107 = vmul.f32 %v4936, %v4936
      %v5108 = vmul.f32 %v4939, %v4939
      %v5109 = vmul.f32 %v4944, %v4944
      %v5110 = vmul.f32 %v4947, %v4947
      %v5111 = vmul.f32 %v4952, %v4952
      %v5112 = vmul.f32 %v4955, %v4955
      %v5113 = vmul.f32 %v4960, %v4960
      %v5114 = vmul.f32 %v4963, %v4963
      %v5115 = vmul.f32 %v4968, %v4968
      %v5116 = vmul.f32 %v4971, %v4971
      %v5117 = vmul.f32 %v4976, %v4976
      %v5118 = vmul.f32 %v4979, %v4979
      %v5119 = vmul.f32 %v4984, %v4984
      %v5120 = vmul.f32 %v4987, %v4987
      %v5121 = vmul.f32 %v4992, %v4992
      %v5122 = vmul.f32 %v4995, %v4995
      %v5123 = vmul.f32 %v5000, %v5000
      %v5124 = vmul.f32 %v5003, %v5003
      %v5125 = vmul.f32 %v5008, %v5008
      %v5126 = vmul.f32 %v5011, %v5011
      %v5127 = vmul.f32 %v5016, %v5016
      %v5128 = vmul.f32 %v5019, %v5019
      %v5129 = vmul.f32 %v5024, %v5024
      %v5130 = vmul.f32 %v5027, %v5027
      %v5131 = vsel %vm2152, %v5099, 0.0
      %v5132 = vsel %vm2152, %v5100, 0.0
      %v5133 = vadd.f32 %v5131, %v5132
      %v5134 = vsel %vm2152, %v5101, 0.0
      %v5135 = vadd.f32 %v5133, %v5134
      %v5136 = vsel %vm2152, %v5102, 0.0
      %v5137 = vadd.f32 %v5135, %v5136
      %v5138 = vsel %vm2152, %v5103, 0.0
      %v5139 = vadd.f32 %v5137, %v5138
      %v5140 = vsel %vm2152, %v5104, 0.0
      %v5141 = vadd.f32 %v5139, %v5140
      %v5142 = vsel %vm2152, %v5105, 0.0
      %v5143 = vadd.f32 %v5141, %v5142
      %v5144 = vsel %vm2152, %v5106, 0.0
      %v5145 = vadd.f32 %v5143, %v5144
      %v5146 = vsel %vm2152, %v5107, 0.0
      %v5147 = vadd.f32 %v5145, %v5146
      %v5148 = vsel %vm2152, %v5108, 0.0
      %v5149 = vadd.f32 %v5147, %v5148
      %v5150 = vsel %vm2152, %v5109, 0.0
      %v5151 = vadd.f32 %v5149, %v5150
      %v5152 = vsel %vm2152, %v5110, 0.0
      %v5153 = vadd.f32 %v5151, %v5152
      %v5154 = vsel %vm2152, %v5111, 0.0
      %v5155 = vadd.f32 %v5153, %v5154
      %v5156 = vsel %vm2152, %v5112, 0.0
      %v5157 = vadd.f32 %v5155, %v5156
      %v5158 = vsel %vm2152, %v5113, 0.0
      %v5159 = vadd.f32 %v5157, %v5158
      %v5160 = vsel %vm2152, %v5114, 0.0
      %v5161 = vadd.f32 %v5159, %v5160
      %v5162 = vsel %vm2152, %v5115, 0.0
      %v5163 = vadd.f32 %v5161, %v5162
      %v5164 = vsel %vm2152, %v5116, 0.0
      %v5165 = vadd.f32 %v5163, %v5164
      %v5166 = vsel %vm2152, %v5117, 0.0
      %v5167 = vadd.f32 %v5165, %v5166
      %v5168 = vsel %vm2152, %v5118, 0.0
      %v5169 = vadd.f32 %v5167, %v5168
      %v5170 = vsel %vm2152, %v5119, 0.0
      %v5171 = vadd.f32 %v5169, %v5170
      %v5172 = vsel %vm2152, %v5120, 0.0
      %v5173 = vadd.f32 %v5171, %v5172
      %v5174 = vsel %vm2152, %v5121, 0.0
      %v5175 = vadd.f32 %v5173, %v5174
      %v5176 = vsel %vm2152, %v5122, 0.0
      %v5177 = vadd.f32 %v5175, %v5176
      %v5178 = vsel %vm2152, %v5123, 0.0
      %v5179 = vadd.f32 %v5177, %v5178
      %v5180 = vsel %vm2152, %v5124, 0.0
      %v5181 = vadd.f32 %v5179, %v5180
      %v5182 = vsel %vm2152, %v5125, 0.0
      %v5183 = vadd.f32 %v5181, %v5182
      %v5184 = vsel %vm2152, %v5126, 0.0
      %v5185 = vadd.f32 %v5183, %v5184
      %v5186 = vsel %vm2152, %v5127, 0.0
      %v5187 = vadd.f32 %v5185, %v5186
      %v5188 = vsel %vm2152, %v5128, 0.0
      %v5189 = vadd.f32 %v5187, %v5188
      %v5190 = vsel %vm2152, %v5129, 0.0
      %v5191 = vadd.f32 %v5189, %v5190
      %v5192 = vsel %vm2152, %v5130, 0.0
      %v5193 = vadd.f32 %v5191, %v5192
      %v5194 = vrot.slane %v5193, 4
      %v5195 = vadd.f32 %v5193, %v5194
      %v5196 = vrot.slane %v5195, 2
      %v5197 = vadd.f32 %v5195, %v5196
      %v5198 = vrot.slane %v5197, 1
      %v5199 = vadd.f32 %v5197, %v5198
      %v5200 = vmul.f32 %v5098, 0.00390625
      %v5201 = vmul.f32 %v5199, 0.00390625
      %v5202 = vmul.f32 %v5200, %v5200
      %v5203 = vsub.f32 %v5201, %v5202
      %v5204 = vmax.f32 %v5203, 0.0
      %v5205 = vsub.f32 %v4904, %v5200
      %v5206 = vsub.f32 %v4907, %v5200
      %v5207 = vsub.f32 %v4912, %v5200
      %v5208 = vsub.f32 %v4915, %v5200
      %v5209 = vsub.f32 %v4920, %v5200
      %v5210 = vsub.f32 %v4923, %v5200
      %v5211 = vsub.f32 %v4928, %v5200
      %v5212 = vsub.f32 %v4931, %v5200
      %v5213 = vsub.f32 %v4936, %v5200
      %v5214 = vsub.f32 %v4939, %v5200
      %v5215 = vsub.f32 %v4944, %v5200
      %v5216 = vsub.f32 %v4947, %v5200
      %v5217 = vsub.f32 %v4952, %v5200
      %v5218 = vsub.f32 %v4955, %v5200
      %v5219 = vsub.f32 %v4960, %v5200
      %v5220 = vsub.f32 %v4963, %v5200
      %v5221 = vsub.f32 %v4968, %v5200
      %v5222 = vsub.f32 %v4971, %v5200
      %v5223 = vsub.f32 %v4976, %v5200
      %v5224 = vsub.f32 %v4979, %v5200
      %v5225 = vsub.f32 %v4984, %v5200
      %v5226 = vsub.f32 %v4987, %v5200
      %v5227 = vsub.f32 %v4992, %v5200
      %v5228 = vsub.f32 %v4995, %v5200
      %v5229 = vsub.f32 %v5000, %v5200
      %v5230 = vsub.f32 %v5003, %v5200
      %v5231 = vsub.f32 %v5008, %v5200
      %v5232 = vsub.f32 %v5011, %v5200
      %v5233 = vsub.f32 %v5016, %v5200
      %v5234 = vsub.f32 %v5019, %v5200
      %v5235 = vsub.f32 %v5024, %v5200
      %v5236 = vsub.f32 %v5027, %v5200
      %v5237 = vadd.f32 %v5204, 1e-05
      %v5238 = vrsqrt.pop %v5237
      %v5239 = vmul.f32 %v5205, %v5238
      %v5240 = vmul.f32 %v5206, %v5238
      %v5241 = vmul.f32 %v5207, %v5238
      %v5242 = vmul.f32 %v5208, %v5238
      %v5243 = vmul.f32 %v5209, %v5238
      %v5244 = vmul.f32 %v5210, %v5238
      %v5245 = vmul.f32 %v5211, %v5238
      %v5246 = vmul.f32 %v5212, %v5238
      %v5247 = vmul.f32 %v5213, %v5238
      %v5248 = vmul.f32 %v5214, %v5238
      %v5249 = vmul.f32 %v5215, %v5238
      %v5250 = vmul.f32 %v5216, %v5238
      %v5251 = vmul.f32 %v5217, %v5238
      %v5252 = vmul.f32 %v5218, %v5238
      %v5253 = vmul.f32 %v5219, %v5238
      %v5254 = vmul.f32 %v5220, %v5238
      %v5255 = vmul.f32 %v5221, %v5238
      %v5256 = vmul.f32 %v5222, %v5238
      %v5257 = vmul.f32 %v5223, %v5238
      %v5258 = vmul.f32 %v5224, %v5238
      %v5259 = vmul.f32 %v5225, %v5238
      %v5260 = vmul.f32 %v5226, %v5238
      %v5261 = vmul.f32 %v5227, %v5238
      %v5262 = vmul.f32 %v5228, %v5238
      %v5263 = vmul.f32 %v5229, %v5238
      %v5264 = vmul.f32 %v5230, %v5238
      %v5265 = vmul.f32 %v5231, %v5238
      %v5266 = vmul.f32 %v5232, %v5238
      %v5267 = vmul.f32 %v5233, %v5238
      %v5268 = vmul.f32 %v5234, %v5238
      %v5269 = vmul.f32 %v5235, %v5238
      %v5270 = vmul.f32 %v5236, %v5238
      %5303 = vrot.lane.b32.xlu0 %v2773, 96
      %v5304 = vpop.permute.xlu0 %5303
      %5305 = vrot.lane.b32.xlu0 %v2774, 96
      %v5306 = vpop.permute.xlu0 %5305
      %5307 = vrot.lane.b32.xlu0 %v2775, 96
      %v5308 = vpop.permute.xlu0 %5307
      %5309 = vrot.lane.b32.xlu0 %v2776, 96
      %v5310 = vpop.permute.xlu0 %5309
      %5311 = vrot.lane.b32.xlu0 %v2777, 96
      %v5312 = vpop.permute.xlu0 %5311
      %5313 = vrot.lane.b32.xlu0 %v2778, 96
      %v5314 = vpop.permute.xlu0 %5313
      %5315 = vrot.lane.b32.xlu0 %v2779, 96
      %v5316 = vpop.permute.xlu0 %5315
      %5317 = vrot.lane.b32.xlu0 %v2780, 96
      %v5318 = vpop.permute.xlu0 %5317
      %5319 = vrot.lane.b32.xlu0 %v2781, 96
      %v5320 = vpop.permute.xlu0 %5319
      %5321 = vrot.lane.b32.xlu0 %v2782, 96
      %v5322 = vpop.permute.xlu0 %5321
      %5323 = vrot.lane.b32.xlu0 %v2783, 96
      %v5324 = vpop.permute.xlu0 %5323
      %5325 = vrot.lane.b32.xlu0 %v2784, 96
      %v5326 = vpop.permute.xlu0 %5325
      %5327 = vrot.lane.b32.xlu0 %v2785, 96
      %v5328 = vpop.permute.xlu0 %5327
      %5329 = vrot.lane.b32.xlu0 %v2786, 96
      %v5330 = vpop.permute.xlu0 %5329
      %5331 = vrot.lane.b32.xlu0 %v2787, 96
      %v5332 = vpop.permute.xlu0 %5331
      %5333 = vrot.lane.b32.xlu0 %v2788, 96
      %v5334 = vpop.permute.xlu0 %5333
      %5335 = vrot.lane.b32.xlu0 %v2789, 96
      %v5336 = vpop.permute.xlu0 %5335
      %5337 = vrot.lane.b32.xlu0 %v2790, 96
      %v5338 = vpop.permute.xlu0 %5337
      %5339 = vrot.lane.b32.xlu0 %v2791, 96
      %v5340 = vpop.permute.xlu0 %5339
      %5341 = vrot.lane.b32.xlu0 %v2792, 96
      %v5342 = vpop.permute.xlu0 %5341
      %5343 = vrot.lane.b32.xlu0 %v2793, 96
      %v5344 = vpop.permute.xlu0 %5343
      %5345 = vrot.lane.b32.xlu0 %v2794, 96
      %v5346 = vpop.permute.xlu0 %5345
      %5347 = vrot.lane.b32.xlu0 %v2795, 96
      %v5348 = vpop.permute.xlu0 %5347
      %5349 = vrot.lane.b32.xlu0 %v2796, 96
      %v5350 = vpop.permute.xlu0 %5349
      %5351 = vrot.lane.b32.xlu0 %v2797, 96
      %v5352 = vpop.permute.xlu0 %5351
      %5353 = vrot.lane.b32.xlu0 %v2798, 96
      %v5354 = vpop.permute.xlu0 %5353
      %5355 = vrot.lane.b32.xlu0 %v2799, 96
      %v5356 = vpop.permute.xlu0 %5355
      %5357 = vrot.lane.b32.xlu0 %v2800, 96
      %v5358 = vpop.permute.xlu0 %5357
      %5359 = vrot.lane.b32.xlu0 %v2801, 96
      %v5360 = vpop.permute.xlu0 %5359
      %5361 = vrot.lane.b32.xlu0 %v2802, 96
      %v5362 = vpop.permute.xlu0 %5361
      %5363 = vrot.lane.b32.xlu0 %v2803, 96
      %v5364 = vpop.permute.xlu0 %5363
      %5365 = vrot.lane.b32.xlu0 %v2804, 96
      %v5366 = vpop.permute.xlu0 %5365
      %v5399 = vadd.f32 %v5239, %v5304
      %v5400 = vadd.f32 %v5240, %v5306
      %v5401 = vadd.f32 %v5241, %v5308
      %v5402 = vadd.f32 %v5242, %v5310
      %v5403 = vadd.f32 %v5243, %v5312
      %v5404 = vadd.f32 %v5244, %v5314
      %v5405 = vadd.f32 %v5245, %v5316
      %v5406 = vadd.f32 %v5246, %v5318
      %v5407 = vadd.f32 %v5247, %v5320
      %v5408 = vadd.f32 %v5248, %v5322
      %v5409 = vadd.f32 %v5249, %v5324
      %v5410 = vadd.f32 %v5250, %v5326
      %v5411 = vadd.f32 %v5251, %v5328
      %v5412 = vadd.f32 %v5252, %v5330
      %v5413 = vadd.f32 %v5253, %v5332
      %v5414 = vadd.f32 %v5254, %v5334
      %v5415 = vadd.f32 %v5255, %v5336
      %v5416 = vadd.f32 %v5256, %v5338
      %v5417 = vadd.f32 %v5257, %v5340
      %v5418 = vadd.f32 %v5258, %v5342
      %v5419 = vadd.f32 %v5259, %v5344
      %v5420 = vadd.f32 %v5260, %v5346
      %v5421 = vadd.f32 %v5261, %v5348
      %v5422 = vadd.f32 %v5262, %v5350
      %v5423 = vadd.f32 %v5263, %v5352
      %v5424 = vadd.f32 %v5264, %v5354
      %v5425 = vadd.f32 %v5265, %v5356
      %v5426 = vadd.f32 %v5266, %v5358
      %v5427 = vadd.f32 %v5267, %v5360
      %v5428 = vadd.f32 %v5268, %v5362
      %v5429 = vadd.f32 %v5269, %v5364
      %v5430 = vadd.f32 %v5270, %v5366
      %vm5431 = vcmp.ge.f32.partialorder %v5399, 0.0
      %vm5432 = vcmp.ge.f32.partialorder %v5400, 0.0
      %vm5433 = vcmp.ge.f32.partialorder %v5401, 0.0
      %vm5434 = vcmp.ge.f32.partialorder %v5402, 0.0
      %vm5435 = vcmp.ge.f32.partialorder %v5403, 0.0
      %vm5436 = vcmp.ge.f32.partialorder %v5404, 0.0
      %vm5437 = vcmp.ge.f32.partialorder %v5405, 0.0
      %vm5438 = vcmp.ge.f32.partialorder %v5406, 0.0
      %vm5439 = vcmp.ge.f32.partialorder %v5407, 0.0
      %vm5440 = vcmp.ge.f32.partialorder %v5408, 0.0
      %vm5441 = vcmp.ge.f32.partialorder %v5409, 0.0
      %vm5442 = vcmp.ge.f32.partialorder %v5410, 0.0
      %vm5443 = vcmp.ge.f32.partialorder %v5411, 0.0
      %vm5444 = vcmp.ge.f32.partialorder %v5412, 0.0
      %vm5445 = vcmp.ge.f32.partialorder %v5413, 0.0
      %vm5446 = vcmp.ge.f32.partialorder %v5414, 0.0
      %vm5447 = vcmp.ge.f32.partialorder %v5415, 0.0
      %vm5448 = vcmp.ge.f32.partialorder %v5416, 0.0
      %vm5449 = vcmp.ge.f32.partialorder %v5417, 0.0
      %vm5450 = vcmp.ge.f32.partialorder %v5418, 0.0
      %vm5451 = vcmp.ge.f32.partialorder %v5419, 0.0
      %vm5452 = vcmp.ge.f32.partialorder %v5420, 0.0
      %vm5453 = vcmp.ge.f32.partialorder %v5421, 0.0
      %vm5454 = vcmp.ge.f32.partialorder %v5422, 0.0
      %vm5455 = vcmp.ge.f32.partialorder %v5423, 0.0
      %vm5456 = vcmp.ge.f32.partialorder %v5424, 0.0
      %vm5457 = vcmp.ge.f32.partialorder %v5425, 0.0
      %vm5458 = vcmp.ge.f32.partialorder %v5426, 0.0
      %vm5459 = vcmp.ge.f32.partialorder %v5427, 0.0
      %vm5460 = vcmp.ge.f32.partialorder %v5428, 0.0
      %vm5461 = vcmp.ge.f32.partialorder %v5429, 0.0
      %vm5462 = vcmp.ge.f32.partialorder %v5430, 0.0
      %v5463 = vmul.f32 %v5399, 0.01
      %v5464 = vmul.f32 %v5400, 0.01
      %v5465 = vmul.f32 %v5401, 0.01
      %v5466 = vmul.f32 %v5402, 0.01
      %v5467 = vmul.f32 %v5403, 0.01
      %v5468 = vmul.f32 %v5404, 0.01
      %v5469 = vmul.f32 %v5405, 0.01
      %v5470 = vmul.f32 %v5406, 0.01
      %v5471 = vmul.f32 %v5407, 0.01
      %v5472 = vmul.f32 %v5408, 0.01
      %v5473 = vmul.f32 %v5409, 0.01
      %v5474 = vmul.f32 %v5410, 0.01
      %v5475 = vmul.f32 %v5411, 0.01
      %v5476 = vmul.f32 %v5412, 0.01
      %v5477 = vmul.f32 %v5413, 0.01
      %v5478 = vmul.f32 %v5414, 0.01
      %v5479 = vmul.f32 %v5415, 0.01
      %v5480 = vmul.f32 %v5416, 0.01
      %v5481 = vmul.f32 %v5417, 0.01
      %v5482 = vmul.f32 %v5418, 0.01
      %v5483 = vmul.f32 %v5419, 0.01
      %v5484 = vmul.f32 %v5420, 0.01
      %v5485 = vmul.f32 %v5421, 0.01
      %v5486 = vmul.f32 %v5422, 0.01
      %v5487 = vmul.f32 %v5423, 0.01
      %v5488 = vmul.f32 %v5424, 0.01
      %v5489 = vmul.f32 %v5425, 0.01
      %v5490 = vmul.f32 %v5426, 0.01
      %v5491 = vmul.f32 %v5427, 0.01
      %v5492 = vmul.f32 %v5428, 0.01
      %v5493 = vmul.f32 %v5429, 0.01
      %v5494 = vmul.f32 %v5430, 0.01
      %v5495 = vsel %vm5431, %v5399, %v5463
      %v5496 = vsel %vm5432, %v5400, %v5464
      %v5497 = vsel %vm5433, %v5401, %v5465
      %v5498 = vsel %vm5434, %v5402, %v5466
      %v5499 = vsel %vm5435, %v5403, %v5467
      %v5500 = vsel %vm5436, %v5404, %v5468
      %v5501 = vsel %vm5437, %v5405, %v5469
      %v5502 = vsel %vm5438, %v5406, %v5470
      %v5503 = vsel %vm5439, %v5407, %v5471
      %v5504 = vsel %vm5440, %v5408, %v5472
      %v5505 = vsel %vm5441, %v5409, %v5473
      %v5506 = vsel %vm5442, %v5410, %v5474
      %v5507 = vsel %vm5443, %v5411, %v5475
      %v5508 = vsel %vm5444, %v5412, %v5476
      %v5509 = vsel %vm5445, %v5413, %v5477
      %v5510 = vsel %vm5446, %v5414, %v5478
      %v5511 = vsel %vm5447, %v5415, %v5479
      %v5512 = vsel %vm5448, %v5416, %v5480
      %v5513 = vsel %vm5449, %v5417, %v5481
      %v5514 = vsel %vm5450, %v5418, %v5482
      %v5515 = vsel %vm5451, %v5419, %v5483
      %v5516 = vsel %vm5452, %v5420, %v5484
      %v5517 = vsel %vm5453, %v5421, %v5485
      %v5518 = vsel %vm5454, %v5422, %v5486
      %v5519 = vsel %vm5455, %v5423, %v5487
      %v5520 = vsel %vm5456, %v5424, %v5488
      %v5521 = vsel %vm5457, %v5425, %v5489
      %v5522 = vsel %vm5458, %v5426, %v5490
      %v5523 = vsel %vm5459, %v5427, %v5491
      %v5524 = vsel %vm5460, %v5428, %v5492
      %v5525 = vsel %vm5461, %v5429, %v5493
      %v5526 = vsel %vm5462, %v5430, %v5494
      %5527 = vxpose.xlu0.b32.start [1/16] %v5495, 128
      %5528 = vxpose.xlu0.b32.cont [2/16] %v5496, 128
      %5529 = vxpose.xlu0.b32.cont [3/16] %v5497, 128
      %5530 = vxpose.xlu0.b32.cont [4/16] %v5498, 128
      %5531 = vxpose.xlu0.b32.cont [5/16] %v5499, 128
      %5532 = vxpose.xlu0.b32.cont [6/16] %v5500, 128
      %5533 = vxpose.xlu0.b32.cont [7/16] %v5501, 128
      %5534 = vxpose.xlu0.b32.cont [8/16] %v5502, 128
      %5535 = vxpose.xlu0.b32.cont [9/16] %v5503, 128
      %5536 = vxpose.xlu0.b32.cont [10/16] %v5504, 128
      %5537 = vxpose.xlu0.b32.cont [11/16] %v5505, 128
      %5538 = vxpose.xlu0.b32.cont [12/16] %v5506, 128
      %5539 = vxpose.xlu0.b32.cont [13/16] %v5507, 128
      %5540 = vxpose.xlu0.b32.cont [14/16] %v5508, 128
      %5541 = vxpose.xlu0.b32.cont [15/16] %v5509, 128
      %5542 = vxpose.xlu0.b32.end [16/16] %v5510, 128
      %v5543 = vpop.trf.xlu0
      %v5544 = vpop.trf.xlu0
      %v5545 = vpop.trf.xlu0
      %v5546 = vpop.trf.xlu0
      %v5547 = vpop.trf.xlu0
      %v5548 = vpop.trf.xlu0
      %v5549 = vpop.trf.xlu0
      %v5550 = vpop.trf.xlu0
      %v5551 = vpop.trf.xlu0
      %v5552 = vpop.trf.xlu0
      %v5553 = vpop.trf.xlu0
      %v5554 = vpop.trf.xlu0
      %v5555 = vpop.trf.xlu0
      %v5556 = vpop.trf.xlu0
      %v5557 = vpop.trf.xlu0
      %v5558 = vpop.trf.xlu0
      %5559 = vxpose.xlu0.b32.start [1/16] %v5511, 128
      %5560 = vxpose.xlu0.b32.cont [2/16] %v5512, 128
      %5561 = vxpose.xlu0.b32.cont [3/16] %v5513, 128
      %5562 = vxpose.xlu0.b32.cont [4/16] %v5514, 128
      %5563 = vxpose.xlu0.b32.cont [5/16] %v5515, 128
      %5564 = vxpose.xlu0.b32.cont [6/16] %v5516, 128
      %5565 = vxpose.xlu0.b32.cont [7/16] %v5517, 128
      %5566 = vxpose.xlu0.b32.cont [8/16] %v5518, 128
      %5567 = vxpose.xlu0.b32.cont [9/16] %v5519, 128
      %5568 = vxpose.xlu0.b32.cont [10/16] %v5520, 128
      %5569 = vxpose.xlu0.b32.cont [11/16] %v5521, 128
      %5570 = vxpose.xlu0.b32.cont [12/16] %v5522, 128
      %5571 = vxpose.xlu0.b32.cont [13/16] %v5523, 128
      %5572 = vxpose.xlu0.b32.cont [14/16] %v5524, 128
      %5573 = vxpose.xlu0.b32.cont [15/16] %v5525, 128
      %5574 = vxpose.xlu0.b32.end [16/16] %v5526, 128
      %v5575 = vpop.trf.xlu0
      %v5576 = vpop.trf.xlu0
      %v5577 = vpop.trf.xlu0
      %v5578 = vpop.trf.xlu0
      %v5579 = vpop.trf.xlu0
      %v5580 = vpop.trf.xlu0
      %v5581 = vpop.trf.xlu0
      %v5582 = vpop.trf.xlu0
      %v5583 = vpop.trf.xlu0
      %v5584 = vpop.trf.xlu0
      %v5585 = vpop.trf.xlu0
      %v5586 = vpop.trf.xlu0
      %v5587 = vpop.trf.xlu0
      %v5588 = vpop.trf.xlu0
      %v5589 = vpop.trf.xlu0
      %v5590 = vpop.trf.xlu0
      %5591 = vst [vmem:[%s224] sm:$0xff] %v5543
      %5592 = vst [vmem:[%s224 + $0x8] sm:$0xff] %v5575
      %5593 = vst [vmem:[%s224 + $0x10] sm:$0xff] %v5544
      %5594 = vst [vmem:[%s224 + $0x18] sm:$0xff] %v5576
      %5595 = vst [vmem:[%s224 + $0x20] sm:$0xff] %v5545
      %5596 = vst [vmem:[%s224 + $0x28] sm:$0xff] %v5577
      %5597 = vst [vmem:[%s224 + $0x30] sm:$0xff] %v5546
      %5598 = vst [vmem:[%s224 + $0x38] sm:$0xff] %v5578
      %p5599 = scmp.lt.s32.totalorder %s16, 1
      %s5600 = scalar_select %p5599, %s16, 1
      %s5601 = smul.addr %s5600, 8
      %s5602 = smul.addr %s5601, 8
      %s5603 = scalar_lea.vmem %s5, %s5602
      // Predicated region
      $region41: #{residual_double_conv.1} parent=39 // pred_check
        %p5604 = pneg %p144
      $region42: #{residual_double_conv.1} parent=39 // pred_check_branch
        %5606 = sbr.rel (%p5604) target = $region44
      $region43: #{residual_double_conv.1} parent=39 // pred_region
        _
      $region44: #{residual_double_conv.1} parent=39 // pred_fallthru
        _
    $region40: #{residual_double_conv.1} parent=5 // pred_fallthru
      _
    %p5607 = scmp.le.s32.totalorder 2, %s11
    // Predicated region
    $region45: #{residual_double_conv.1} parent=5 // pred_check
      %p5608 = pneg %p5607
    $region46: #{residual_double_conv.1} parent=5 // pred_check_branch
      %5610 = sbr.rel (%p5608) target = $region48
    $region47: #{residual_double_conv.1} parent=5 // pred_region
      %s5611 = ssub.s32 %s11, 2
      // Predicated region
      $region49: #{residual_double_conv.1} parent=47 // pred_check
        %p5612 = pneg %p150
      $region50: #{residual_double_conv.1} parent=47 // pred_check_branch
        %5614 = sbr.rel (%p5612) target = $region52
      $region51: #{residual_double_conv.1} parent=47 // pred_region
        %p5615 = scmp.lt.s32.totalorder %s17, 1
        %s5616 = scalar_select %p5615, %s17, 1
        %s5617 = smul.addr %s5616, 8
        %s5618 = smul.addr %s5617, 8
        %s5619 = scalar_lea.vmem %s5, %s5618
      $region52: #{residual_double_conv.1} parent=47 // pred_fallthru
        _
    $region48: #{residual_double_conv.1} parent=5 // pred_fallthru
      _
  $region6: #{residual_double_conv.1} parent=0 // loop_footer
    %s15 = sadd.s32 1, %s11
  $region7: #{residual_double_conv.1} parent=0 // loop_footer_branch
    %10 = sbr.rel target = $region3
  $region8: #{residual_double_conv.1} parent=0 // loop_exit
    _

</llo_original>
